<compile_context>
chip_gen: v7x
topology: tpu7x:2x2x1
jax: 0.10.0
libtpu: 0.0.40
codegen_flags: <defaults>
</compile_context>

<pallas_src>
import numpy as np

import jax
import jax.numpy as jnp
from jax import lax
from jax.experimental import pallas as pl
from jax.experimental.pallas import tpu as pltpu

EPS = 1e-3  # the torch module sets BatchNorm2d(..., eps=0.001)


def fused_kernel(x_ref, w1_ref, s_ref, w2_ref, bn_ref, o_ref):
    # x_ref : (Cin, P)     bf16, P = H*W (flat NCHW pixels; free reshape)
    # w1_ref: (Cb, Cin)    f32, 1x1 conv weight (channel block)
    # s_ref : (P, 25*Q)    bf16 0/1 gather selector, tap-major columns t*Q + q
    # w2_ref: (Cb, 25)     f32 depthwise taps, column t = ky*5 + kx
    # bn_ref: (Cb, 4)      f32 packed BN params [g1, b1, g2, b2]
    # o_ref : (Cb, Q)      f32, Q = Ho*Wo (flat NCHW output)
    f32 = jnp.float32
    Cb = o_ref.shape[0]
    P = x_ref.shape[1]
    Q = o_ref.shape[1]

    # ---- 1x1 conv: (Cb,Cin) x (Cin,P) on the MXU, bf16 operands / f32 accum ----
    y = jnp.dot(w1_ref[...].astype(jnp.bfloat16), x_ref[...],
                preferred_element_type=f32)                        # (Cb, P), lane-dense

    # ---- BN1 (train-mode batch stats, biased variance; two-pass) + ReLU ----
    bn = bn_ref[...]
    g1, b1 = bn[:, 0:1], bn[:, 1:2]
    mean1 = jnp.sum(y, axis=1, keepdims=True) * (1.0 / P)
    d1 = y - mean1
    var1 = jnp.sum(d1 * d1, axis=1, keepdims=True) * (1.0 / P)
    scale1 = lax.rsqrt(var1 + EPS) * g1
    y = jnp.maximum(d1 * scale1 + b1, 0.0)                         # (Cb, P) f32

    # ---- depthwise 5x5 / stride 2 / pad 2 via ONE wide gather matmul -------
    # patch[:, t*Q + q] = y[:, input_pixel(t, q)]  (0 for padded taps).
    # Two-term bf16 split of y: S is exactly representable (0/1) and one-hot
    # per column, so two single-pass bf16 matmuls summed in f32 reproduce the
    # f32 gather to ~2^-16.
    s_mat = s_ref[...]
    y_hi = y.astype(jnp.bfloat16)
    y_lo = (y - y_hi.astype(f32)).astype(jnp.bfloat16)
    patch = (jnp.dot(y_hi, s_mat, preferred_element_type=f32)
             + jnp.dot(y_lo, s_mat, preferred_element_type=f32))   # (Cb, 25*Q)

    # per-tap FMA on lane-slices (static 25-way unroll, tiny VPU work)
    w2 = w2_ref[...]
    acc = jnp.zeros((Cb, Q), f32)
    for t in range(25):
        acc = acc + patch[:, t * Q:(t + 1) * Q] * w2[:, t:t + 1]

    # ---- BN2 (train-mode batch stats, biased variance; two-pass) ----
    g2, b2 = bn[:, 2:3], bn[:, 3:4]
    mean2 = jnp.sum(acc, axis=1, keepdims=True) * (1.0 / Q)
    d2 = acc - mean2
    var2 = jnp.sum(d2 * d2, axis=1, keepdims=True) * (1.0 / Q)
    o_ref[...] = d2 * (lax.rsqrt(var2 + EPS) * g2) + b2            # (Cb, Q)


def build_selector(H, W, Ho, Wo):
    """Host-side, input-independent 0/1 gather matrix (P, 25*Q), bf16.

    S[p, t*Q + q] = 1 iff input pixel p == (2*oy + ky - 2, 2*ox + kx - 2),
    q = oy*Wo + ox, t = ky*5 + kx, and the tap is inside the image (zero pad
    falls out for free)."""
    P, Q = H * W, Ho * Wo
    S = np.zeros((P, 25 * Q), np.float32)
    oy, ox = np.divmod(np.arange(Q), Wo)
    for ky in range(5):
        for kx in range(5):
            t = ky * 5 + kx
            iy = 2 * oy + ky - 2
            ix = 2 * ox + kx - 2
            valid = (iy >= 0) & (iy < H) & (ix >= 0) & (ix < W)
            qv = np.nonzero(valid)[0]
            S[(iy * W + ix)[qv], t * Q + qv] = 1.0
    return jnp.asarray(S, dtype=jnp.bfloat16)


def _num_channel_blocks(cout):
    """Shard Cout across the two TensorCores on v7x only (BN stats are
    per-channel, so the split is exact).  On single-TC v5e/v6e extra grid
    steps are pure overhead."""
    try:
        kind = jax.devices()[0].device_kind.lower()
    except Exception:
        return 1
    if ("v7" in kind or "7x" in kind) and cout % 3 == 0 and (cout // 3) % 8 == 0:
        return 3
    return 1


def forward(x_nchw, params):
    """x_nchw: (1, Cin, H, W) f32 -> (1, Cout, H//2, W//2) f32."""
    w1, g1, b1, w2, g2, b2 = params
    N, Cin, H, W = x_nchw.shape
    assert N == 1 and H % 2 == 0 and W % 2 == 0
    Cout = w1.shape[0]
    Ho, Wo = H // 2, W // 2
    P, Q = H * W, Ho * Wo

    nb = _num_channel_blocks(Cout)
    cb = Cout // nb

    # Wrapper-side prep: free reshape of NCHW pixels + bf16 cast (halves x DMA),
    # packed BN params (one DMA), host-built constant selector.
    x2 = x_nchw.reshape(Cin, P).astype(jnp.bfloat16)
    sel = build_selector(H, W, Ho, Wo)                             # (P, 25*Q) bf16
    bn = jnp.stack([g1, b1, g2, b2], axis=1).astype(jnp.float32)   # (Cout, 4)
    w1f = w1.astype(jnp.float32)
    w2f = w2.astype(jnp.float32)

    out = pl.pallas_call(
        fused_kernel,
        out_shape=jax.ShapeDtypeStruct((Cout, Q), jnp.float32),
        grid=(nb,),
        in_specs=[
            pl.BlockSpec((Cin, P), lambda i: (0, 0)),        # x (replicated)
            pl.BlockSpec((cb, Cin), lambda i: (i, 0)),       # w1 (channel block)
            pl.BlockSpec((P, 25 * Q), lambda i: (0, 0)),     # selector (replicated)
            pl.BlockSpec((cb, 25), lambda i: (i, 0)),        # w2 (channel block)
            pl.BlockSpec((cb, 4), lambda i: (i, 0)),         # packed BN params
        ],
        out_specs=pl.BlockSpec((cb, Q), lambda i: (i, 0)),
        compiler_params=pltpu.CompilerParams(dimension_semantics=("parallel",)),
    )(x2, w1f, sel, w2f, bn)

    return out.reshape(1, Cout, Ho, Wo)  # free reshape, already channel-major


def reference(x_nchw, params, *, bf16_conv1):
    """Pure-JAX reference (same train-mode BN semantics).

    bf16_conv1=True additionally rounds the 1x1-conv operands to bf16 so it
    matches the kernel's matmul precision (up to accumulation order)."""
    w1, g1, b1, w2, g2, b2 = params
    Cout, Cin = w1.shape
    x = x_nchw.astype(jnp.float32)
    w1f = w1
    if bf16_conv1:
        x = x.astype(jnp.bfloat16).astype(jnp.float32)
        w1f = w1.astype(jnp.bfloat16).astype(jnp.float32)
    y = jnp.einsum('nchw,dc->ndhw', x, w1f, precision=lax.Precision.HIGHEST)
    m1 = y.mean(axis=(0, 2, 3), keepdims=True)
    v1 = ((y - m1) ** 2).mean(axis=(0, 2, 3), keepdims=True)
    y = (y - m1) * lax.rsqrt(v1 + EPS) * g1.reshape(1, Cout, 1, 1) + b1.reshape(1, Cout, 1, 1)
    y = jnp.maximum(y, 0.0)
    yn = jnp.transpose(y, (0, 2, 3, 1))                                  # NHWC
    k = jnp.transpose(w2.reshape(Cout, 5, 5), (1, 2, 0)).reshape(5, 5, 1, Cout)  # HWIO
    z = lax.conv_general_dilated(yn, k, window_strides=(2, 2),
                                 padding=((2, 2), (2, 2)),
                                 dimension_numbers=('NHWC', 'HWIO', 'NHWC'),
                                 feature_group_count=Cout,
                                 precision=lax.Precision.HIGHEST)
    m2 = z.mean(axis=(0, 1, 2))
    v2 = ((z - m2) ** 2).mean(axis=(0, 1, 2))
    z = (z - m2) * lax.rsqrt(v2 + EPS) * g2 + b2
    return jnp.transpose(z, (0, 3, 1, 2))


if __name__ == "__main__":
    key = jax.random.PRNGKey(0)
    kx_, k1, k2, k3, k4, k5, k6 = jax.random.split(key, 7)

    Cin, Cout, H, W = 24, 72, 16, 16   # channels fixed by the module; small spatial
    x = jax.random.normal(kx_, (1, Cin, H, W), jnp.float32)

    # deterministic parameter init (conv weights random, BN affine near identity)
    w1 = 0.2 * jax.random.normal(k1, (Cout, Cin), jnp.float32)   # 1x1 conv, (Cout, Cin)
    w2 = 0.2 * jax.random.normal(k2, (Cout, 25), jnp.float32)    # depthwise taps, t = ky*5+kx
    g1 = 1.0 + 0.1 * jax.random.normal(k3, (Cout,), jnp.float32)
    b1 = 0.1 * jax.random.normal(k4, (Cout,), jnp.float32)
    g2 = 1.0 + 0.1 * jax.random.normal(k5, (Cout,), jnp.float32)
    b2 = 0.1 * jax.random.normal(k6, (Cout,), jnp.float32)
    params = (w1, g1, b1, w2, g2, b2)

    out = jax.block_until_ready(forward(x, params))
    assert out.shape == (1, Cout, H // 2, W // 2), out.shape

    # tight check vs. a precision-matched reference (same bf16 rounding of the 1x1 conv)
    ref_match = jax.block_until_ready(reference(x, params, bf16_conv1=True))
    err_match = float(jnp.max(jnp.abs(out - ref_match)))
    assert err_match < 2e-3, f"max abs error vs matched ref: {err_match}"

    # sanity check vs. the exact-f32 reference (only stage-1 bf16 rounding differs)
    ref_exact = jax.block_until_ready(reference(x, params, bf16_conv1=False))
    err_exact = float(jnp.max(jnp.abs(out - ref_exact)))
    assert err_exact < 5e-2, f"max abs error vs exact ref: {err_exact}"

    print("KERNEL_OK")
</pallas_src>

<mosaic_0001>
module attributes {stable_mosaic.version = 11 : i64} {
  func.func @fused_kernel(%arg0: i32, %arg1: memref<24x256xbf16, #tpu.memory_space<vmem>>, %arg2: memref<72x24xf32, #tpu.memory_space<vmem>>, %arg3: memref<256x1600xbf16, #tpu.memory_space<vmem>>, %arg4: memref<72x25xf32, #tpu.memory_space<vmem>>, %arg5: memref<72x4xf32, #tpu.memory_space<vmem>>, %arg6: memref<72x64xf32, #tpu.memory_space<vmem>>) attributes {dimension_semantics = [#tpu.dimension_semantics<parallel>], iteration_bounds = array<i64: 1>, scalar_prefetch = 0 : i64, scratch_operands = 0 : i64, tpu.core_type = #tpu.core_type<tc>, window_params = [{pipeline_mode = #tpu.pipeline_mode<synchronous>, transform_indices = @transform_0, window_bounds = array<i64: 24, 256>}, {transform_indices = @transform_1, window_bounds = array<i64: 72, 24>}, {pipeline_mode = #tpu.pipeline_mode<synchronous>, transform_indices = @transform_2, window_bounds = array<i64: 256, 1600>}, {transform_indices = @transform_3, window_bounds = array<i64: 72, 25>}, {transform_indices = @transform_4, window_bounds = array<i64: 72, 4>}, {transform_indices = @transform_5, window_bounds = array<i64: 72, 64>}]} {
    %c0 = arith.constant 0 : index
    %c0_0 = arith.constant 0 : index
    %0 = vector.load %arg2[%c0, %c0_0] : memref<72x24xf32, #tpu.memory_space<vmem>>, vector<72x24xf32>
    %1 = arith.truncf %0 : vector<72x24xf32> to vector<72x24xbf16>
    %c0_1 = arith.constant 0 : index
    %c0_2 = arith.constant 0 : index
    %2 = vector.load %arg1[%c0_1, %c0_2] : memref<24x256xbf16, #tpu.memory_space<vmem>>, vector<24x256xbf16>
    %cst = arith.constant dense<0.000000e+00> : vector<72x256xf32>
    %3 = tpu.matmul %1, %2, %cst {dimension_numbers = #tpu.dot_dimension_numbers<[1], [0], [0], [1], [0, 0, 1, 1], [], []>} : vector<72x24xbf16>, vector<24x256xbf16>, vector<72x256xf32> -> vector<72x256xf32>
    %c0_3 = arith.constant 0 : index
    %c0_4 = arith.constant 0 : index
    %4 = vector.load %arg5[%c0_3, %c0_4] : memref<72x4xf32, #tpu.memory_space<vmem>>, vector<72x4xf32>
    %5 = vector.extract_strided_slice %4 {offsets = [0, 0], sizes = [72, 1], strides = [1, 1]} : vector<72x4xf32> to vector<72x1xf32>
    %6 = vector.extract_strided_slice %4 {offsets = [0, 1], sizes = [72, 1], strides = [1, 1]} : vector<72x4xf32> to vector<72x1xf32>
    %cst_5 = arith.constant dense<0.000000e+00> : vector<72xf32>
    %7 = vector.multi_reduction <add>, %3, %cst_5 [1] : vector<72x256xf32> to vector<72xf32>
    %8 = vector.shape_cast %7 : vector<72xf32> to vector<72x1xf32>
    %cst_6 = arith.constant 3.906250e-03 : f32
    %9 = vector.broadcast %cst_6 : f32 to vector<72x1xf32>
    %10 = arith.mulf %8, %9 : vector<72x1xf32>
    %11 = vector.broadcast %10 : vector<72x1xf32> to vector<72x256xf32>
    %12 = arith.subf %3, %11 : vector<72x256xf32>
    %13 = arith.mulf %12, %12 : vector<72x256xf32>
    %cst_7 = arith.constant dense<0.000000e+00> : vector<72xf32>
    %14 = vector.multi_reduction <add>, %13, %cst_7 [1] : vector<72x256xf32> to vector<72xf32>
    %15 = vector.shape_cast %14 : vector<72xf32> to vector<72x1xf32>
    %cst_8 = arith.constant 3.906250e-03 : f32
    %16 = vector.broadcast %cst_8 : f32 to vector<72x1xf32>
    %17 = arith.mulf %15, %16 : vector<72x1xf32>
    %cst_9 = arith.constant 1.000000e-03 : f32
    %18 = vector.broadcast %cst_9 : f32 to vector<72x1xf32>
    %19 = arith.addf %17, %18 : vector<72x1xf32>
    %20 = math.rsqrt %19 : vector<72x1xf32>
    %21 = arith.mulf %20, %5 : vector<72x1xf32>
    %22 = vector.broadcast %21 : vector<72x1xf32> to vector<72x256xf32>
    %23 = arith.mulf %12, %22 : vector<72x256xf32>
    %24 = vector.broadcast %6 : vector<72x1xf32> to vector<72x256xf32>
    %25 = arith.addf %23, %24 : vector<72x256xf32>
    %cst_10 = arith.constant 0.000000e+00 : f32
    %26 = vector.broadcast %cst_10 : f32 to vector<72x256xf32>
    %27 = arith.maximumf %25, %26 : vector<72x256xf32>
    %c0_11 = arith.constant 0 : index
    %c0_12 = arith.constant 0 : index
    %28 = vector.load %arg3[%c0_11, %c0_12] : memref<256x1600xbf16, #tpu.memory_space<vmem>>, vector<256x1600xbf16>
    %29 = arith.truncf %27 : vector<72x256xf32> to vector<72x256xbf16>
    %30 = arith.extf %29 : vector<72x256xbf16> to vector<72x256xf32>
    %31 = arith.subf %27, %30 : vector<72x256xf32>
    %32 = arith.truncf %31 : vector<72x256xf32> to vector<72x256xbf16>
    %cst_13 = arith.constant dense<0.000000e+00> : vector<72x1600xf32>
    %33 = tpu.matmul %29, %28, %cst_13 {dimension_numbers = #tpu.dot_dimension_numbers<[1], [0], [0], [1], [0, 0, 1, 1], [], []>} : vector<72x256xbf16>, vector<256x1600xbf16>, vector<72x1600xf32> -> vector<72x1600xf32>
    %cst_14 = arith.constant dense<0.000000e+00> : vector<72x1600xf32>
    %34 = tpu.matmul %32, %28, %cst_14 {dimension_numbers = #tpu.dot_dimension_numbers<[1], [0], [0], [1], [0, 0, 1, 1], [], []>} : vector<72x256xbf16>, vector<256x1600xbf16>, vector<72x1600xf32> -> vector<72x1600xf32>
    %35 = arith.addf %33, %34 : vector<72x1600xf32>
    %c0_15 = arith.constant 0 : index
    %c0_16 = arith.constant 0 : index
    %36 = vector.load %arg4[%c0_15, %c0_16] : memref<72x25xf32, #tpu.memory_space<vmem>>, vector<72x25xf32>
    %cst_17 = arith.constant 0.000000e+00 : f32
    %37 = vector.broadcast %cst_17 : f32 to vector<72x64xf32>
    %38 = vector.extract_strided_slice %35 {offsets = [0, 0], sizes = [72, 64], strides = [1, 1]} : vector<72x1600xf32> to vector<72x64xf32>
    %39 = vector.extract_strided_slice %36 {offsets = [0, 0], sizes = [72, 1], strides = [1, 1]} : vector<72x25xf32> to vector<72x1xf32>
    %40 = vector.broadcast %39 : vector<72x1xf32> to vector<72x64xf32>
    %41 = arith.mulf %38, %40 : vector<72x64xf32>
    %42 = arith.addf %37, %41 : vector<72x64xf32>
    %43 = vector.extract_strided_slice %35 {offsets = [0, 64], sizes = [72, 64], strides = [1, 1]} : vector<72x1600xf32> to vector<72x64xf32>
    %44 = vector.extract_strided_slice %36 {offsets = [0, 1], sizes = [72, 1], strides = [1, 1]} : vector<72x25xf32> to vector<72x1xf32>
    %45 = vector.broadcast %44 : vector<72x1xf32> to vector<72x64xf32>
    %46 = arith.mulf %43, %45 : vector<72x64xf32>
    %47 = arith.addf %42, %46 : vector<72x64xf32>
    %48 = vector.extract_strided_slice %35 {offsets = [0, 128], sizes = [72, 64], strides = [1, 1]} : vector<72x1600xf32> to vector<72x64xf32>
    %49 = vector.extract_strided_slice %36 {offsets = [0, 2], sizes = [72, 1], strides = [1, 1]} : vector<72x25xf32> to vector<72x1xf32>
    %50 = vector.broadcast %49 : vector<72x1xf32> to vector<72x64xf32>
    %51 = arith.mulf %48, %50 : vector<72x64xf32>
    %52 = arith.addf %47, %51 : vector<72x64xf32>
    %53 = vector.extract_strided_slice %35 {offsets = [0, 192], sizes = [72, 64], strides = [1, 1]} : vector<72x1600xf32> to vector<72x64xf32>
    %54 = vector.extract_strided_slice %36 {offsets = [0, 3], sizes = [72, 1], strides = [1, 1]} : vector<72x25xf32> to vector<72x1xf32>
    %55 = vector.broadcast %54 : vector<72x1xf32> to vector<72x64xf32>
    %56 = arith.mulf %53, %55 : vector<72x64xf32>
    %57 = arith.addf %52, %56 : vector<72x64xf32>
    %58 = vector.extract_strided_slice %35 {offsets = [0, 256], sizes = [72, 64], strides = [1, 1]} : vector<72x1600xf32> to vector<72x64xf32>
    %59 = vector.extract_strided_slice %36 {offsets = [0, 4], sizes = [72, 1], strides = [1, 1]} : vector<72x25xf32> to vector<72x1xf32>
    %60 = vector.broadcast %59 : vector<72x1xf32> to vector<72x64xf32>
    %61 = arith.mulf %58, %60 : vector<72x64xf32>
    %62 = arith.addf %57, %61 : vector<72x64xf32>
    %63 = vector.extract_strided_slice %35 {offsets = [0, 320], sizes = [72, 64], strides = [1, 1]} : vector<72x1600xf32> to vector<72x64xf32>
    %64 = vector.extract_strided_slice %36 {offsets = [0, 5], sizes = [72, 1], strides = [1, 1]} : vector<72x25xf32> to vector<72x1xf32>
    %65 = vector.broadcast %64 : vector<72x1xf32> to vector<72x64xf32>
    %66 = arith.mulf %63, %65 : vector<72x64xf32>
    %67 = arith.addf %62, %66 : vector<72x64xf32>
    %68 = vector.extract_strided_slice %35 {offsets = [0, 384], sizes = [72, 64], strides = [1, 1]} : vector<72x1600xf32> to vector<72x64xf32>
    %69 = vector.extract_strided_slice %36 {offsets = [0, 6], sizes = [72, 1], strides = [1, 1]} : vector<72x25xf32> to vector<72x1xf32>
    %70 = vector.broadcast %69 : vector<72x1xf32> to vector<72x64xf32>
    %71 = arith.mulf %68, %70 : vector<72x64xf32>
    %72 = arith.addf %67, %71 : vector<72x64xf32>
    %73 = vector.extract_strided_slice %35 {offsets = [0, 448], sizes = [72, 64], strides = [1, 1]} : vector<72x1600xf32> to vector<72x64xf32>
    %74 = vector.extract_strided_slice %36 {offsets = [0, 7], sizes = [72, 1], strides = [1, 1]} : vector<72x25xf32> to vector<72x1xf32>
    %75 = vector.broadcast %74 : vector<72x1xf32> to vector<72x64xf32>
    %76 = arith.mulf %73, %75 : vector<72x64xf32>
    %77 = arith.addf %72, %76 : vector<72x64xf32>
    %78 = vector.extract_strided_slice %35 {offsets = [0, 512], sizes = [72, 64], strides = [1, 1]} : vector<72x1600xf32> to vector<72x64xf32>
    %79 = vector.extract_strided_slice %36 {offsets = [0, 8], sizes = [72, 1], strides = [1, 1]} : vector<72x25xf32> to vector<72x1xf32>
    %80 = vector.broadcast %79 : vector<72x1xf32> to vector<72x64xf32>
    %81 = arith.mulf %78, %80 : vector<72x64xf32>
    %82 = arith.addf %77, %81 : vector<72x64xf32>
    %83 = vector.extract_strided_slice %35 {offsets = [0, 576], sizes = [72, 64], strides = [1, 1]} : vector<72x1600xf32> to vector<72x64xf32>
    %84 = vector.extract_strided_slice %36 {offsets = [0, 9], sizes = [72, 1], strides = [1, 1]} : vector<72x25xf32> to vector<72x1xf32>
    %85 = vector.broadcast %84 : vector<72x1xf32> to vector<72x64xf32>
    %86 = arith.mulf %83, %85 : vector<72x64xf32>
    %87 = arith.addf %82, %86 : vector<72x64xf32>
    %88 = vector.extract_strided_slice %35 {offsets = [0, 640], sizes = [72, 64], strides = [1, 1]} : vector<72x1600xf32> to vector<72x64xf32>
    %89 = vector.extract_strided_slice %36 {offsets = [0, 10], sizes = [72, 1], strides = [1, 1]} : vector<72x25xf32> to vector<72x1xf32>
    %90 = vector.broadcast %89 : vector<72x1xf32> to vector<72x64xf32>
    %91 = arith.mulf %88, %90 : vector<72x64xf32>
    %92 = arith.addf %87, %91 : vector<72x64xf32>
    %93 = vector.extract_strided_slice %35 {offsets = [0, 704], sizes = [72, 64], strides = [1, 1]} : vector<72x1600xf32> to vector<72x64xf32>
    %94 = vector.extract_strided_slice %36 {offsets = [0, 11], sizes = [72, 1], strides = [1, 1]} : vector<72x25xf32> to vector<72x1xf32>
    %95 = vector.broadcast %94 : vector<72x1xf32> to vector<72x64xf32>
    %96 = arith.mulf %93, %95 : vector<72x64xf32>
    %97 = arith.addf %92, %96 : vector<72x64xf32>
    %98 = vector.extract_strided_slice %35 {offsets = [0, 768], sizes = [72, 64], strides = [1, 1]} : vector<72x1600xf32> to vector<72x64xf32>
    %99 = vector.extract_strided_slice %36 {offsets = [0, 12], sizes = [72, 1], strides = [1, 1]} : vector<72x25xf32> to vector<72x1xf32>
    %100 = vector.broadcast %99 : vector<72x1xf32> to vector<72x64xf32>
    %101 = arith.mulf %98, %100 : vector<72x64xf32>
    %102 = arith.addf %97, %101 : vector<72x64xf32>
    %103 = vector.extract_strided_slice %35 {offsets = [0, 832], sizes = [72, 64], strides = [1, 1]} : vector<72x1600xf32> to vector<72x64xf32>
    %104 = vector.extract_strided_slice %36 {offsets = [0, 13], sizes = [72, 1], strides = [1, 1]} : vector<72x25xf32> to vector<72x1xf32>
    %105 = vector.broadcast %104 : vector<72x1xf32> to vector<72x64xf32>
    %106 = arith.mulf %103, %105 : vector<72x64xf32>
    %107 = arith.addf %102, %106 : vector<72x64xf32>
    %108 = vector.extract_strided_slice %35 {offsets = [0, 896], sizes = [72, 64], strides = [1, 1]} : vector<72x1600xf32> to vector<72x64xf32>
    %109 = vector.extract_strided_slice %36 {offsets = [0, 14], sizes = [72, 1], strides = [1, 1]} : vector<72x25xf32> to vector<72x1xf32>
    %110 = vector.broadcast %109 : vector<72x1xf32> to vector<72x64xf32>
    %111 = arith.mulf %108, %110 : vector<72x64xf32>
    %112 = arith.addf %107, %111 : vector<72x64xf32>
    %113 = vector.extract_strided_slice %35 {offsets = [0, 960], sizes = [72, 64], strides = [1, 1]} : vector<72x1600xf32> to vector<72x64xf32>
    %114 = vector.extract_strided_slice %36 {offsets = [0, 15], sizes = [72, 1], strides = [1, 1]} : vector<72x25xf32> to vector<72x1xf32>
    %115 = vector.broadcast %114 : vector<72x1xf32> to vector<72x64xf32>
    %116 = arith.mulf %113, %115 : vector<72x64xf32>
    %117 = arith.addf %112, %116 : vector<72x64xf32>
    %118 = vector.extract_strided_slice %35 {offsets = [0, 1024], sizes = [72, 64], strides = [1, 1]} : vector<72x1600xf32> to vector<72x64xf32>
    %119 = vector.extract_strided_slice %36 {offsets = [0, 16], sizes = [72, 1], strides = [1, 1]} : vector<72x25xf32> to vector<72x1xf32>
    %120 = vector.broadcast %119 : vector<72x1xf32> to vector<72x64xf32>
    %121 = arith.mulf %118, %120 : vector<72x64xf32>
    %122 = arith.addf %117, %121 : vector<72x64xf32>
    %123 = vector.extract_strided_slice %35 {offsets = [0, 1088], sizes = [72, 64], strides = [1, 1]} : vector<72x1600xf32> to vector<72x64xf32>
    %124 = vector.extract_strided_slice %36 {offsets = [0, 17], sizes = [72, 1], strides = [1, 1]} : vector<72x25xf32> to vector<72x1xf32>
    %125 = vector.broadcast %124 : vector<72x1xf32> to vector<72x64xf32>
    %126 = arith.mulf %123, %125 : vector<72x64xf32>
    %127 = arith.addf %122, %126 : vector<72x64xf32>
    %128 = vector.extract_strided_slice %35 {offsets = [0, 1152], sizes = [72, 64], strides = [1, 1]} : vector<72x1600xf32> to vector<72x64xf32>
    %129 = vector.extract_strided_slice %36 {offsets = [0, 18], sizes = [72, 1], strides = [1, 1]} : vector<72x25xf32> to vector<72x1xf32>
    %130 = vector.broadcast %129 : vector<72x1xf32> to vector<72x64xf32>
    %131 = arith.mulf %128, %130 : vector<72x64xf32>
    %132 = arith.addf %127, %131 : vector<72x64xf32>
    %133 = vector.extract_strided_slice %35 {offsets = [0, 1216], sizes = [72, 64], strides = [1, 1]} : vector<72x1600xf32> to vector<72x64xf32>
    %134 = vector.extract_strided_slice %36 {offsets = [0, 19], sizes = [72, 1], strides = [1, 1]} : vector<72x25xf32> to vector<72x1xf32>
    %135 = vector.broadcast %134 : vector<72x1xf32> to vector<72x64xf32>
    %136 = arith.mulf %133, %135 : vector<72x64xf32>
    %137 = arith.addf %132, %136 : vector<72x64xf32>
    %138 = vector.extract_strided_slice %35 {offsets = [0, 1280], sizes = [72, 64], strides = [1, 1]} : vector<72x1600xf32> to vector<72x64xf32>
    %139 = vector.extract_strided_slice %36 {offsets = [0, 20], sizes = [72, 1], strides = [1, 1]} : vector<72x25xf32> to vector<72x1xf32>
    %140 = vector.broadcast %139 : vector<72x1xf32> to vector<72x64xf32>
    %141 = arith.mulf %138, %140 : vector<72x64xf32>
    %142 = arith.addf %137, %141 : vector<72x64xf32>
    %143 = vector.extract_strided_slice %35 {offsets = [0, 1344], sizes = [72, 64], strides = [1, 1]} : vector<72x1600xf32> to vector<72x64xf32>
    %144 = vector.extract_strided_slice %36 {offsets = [0, 21], sizes = [72, 1], strides = [1, 1]} : vector<72x25xf32> to vector<72x1xf32>
    %145 = vector.broadcast %144 : vector<72x1xf32> to vector<72x64xf32>
    %146 = arith.mulf %143, %145 : vector<72x64xf32>
    %147 = arith.addf %142, %146 : vector<72x64xf32>
    %148 = vector.extract_strided_slice %35 {offsets = [0, 1408], sizes = [72, 64], strides = [1, 1]} : vector<72x1600xf32> to vector<72x64xf32>
    %149 = vector.extract_strided_slice %36 {offsets = [0, 22], sizes = [72, 1], strides = [1, 1]} : vector<72x25xf32> to vector<72x1xf32>
    %150 = vector.broadcast %149 : vector<72x1xf32> to vector<72x64xf32>
    %151 = arith.mulf %148, %150 : vector<72x64xf32>
    %152 = arith.addf %147, %151 : vector<72x64xf32>
    %153 = vector.extract_strided_slice %35 {offsets = [0, 1472], sizes = [72, 64], strides = [1, 1]} : vector<72x1600xf32> to vector<72x64xf32>
    %154 = vector.extract_strided_slice %36 {offsets = [0, 23], sizes = [72, 1], strides = [1, 1]} : vector<72x25xf32> to vector<72x1xf32>
    %155 = vector.broadcast %154 : vector<72x1xf32> to vector<72x64xf32>
    %156 = arith.mulf %153, %155 : vector<72x64xf32>
    %157 = arith.addf %152, %156 : vector<72x64xf32>
    %158 = vector.extract_strided_slice %35 {offsets = [0, 1536], sizes = [72, 64], strides = [1, 1]} : vector<72x1600xf32> to vector<72x64xf32>
    %159 = vector.extract_strided_slice %36 {offsets = [0, 24], sizes = [72, 1], strides = [1, 1]} : vector<72x25xf32> to vector<72x1xf32>
    %160 = vector.broadcast %159 : vector<72x1xf32> to vector<72x64xf32>
    %161 = arith.mulf %158, %160 : vector<72x64xf32>
    %162 = arith.addf %157, %161 : vector<72x64xf32>
    %163 = vector.extract_strided_slice %4 {offsets = [0, 2], sizes = [72, 1], strides = [1, 1]} : vector<72x4xf32> to vector<72x1xf32>
    %164 = vector.extract_strided_slice %4 {offsets = [0, 3], sizes = [72, 1], strides = [1, 1]} : vector<72x4xf32> to vector<72x1xf32>
    %cst_18 = arith.constant dense<0.000000e+00> : vector<72xf32>
    %165 = vector.multi_reduction <add>, %162, %cst_18 [1] : vector<72x64xf32> to vector<72xf32>
    %166 = vector.shape_cast %165 : vector<72xf32> to vector<72x1xf32>
    %cst_19 = arith.constant 1.562500e-02 : f32
    %167 = vector.broadcast %cst_19 : f32 to vector<72x1xf32>
    %168 = arith.mulf %166, %167 : vector<72x1xf32>
    %169 = vector.broadcast %168 : vector<72x1xf32> to vector<72x64xf32>
    %170 = arith.subf %162, %169 : vector<72x64xf32>
    %171 = arith.mulf %170, %170 : vector<72x64xf32>
    %cst_20 = arith.constant dense<0.000000e+00> : vector<72xf32>
    %172 = vector.multi_reduction <add>, %171, %cst_20 [1] : vector<72x64xf32> to vector<72xf32>
    %173 = vector.shape_cast %172 : vector<72xf32> to vector<72x1xf32>
    %cst_21 = arith.constant 1.562500e-02 : f32
    %174 = vector.broadcast %cst_21 : f32 to vector<72x1xf32>
    %175 = arith.mulf %173, %174 : vector<72x1xf32>
    %cst_22 = arith.constant 1.000000e-03 : f32
    %176 = vector.broadcast %cst_22 : f32 to vector<72x1xf32>
    %177 = arith.addf %175, %176 : vector<72x1xf32>
    %178 = math.rsqrt %177 : vector<72x1xf32>
    %179 = arith.mulf %178, %163 : vector<72x1xf32>
    %180 = vector.broadcast %179 : vector<72x1xf32> to vector<72x64xf32>
    %181 = arith.mulf %170, %180 : vector<72x64xf32>
    %182 = vector.broadcast %164 : vector<72x1xf32> to vector<72x64xf32>
    %183 = arith.addf %181, %182 : vector<72x64xf32>
    %c0_23 = arith.constant 0 : index
    %c0_24 = arith.constant 0 : index
    %184 = vector.load %arg6[%c0_23, %c0_24] : memref<72x64xf32, #tpu.memory_space<vmem>>, vector<72x64xf32>
    tpu.vector_store %arg6[%c0_23, %c0_24], %183 {strides = array<i32>} : memref<72x64xf32, #tpu.memory_space<vmem>>, vector<72x64xf32>,
    return
  }
  func.func @transform_0(%arg0: i32) -> (i32, i32) {
    %c0_i32 = arith.constant 0 : i32
    %c0_i32_0 = arith.constant 0 : i32
    %c0_i32_1 = arith.constant 0 : i32
    return %c0_i32, %c0_i32_0 : i32, i32
  }
  func.func @transform_1(%arg0: i32) -> (i32, i32) {
    %c0_i32 = arith.constant 0 : i32
    %c0_i32_0 = arith.constant 0 : i32
    return %arg0, %c0_i32 : i32, i32
  }
  func.func @transform_2(%arg0: i32) -> (i32, i32) {
    %c0_i32 = arith.constant 0 : i32
    %c0_i32_0 = arith.constant 0 : i32
    %c0_i32_1 = arith.constant 0 : i32
    return %c0_i32, %c0_i32_0 : i32, i32
  }
  func.func @transform_3(%arg0: i32) -> (i32, i32) {
    %c0_i32 = arith.constant 0 : i32
    %c0_i32_0 = arith.constant 0 : i32
    return %arg0, %c0_i32 : i32, i32
  }
  func.func @transform_4(%arg0: i32) -> (i32, i32) {
    %c0_i32 = arith.constant 0 : i32
    %c0_i32_0 = arith.constant 0 : i32
    return %arg0, %c0_i32 : i32, i32
  }
  func.func @transform_5(%arg0: i32) -> (i32, i32) {
    %c0_i32 = arith.constant 0 : i32
    %c0_i32_0 = arith.constant 0 : i32
    return %arg0, %c0_i32 : i32, i32
  }
}

</mosaic_0001>

<llo_original>
// kernel: tpu_custom_call.1
$region0: #{tpu_custom_call.1}
  #allocation0 [shape = 'u32[]', space=smem, size = 0x4, offset = 0x4, fixed_abs, tag = 'smem constant byte address 0x4 - core index']
  #allocation1 [shape = 'u32[144,128]{1,0:T(1,128)}', space=vmem, size = 0x12000, scoped, tag = 'internal scratch']
  %s0 = inlined_call_operand.vmem [shape: bf16[24,256], index: 0, kind: input, shape index: {}]
  %s1 = inlined_call_operand.vmem [shape: f32[72,24], index: 1, kind: input, shape index: {}]
  %s2 = inlined_call_operand.vmem [shape: bf16[256,1600], index: 2, kind: input, shape index: {}]
  %s3 = inlined_call_operand.vmem [shape: f32[72,25], index: 3, kind: input, shape index: {}]
  %s4 = inlined_call_operand.vmem [shape: f32[72,4], index: 4, kind: input, shape index: {}]
  %s5 = inlined_call_operand.vmem [shape: f32[72,64], index: 5, kind: output, shape index: {}]
  %s6 = sld [smem:[#allocation0]]
  $region30: #{tpu_custom_call.1} parent=0
    _
  %s8 = ssub.s32 1, %s6
  %s9 = scalar_select 0, %s8, %s6
  // Predicated region
  $region2: #{tpu_custom_call.1} parent=0 // pred_check
    _
  $region3: #{tpu_custom_call.1} parent=0 // pred_check_branch
    %11 = sbr.rel (0) target = $region5
  $region4: #{tpu_custom_call.1} parent=0 // pred_region
    _
  $region5: #{tpu_custom_call.1} parent=0 // pred_fallthru
    _
  // Predicated region
  $region6: #{tpu_custom_call.1} parent=0 // pred_check
    _
  $region7: #{tpu_custom_call.1} parent=0 // pred_check_branch
    %13 = sbr.rel (0) target = $region9
  $region8: #{tpu_custom_call.1} parent=0 // pred_region
    _
  $region9: #{tpu_custom_call.1} parent=0 // pred_fallthru
    _
  // Predicated region
  $region10: #{tpu_custom_call.1} parent=0 // pred_check
    _
  $region11: #{tpu_custom_call.1} parent=0 // pred_check_branch
    %15 = sbr.rel (0) target = $region13
  $region12: #{tpu_custom_call.1} parent=0 // pred_region
    _
  $region13: #{tpu_custom_call.1} parent=0 // pred_fallthru
    _
  // Predicated region
  $region14: #{tpu_custom_call.1} parent=0 // pred_check
    _
  $region15: #{tpu_custom_call.1} parent=0 // pred_check_branch
    %17 = sbr.rel (0) target = $region17
  $region16: #{tpu_custom_call.1} parent=0 // pred_region
    _
  $region17: #{tpu_custom_call.1} parent=0 // pred_fallthru
    _
  // Predicated region
  $region18: #{tpu_custom_call.1} parent=0 // pred_check
    _
  $region19: #{tpu_custom_call.1} parent=0 // pred_check_branch
    %19 = sbr.rel (0) target = $region21
  $region20: #{tpu_custom_call.1} parent=0 // pred_region
    _
  $region21: #{tpu_custom_call.1} parent=0 // pred_fallthru
    _
  %v21 = vld [vmem:[%s1] sm:$0xff]
  %v22 = vld [vmem:[%s1 + $0x8] sm:$0xff]
  %v23 = vld [vmem:[%s1 + $0x10] sm:$0xff]
  %v24 = vld [vmem:[%s1 + $0x18] sm:$0xff]
  %v25 = vld [vmem:[%s1 + $0x20] sm:$0xff]
  %v26 = vld [vmem:[%s1 + $0x28] sm:$0xff]
  %v27 = vld [vmem:[%s1 + $0x30] sm:$0xff]
  %v28 = vld [vmem:[%s1 + $0x38] sm:$0xff]
  %v29 = vld [vmem:[%s1 + $0x40] sm:$0xff]
  %v30 = vpack.c.bf16 %v22, %v21
  %v31 = vpack.c.bf16 %v24, %v23
  %v32 = vpack.c.bf16 %v26, %v25
  %v33 = vpack.c.bf16 %v28, %v27
  %v34 = vpack.c.bf16 %v29, %v29
  %v35 = vld [vmem:[%s0] sm:$0xff]
  %v36 = vld [vmem:[%s0 + $0x8] sm:$0xff]
  %v37 = vld [vmem:[%s0 + $0x10] sm:$0xff]
  %v41 = vunpack.c.l.b16 %v35
  %v42 = vunpack.c.h.b16 %v35
  %v43 = vunpack.c.l.b16 %v36
  %v44 = vunpack.c.h.b16 %v36
  %v45 = vunpack.c.l.b16 %v37
  %v46 = vunpack.c.h.b16 %v37
  %v47 = vpack.c.b16 %v43, %v41
  %v48 = vpack.c.b16 %v44, %v42
  %v49 = vpack.c.b16 %v45, %v45
  %v50 = vpack.c.b16 %v46, %v46
  %vm53 = vcmask 195584
  %v55 = vsel %vm53, %v30, 0
  %v58 = vsel %vm53, %v31, 0
  %v61 = vsel %vm53, %v32, 0
  %v64 = vsel %vm53, %v33, 0
  %v67 = vsel %vm53, %v34, 0
  %vm69 = vcmask 1043456
  %v71 = vsel %vm69, %v49, 0
  %v74 = vsel %vm69, %v50, 0
  %76 = vmatprep.subr.bf16.mxu0 %v48
  %77 = vmatpush1.bf16.msra.mxu0 %v47
  %78 = vmatprep.subr.bf16.mxu0 %v74
  %79 = vmatpush1.bf16.msra.mxu0 %v71
  %80 = vmatprep.subr.bf16.mxu0 0
  %81 = vmatpush1.bf16.msra.mxu0 0
  %82 = vmatprep.subr.bf16.mxu0 0
  %83 = vmatpush1.bf16.msra.mxu0 0
  %84 = vmatprep.subr.bf16.mxu0 0
  %85 = vmatpush1.bf16.msra.mxu0 0
  %86 = vmatprep.subr.bf16.mxu0 0
  %87 = vmatpush1.bf16.msra.mxu0 0
  %88 = vmatprep.subr.bf16.mxu0 0
  %89 = vmatpush1.bf16.msra.mxu0 0
  %90 = vmatprep.subr.bf16.mxu0 0
  %91 = vmatpush1.bf16.msra.mxu0 0
  %92 = vmatprep.subr.bf16.mxu0 0
  %93 = vmatpush1.bf16.msra.mxu0 0
  %94 = vmatprep.subr.bf16.mxu0 0
  %95 = vmatpush1.bf16.msra.mxu0 0
  %96 = vmatprep.subr.bf16.mxu0 0
  %97 = vmatpush1.bf16.msra.mxu0 0
  %98 = vmatprep.subr.bf16.mxu0 0
  %99 = vmatpush1.bf16.msra.mxu0 0
  %100 = vmatprep.subr.bf16.mxu0 0
  %101 = vmatpush1.bf16.msra.mxu0 0
  %102 = vmatprep.subr.bf16.mxu0 0
  %103 = vmatpush1.bf16.msra.mxu0 0
  %104 = vmatprep.subr.bf16.mxu0 0
  %105 = vmatpush1.bf16.msra.mxu0 0
  %106 = vmatprep.subr.bf16.mxu0 0
  %107 = vmatpush1.bf16.msra.mxu0 0
  %108 = vmatprep.mubr.bf16.mxu0 0
  %109 = vmatmul.mubr.bf16.gmra.mrb[0].mxu0 %v55
  %v110 = vpop.f32.mrb[0].mxu0
  %v111 = vadd.f32 0.0, %v110
  %v112 = vpop.f32.mrb[0].mxu0
  %v113 = vadd.f32 0.0, %v112
  %v114 = vpop.f32.mrb[0].mxu0
  %v115 = vadd.f32 0.0, %v114
  %v116 = vpop.f32.mrb[0].mxu0
  %v117 = vadd.f32 0.0, %v116
  %118 = vmatprep.mubr.bf16.mxu0 0
  %119 = vmatmul.mubr.bf16.gmra.mrb[0].mxu0 %v58
  %v120 = vpop.f32.mrb[0].mxu0
  %v121 = vadd.f32 0.0, %v120
  %v122 = vpop.f32.mrb[0].mxu0
  %v123 = vadd.f32 0.0, %v122
  %v124 = vpop.f32.mrb[0].mxu0
  %v125 = vadd.f32 0.0, %v124
  %v126 = vpop.f32.mrb[0].mxu0
  %v127 = vadd.f32 0.0, %v126
  %128 = vmatprep.mubr.bf16.mxu0 0
  %129 = vmatmul.mubr.bf16.gmra.mrb[0].mxu0 %v61
  %v130 = vpop.f32.mrb[0].mxu0
  %v131 = vadd.f32 0.0, %v130
  %v132 = vpop.f32.mrb[0].mxu0
  %v133 = vadd.f32 0.0, %v132
  %v134 = vpop.f32.mrb[0].mxu0
  %v135 = vadd.f32 0.0, %v134
  %v136 = vpop.f32.mrb[0].mxu0
  %v137 = vadd.f32 0.0, %v136
  %138 = vmatprep.mubr.bf16.mxu0 0
  %139 = vmatmul.mubr.bf16.gmra.mrb[0].mxu0 %v64
  %v140 = vpop.f32.mrb[0].mxu0
  %v141 = vadd.f32 0.0, %v140
  %v142 = vpop.f32.mrb[0].mxu0
  %v143 = vadd.f32 0.0, %v142
  %v144 = vpop.f32.mrb[0].mxu0
  %v145 = vadd.f32 0.0, %v144
  %v146 = vpop.f32.mrb[0].mxu0
  %v147 = vadd.f32 0.0, %v146
  %148 = vmatprep.mubr.bf16.mxu0 0
  %149 = vmatmul.mubr.bf16.gmra.mrb[0].mxu0 %v67
  %v150 = vpop.f32.mrb[0].mxu0
  %v151 = vadd.f32 0.0, %v150
  %v152 = vpop.f32.mrb[0].mxu0
  %v153 = vadd.f32 0.0, %v152
  %v154 = vpop.f32.mrb[0].mxu0
  %v155 = vpop.f32.mrb[0].mxu0
  %156 = vdwg.mxu0
  %v157 = vld [vmem:[%s4] sm:$0xff]
  %v158 = vld [vmem:[%s4 + $0x8] sm:$0xff]
  %v159 = vld [vmem:[%s4 + $0x10] sm:$0xff]
  %v160 = vld [vmem:[%s4 + $0x18] sm:$0xff]
  %v161 = vld [vmem:[%s4 + $0x20] sm:$0xff]
  %v162 = vld [vmem:[%s4 + $0x28] sm:$0xff]
  %v163 = vld [vmem:[%s4 + $0x30] sm:$0xff]
  %v164 = vld [vmem:[%s4 + $0x38] sm:$0xff]
  %v165 = vld [vmem:[%s4 + $0x40] sm:$0xff]
  %v166 = vadd.f32 %v111, %v113
  %167 = vadd.xlane.f32.xlu0 %v166
  %v168 = vpop.xlane.xlu0 %167
  %v169 = vadd.f32 %v115, %v117
  %170 = vadd.xlane.f32.xlu0 %v169
  %v171 = vpop.xlane.xlu0 %170
  %v172 = vadd.f32 %v121, %v123
  %173 = vadd.xlane.f32.xlu0 %v172
  %v174 = vpop.xlane.xlu0 %173
  %v175 = vadd.f32 %v125, %v127
  %176 = vadd.xlane.f32.xlu0 %v175
  %v177 = vpop.xlane.xlu0 %176
  %v178 = vadd.f32 %v131, %v133
  %179 = vadd.xlane.f32.xlu0 %v178
  %v180 = vpop.xlane.xlu0 %179
  %v181 = vadd.f32 %v135, %v137
  %182 = vadd.xlane.f32.xlu0 %v181
  %v183 = vpop.xlane.xlu0 %182
  %v184 = vadd.f32 %v141, %v143
  %185 = vadd.xlane.f32.xlu0 %v184
  %v186 = vpop.xlane.xlu0 %185
  %v187 = vadd.f32 %v145, %v147
  %188 = vadd.xlane.f32.xlu0 %v187
  %v189 = vpop.xlane.xlu0 %188
  %v190 = vadd.f32 %v151, %v153
  %191 = vadd.xlane.f32.xlu0 %v190
  %v192 = vpop.xlane.xlu0 %191
  %v193 = vmul.f32 %v168, 0.00390625
  %v194 = vmul.f32 %v171, 0.00390625
  %v195 = vmul.f32 %v174, 0.00390625
  %v196 = vmul.f32 %v177, 0.00390625
  %v197 = vmul.f32 %v180, 0.00390625
  %v198 = vmul.f32 %v183, 0.00390625
  %v199 = vmul.f32 %v186, 0.00390625
  %v200 = vmul.f32 %v189, 0.00390625
  %v201 = vmul.f32 %v192, 0.00390625
  %v202 = vsub.f32 %v111, %v193
  %v203 = vsub.f32 %v113, %v193
  %v204 = vsub.f32 %v115, %v194
  %v205 = vsub.f32 %v117, %v194
  %v206 = vsub.f32 %v121, %v195
  %v207 = vsub.f32 %v123, %v195
  %v208 = vsub.f32 %v125, %v196
  %v209 = vsub.f32 %v127, %v196
  %v210 = vsub.f32 %v131, %v197
  %v211 = vsub.f32 %v133, %v197
  %v212 = vsub.f32 %v135, %v198
  %v213 = vsub.f32 %v137, %v198
  %v214 = vsub.f32 %v141, %v199
  %v215 = vsub.f32 %v143, %v199
  %v216 = vsub.f32 %v145, %v200
  %v217 = vsub.f32 %v147, %v200
  %v218 = vsub.f32 %v151, %v201
  %v219 = vsub.f32 %v153, %v201
  %v220 = vmul.f32 %v202, %v202
  %v221 = vmul.f32 %v203, %v203
  %v222 = vmul.f32 %v204, %v204
  %v223 = vmul.f32 %v205, %v205
  %v224 = vmul.f32 %v206, %v206
  %v225 = vmul.f32 %v207, %v207
  %v226 = vmul.f32 %v208, %v208
  %v227 = vmul.f32 %v209, %v209
  %v228 = vmul.f32 %v210, %v210
  %v229 = vmul.f32 %v211, %v211
  %v230 = vmul.f32 %v212, %v212
  %v231 = vmul.f32 %v213, %v213
  %v232 = vmul.f32 %v214, %v214
  %v233 = vmul.f32 %v215, %v215
  %v234 = vmul.f32 %v216, %v216
  %v235 = vmul.f32 %v217, %v217
  %v236 = vmul.f32 %v218, %v218
  %v237 = vmul.f32 %v219, %v219
  %v238 = vadd.f32 %v220, %v221
  %239 = vadd.xlane.f32.xlu0 %v238
  %v240 = vpop.xlane.xlu0 %239
  %v241 = vadd.f32 %v222, %v223
  %242 = vadd.xlane.f32.xlu0 %v241
  %v243 = vpop.xlane.xlu0 %242
  %v244 = vadd.f32 %v224, %v225
  %245 = vadd.xlane.f32.xlu0 %v244
  %v246 = vpop.xlane.xlu0 %245
  %v247 = vadd.f32 %v226, %v227
  %248 = vadd.xlane.f32.xlu0 %v247
  %v249 = vpop.xlane.xlu0 %248
  %v250 = vadd.f32 %v228, %v229
  %251 = vadd.xlane.f32.xlu0 %v250
  %v252 = vpop.xlane.xlu0 %251
  %v253 = vadd.f32 %v230, %v231
  %254 = vadd.xlane.f32.xlu0 %v253
  %v255 = vpop.xlane.xlu0 %254
  %v256 = vadd.f32 %v232, %v233
  %257 = vadd.xlane.f32.xlu0 %v256
  %v258 = vpop.xlane.xlu0 %257
  %v259 = vadd.f32 %v234, %v235
  %260 = vadd.xlane.f32.xlu0 %v259
  %v261 = vpop.xlane.xlu0 %260
  %v262 = vadd.f32 %v236, %v237
  %263 = vadd.xlane.f32.xlu0 %v262
  %v264 = vpop.xlane.xlu0 %263
  %v265 = vmul.f32 %v240, 0.00390625
  %v266 = vmul.f32 %v243, 0.00390625
  %v267 = vmul.f32 %v246, 0.00390625
  %v268 = vmul.f32 %v249, 0.00390625
  %v269 = vmul.f32 %v252, 0.00390625
  %v270 = vmul.f32 %v255, 0.00390625
  %v271 = vmul.f32 %v258, 0.00390625
  %v272 = vmul.f32 %v261, 0.00390625
  %v273 = vmul.f32 %v264, 0.00390625
  %v274 = vadd.f32 %v265, 0.001
  %v275 = vadd.f32 %v266, 0.001
  %v276 = vadd.f32 %v267, 0.001
  %v277 = vadd.f32 %v268, 0.001
  %v278 = vadd.f32 %v269, 0.001
  %v279 = vadd.f32 %v270, 0.001
  %v280 = vadd.f32 %v271, 0.001
  %v281 = vadd.f32 %v272, 0.001
  %v282 = vadd.f32 %v273, 0.001
  %v283 = vrsqrt.pop %v274
  %v284 = vrsqrt.pop %v275
  %v285 = vrsqrt.pop %v276
  %v286 = vrsqrt.pop %v277
  %v287 = vrsqrt.pop %v278
  %v288 = vrsqrt.pop %v279
  %v289 = vrsqrt.pop %v280
  %v290 = vrsqrt.pop %v281
  %v291 = vrsqrt.pop %v282
  %v292 = vmul.f32 %v283, %v157
  %v293 = vmul.f32 %v284, %v158
  %v294 = vmul.f32 %v285, %v159
  %v295 = vmul.f32 %v286, %v160
  %v296 = vmul.f32 %v287, %v161
  %v297 = vmul.f32 %v288, %v162
  %v298 = vmul.f32 %v289, %v163
  %v299 = vmul.f32 %v290, %v164
  %v300 = vmul.f32 %v291, %v165
  %302 = vset.pattern.permute.xlu0 0
  %303 = vperm.xlu0 %302, %v292
  %v304 = vpop.permute.xlu0 %303
  %307 = vset.pattern.permute.xlu0 0
  %308 = vperm.xlu0 %307, %v293
  %v309 = vpop.permute.xlu0 %308
  %312 = vset.pattern.permute.xlu0 0
  %313 = vperm.xlu0 %312, %v294
  %v314 = vpop.permute.xlu0 %313
  %317 = vset.pattern.permute.xlu0 0
  %318 = vperm.xlu0 %317, %v295
  %v319 = vpop.permute.xlu0 %318
  %322 = vset.pattern.permute.xlu0 0
  %323 = vperm.xlu0 %322, %v296
  %v324 = vpop.permute.xlu0 %323
  %327 = vset.pattern.permute.xlu0 0
  %328 = vperm.xlu0 %327, %v297
  %v329 = vpop.permute.xlu0 %328
  %332 = vset.pattern.permute.xlu0 0
  %333 = vperm.xlu0 %332, %v298
  %v334 = vpop.permute.xlu0 %333
  %337 = vset.pattern.permute.xlu0 0
  %338 = vperm.xlu0 %337, %v299
  %v339 = vpop.permute.xlu0 %338
  %342 = vset.pattern.permute.xlu0 0
  %343 = vperm.xlu0 %342, %v300
  %v344 = vpop.permute.xlu0 %343
  %v346 = vmul.f32 %v202, %v304
  %v347 = vmul.f32 %v203, %v304
  %v348 = vmul.f32 %v204, %v309
  %v349 = vmul.f32 %v205, %v309
  %v350 = vmul.f32 %v206, %v314
  %v351 = vmul.f32 %v207, %v314
  %v352 = vmul.f32 %v208, %v319
  %v353 = vmul.f32 %v209, %v319
  %v354 = vmul.f32 %v210, %v324
  %v355 = vmul.f32 %v211, %v324
  %v356 = vmul.f32 %v212, %v329
  %v357 = vmul.f32 %v213, %v329
  %v358 = vmul.f32 %v214, %v334
  %v359 = vmul.f32 %v215, %v334
  %v360 = vmul.f32 %v216, %v339
  %v361 = vmul.f32 %v217, %v339
  %v362 = vmul.f32 %v218, %v344
  %v363 = vmul.f32 %v219, %v344
  %365 = vset.pattern.permute.xlu0 1
  %366 = vperm.xlu0 %365, %v157
  %v367 = vpop.permute.xlu0 %366
  %370 = vset.pattern.permute.xlu0 1
  %371 = vperm.xlu0 %370, %v158
  %v372 = vpop.permute.xlu0 %371
  %375 = vset.pattern.permute.xlu0 1
  %376 = vperm.xlu0 %375, %v159
  %v377 = vpop.permute.xlu0 %376
  %380 = vset.pattern.permute.xlu0 1
  %381 = vperm.xlu0 %380, %v160
  %v382 = vpop.permute.xlu0 %381
  %385 = vset.pattern.permute.xlu0 1
  %386 = vperm.xlu0 %385, %v161
  %v387 = vpop.permute.xlu0 %386
  %390 = vset.pattern.permute.xlu0 1
  %391 = vperm.xlu0 %390, %v162
  %v392 = vpop.permute.xlu0 %391
  %395 = vset.pattern.permute.xlu0 1
  %396 = vperm.xlu0 %395, %v163
  %v397 = vpop.permute.xlu0 %396
  %400 = vset.pattern.permute.xlu0 1
  %401 = vperm.xlu0 %400, %v164
  %v402 = vpop.permute.xlu0 %401
  %405 = vset.pattern.permute.xlu0 1
  %406 = vperm.xlu0 %405, %v165
  %v407 = vpop.permute.xlu0 %406
  %v409 = vadd.f32 %v346, %v367
  %v410 = vadd.f32 %v347, %v367
  %v411 = vadd.f32 %v348, %v372
  %v412 = vadd.f32 %v349, %v372
  %v413 = vadd.f32 %v350, %v377
  %v414 = vadd.f32 %v351, %v377
  %v415 = vadd.f32 %v352, %v382
  %v416 = vadd.f32 %v353, %v382
  %v417 = vadd.f32 %v354, %v387
  %v418 = vadd.f32 %v355, %v387
  %v419 = vadd.f32 %v356, %v392
  %v420 = vadd.f32 %v357, %v392
  %v421 = vadd.f32 %v358, %v397
  %v422 = vadd.f32 %v359, %v397
  %v423 = vadd.f32 %v360, %v402
  %v424 = vadd.f32 %v361, %v402
  %v425 = vadd.f32 %v362, %v407
  %v426 = vadd.f32 %v363, %v407
  %v427 = vmax.f32 %v409, 0.0
  %v428 = vmax.f32 %v410, 0.0
  %v429 = vmax.f32 %v411, 0.0
  %v430 = vmax.f32 %v412, 0.0
  %v431 = vmax.f32 %v413, 0.0
  %v432 = vmax.f32 %v414, 0.0
  %v433 = vmax.f32 %v415, 0.0
  %v434 = vmax.f32 %v416, 0.0
  %v435 = vmax.f32 %v417, 0.0
  %v436 = vmax.f32 %v418, 0.0
  %v437 = vmax.f32 %v419, 0.0
  %v438 = vmax.f32 %v420, 0.0
  %v439 = vmax.f32 %v421, 0.0
  %v440 = vmax.f32 %v422, 0.0
  %v441 = vmax.f32 %v423, 0.0
  %v442 = vmax.f32 %v424, 0.0
  %v443 = vmax.f32 %v425, 0.0
  %v444 = vmax.f32 %v426, 0.0
  %v445 = vld [vmem:[%s2] sm:$0xff]
  %v446 = vld [vmem:[%s2 + $0x8] sm:$0xff]
  %v447 = vld [vmem:[%s2 + $0x10] sm:$0xff]
  %v448 = vld [vmem:[%s2 + $0x18] sm:$0xff]
  %v449 = vld [vmem:[%s2 + $0x20] sm:$0xff]
  %v450 = vld [vmem:[%s2 + $0x28] sm:$0xff]
  %v451 = vld [vmem:[%s2 + $0x30] sm:$0xf]
  %v452 = vld [vmem:[%s2 + $0x34] sm:$0xff]
  %v453 = vld [vmem:[%s2 + $0x3c] sm:$0xff]
  %v454 = vld [vmem:[%s2 + $0x44] sm:$0xff]
  %v455 = vld [vmem:[%s2 + $0x4c] sm:$0xff]
  %v456 = vld [vmem:[%s2 + $0x54] sm:$0xff]
  %v457 = vld [vmem:[%s2 + $0x5c] sm:$0xff]
  %v458 = vld [vmem:[%s2 + $0x64] sm:$0xf]
  %v459 = vld [vmem:[%s2 + $0x68] sm:$0xff]
  %v460 = vld [vmem:[%s2 + $0x70] sm:$0xff]
  %v461 = vld [vmem:[%s2 + $0x78] sm:$0xff]
  %v462 = vld [vmem:[%s2 + $0x80] sm:$0xff]
  %v463 = vld [vmem:[%s2 + $0x88] sm:$0xff]
  %v464 = vld [vmem:[%s2 + $0x90] sm:$0xff]
  %v465 = vld [vmem:[%s2 + $0x98] sm:$0xf]
  %v466 = vld [vmem:[%s2 + $0x9c] sm:$0xff]
  %v467 = vld [vmem:[%s2 + $0xa4] sm:$0xff]
  %v468 = vld [vmem:[%s2 + $0xac] sm:$0xff]
  %v469 = vld [vmem:[%s2 + $0xb4] sm:$0xff]
  %v470 = vld [vmem:[%s2 + $0xbc] sm:$0xff]
  %v471 = vld [vmem:[%s2 + $0xc4] sm:$0xff]
  %v472 = vld [vmem:[%s2 + $0xcc] sm:$0xf]
  %v473 = vld [vmem:[%s2 + $0xd0] sm:$0xff]
  %v474 = vld [vmem:[%s2 + $0xd8] sm:$0xff]
  %v475 = vld [vmem:[%s2 + $0xe0] sm:$0xff]
  %v476 = vld [vmem:[%s2 + $0xe8] sm:$0xff]
  %v477 = vld [vmem:[%s2 + $0xf0] sm:$0xff]
  %v478 = vld [vmem:[%s2 + $0xf8] sm:$0xff]
  %v479 = vld [vmem:[%s2 + $0x100] sm:$0xf]
  %v480 = vld [vmem:[%s2 + $0x104] sm:$0xff]
  %v481 = vld [vmem:[%s2 + $0x10c] sm:$0xff]
  %v482 = vld [vmem:[%s2 + $0x114] sm:$0xff]
  %v483 = vld [vmem:[%s2 + $0x11c] sm:$0xff]
  %v484 = vld [vmem:[%s2 + $0x124] sm:$0xff]
  %v485 = vld [vmem:[%s2 + $0x12c] sm:$0xff]
  %v486 = vld [vmem:[%s2 + $0x134] sm:$0xf]
  %v487 = vld [vmem:[%s2 + $0x138] sm:$0xff]
  %v488 = vld [vmem:[%s2 + $0x140] sm:$0xff]
  %v489 = vld [vmem:[%s2 + $0x148] sm:$0xff]
  %v490 = vld [vmem:[%s2 + $0x150] sm:$0xff]
  %v491 = vld [vmem:[%s2 + $0x158] sm:$0xff]
  %v492 = vld [vmem:[%s2 + $0x160] sm:$0xff]
  %v493 = vld [vmem:[%s2 + $0x168] sm:$0xf]
  %v494 = vld [vmem:[%s2 + $0x16c] sm:$0xff]
  %v495 = vld [vmem:[%s2 + $0x174] sm:$0xff]
  %v496 = vld [vmem:[%s2 + $0x17c] sm:$0xff]
  %v497 = vld [vmem:[%s2 + $0x184] sm:$0xff]
  %v498 = vld [vmem:[%s2 + $0x18c] sm:$0xff]
  %v499 = vld [vmem:[%s2 + $0x194] sm:$0xff]
  %v500 = vld [vmem:[%s2 + $0x19c] sm:$0xf]
  %v501 = vld [vmem:[%s2 + $0x1a0] sm:$0xff]
  %v502 = vld [vmem:[%s2 + $0x1a8] sm:$0xff]
  %v503 = vld [vmem:[%s2 + $0x1b0] sm:$0xff]
  %v504 = vld [vmem:[%s2 + $0x1b8] sm:$0xff]
  %v505 = vld [vmem:[%s2 + $0x1c0] sm:$0xff]
  %v506 = vld [vmem:[%s2 + $0x1c8] sm:$0xff]
  %v507 = vld [vmem:[%s2 + $0x1d0] sm:$0xf]
  %v508 = vld [vmem:[%s2 + $0x1d4] sm:$0xff]
  %v509 = vld [vmem:[%s2 + $0x1dc] sm:$0xff]
  %v510 = vld [vmem:[%s2 + $0x1e4] sm:$0xff]
  %v511 = vld [vmem:[%s2 + $0x1ec] sm:$0xff]
  %v512 = vld [vmem:[%s2 + $0x1f4] sm:$0xff]
  %v513 = vld [vmem:[%s2 + $0x1fc] sm:$0xff]
  %v514 = vld [vmem:[%s2 + $0x204] sm:$0xf]
  %v515 = vld [vmem:[%s2 + $0x208] sm:$0xff]
  %v516 = vld [vmem:[%s2 + $0x210] sm:$0xff]
  %v517 = vld [vmem:[%s2 + $0x218] sm:$0xff]
  %v518 = vld [vmem:[%s2 + $0x220] sm:$0xff]
  %v519 = vld [vmem:[%s2 + $0x228] sm:$0xff]
  %v520 = vld [vmem:[%s2 + $0x230] sm:$0xff]
  %v521 = vld [vmem:[%s2 + $0x238] sm:$0xf]
  %v522 = vld [vmem:[%s2 + $0x23c] sm:$0xff]
  %v523 = vld [vmem:[%s2 + $0x244] sm:$0xff]
  %v524 = vld [vmem:[%s2 + $0x24c] sm:$0xff]
  %v525 = vld [vmem:[%s2 + $0x254] sm:$0xff]
  %v526 = vld [vmem:[%s2 + $0x25c] sm:$0xff]
  %v527 = vld [vmem:[%s2 + $0x264] sm:$0xff]
  %v528 = vld [vmem:[%s2 + $0x26c] sm:$0xf]
  %v529 = vld [vmem:[%s2 + $0x270] sm:$0xff]
  %v530 = vld [vmem:[%s2 + $0x278] sm:$0xff]
  %v531 = vld [vmem:[%s2 + $0x280] sm:$0xff]
  %v532 = vld [vmem:[%s2 + $0x288] sm:$0xff]
  %v533 = vld [vmem:[%s2 + $0x290] sm:$0xff]
  %v534 = vld [vmem:[%s2 + $0x298] sm:$0xff]
  %v535 = vld [vmem:[%s2 + $0x2a0] sm:$0xf]
  %v536 = vld [vmem:[%s2 + $0x2a4] sm:$0xff]
  %v537 = vld [vmem:[%s2 + $0x2ac] sm:$0xff]
  %v538 = vld [vmem:[%s2 + $0x2b4] sm:$0xff]
  %v539 = vld [vmem:[%s2 + $0x2bc] sm:$0xff]
  %v540 = vld [vmem:[%s2 + $0x2c4] sm:$0xff]
  %v541 = vld [vmem:[%s2 + $0x2cc] sm:$0xff]
  %v542 = vld [vmem:[%s2 + $0x2d4] sm:$0xf]
  %v543 = vld [vmem:[%s2 + $0x2d8] sm:$0xff]
  %v544 = vld [vmem:[%s2 + $0x2e0] sm:$0xff]
  %v545 = vld [vmem:[%s2 + $0x2e8] sm:$0xff]
  %v546 = vld [vmem:[%s2 + $0x2f0] sm:$0xff]
  %v547 = vld [vmem:[%s2 + $0x2f8] sm:$0xff]
  %v548 = vld [vmem:[%s2 + $0x300] sm:$0xff]
  %v549 = vld [vmem:[%s2 + $0x308] sm:$0xf]
  %v550 = vld [vmem:[%s2 + $0x30c] sm:$0xff]
  %v551 = vld [vmem:[%s2 + $0x314] sm:$0xff]
  %v552 = vld [vmem:[%s2 + $0x31c] sm:$0xff]
  %v553 = vld [vmem:[%s2 + $0x324] sm:$0xff]
  %v554 = vld [vmem:[%s2 + $0x32c] sm:$0xff]
  %v555 = vld [vmem:[%s2 + $0x334] sm:$0xff]
  %v556 = vld [vmem:[%s2 + $0x33c] sm:$0xf]
  %v557 = vld [vmem:[%s2 + $0x340] sm:$0xff]
  %v558 = vld [vmem:[%s2 + $0x348] sm:$0xff]
  %v559 = vld [vmem:[%s2 + $0x350] sm:$0xff]
  %v560 = vld [vmem:[%s2 + $0x358] sm:$0xff]
  %v561 = vld [vmem:[%s2 + $0x360] sm:$0xff]
  %v562 = vld [vmem:[%s2 + $0x368] sm:$0xff]
  %v563 = vld [vmem:[%s2 + $0x370] sm:$0xf]
  %v564 = vld [vmem:[%s2 + $0x374] sm:$0xff]
  %v565 = vld [vmem:[%s2 + $0x37c] sm:$0xff]
  %v566 = vld [vmem:[%s2 + $0x384] sm:$0xff]
  %v567 = vld [vmem:[%s2 + $0x38c] sm:$0xff]
  %v568 = vld [vmem:[%s2 + $0x394] sm:$0xff]
  %v569 = vld [vmem:[%s2 + $0x39c] sm:$0xff]
  %v570 = vld [vmem:[%s2 + $0x3a4] sm:$0xf]
  %v571 = vld [vmem:[%s2 + $0x3a8] sm:$0xff]
  %v572 = vld [vmem:[%s2 + $0x3b0] sm:$0xff]
  %v573 = vld [vmem:[%s2 + $0x3b8] sm:$0xff]
  %v574 = vld [vmem:[%s2 + $0x3c0] sm:$0xff]
  %v575 = vld [vmem:[%s2 + $0x3c8] sm:$0xff]
  %v576 = vld [vmem:[%s2 + $0x3d0] sm:$0xff]
  %v577 = vld [vmem:[%s2 + $0x3d8] sm:$0xf]
  %v578 = vld [vmem:[%s2 + $0x3dc] sm:$0xff]
  %v579 = vld [vmem:[%s2 + $0x3e4] sm:$0xff]
  %v580 = vld [vmem:[%s2 + $0x3ec] sm:$0xff]
  %v581 = vld [vmem:[%s2 + $0x3f4] sm:$0xff]
  %v582 = vld [vmem:[%s2 + $0x3fc] sm:$0xff]
  %v583 = vld [vmem:[%s2 + $0x404] sm:$0xff]
  %v584 = vld [vmem:[%s2 + $0x40c] sm:$0xf]
  %v585 = vld [vmem:[%s2 + $0x410] sm:$0xff]
  %v586 = vld [vmem:[%s2 + $0x418] sm:$0xff]
  %v587 = vld [vmem:[%s2 + $0x420] sm:$0xff]
  %v588 = vld [vmem:[%s2 + $0x428] sm:$0xff]
  %v589 = vld [vmem:[%s2 + $0x430] sm:$0xff]
  %v590 = vld [vmem:[%s2 + $0x438] sm:$0xff]
  %v591 = vld [vmem:[%s2 + $0x440] sm:$0xf]
  %v592 = vld [vmem:[%s2 + $0x444] sm:$0xff]
  %v593 = vld [vmem:[%s2 + $0x44c] sm:$0xff]
  %v594 = vld [vmem:[%s2 + $0x454] sm:$0xff]
  %v595 = vld [vmem:[%s2 + $0x45c] sm:$0xff]
  %v596 = vld [vmem:[%s2 + $0x464] sm:$0xff]
  %v597 = vld [vmem:[%s2 + $0x46c] sm:$0xff]
  %v598 = vld [vmem:[%s2 + $0x474] sm:$0xf]
  %v599 = vld [vmem:[%s2 + $0x478] sm:$0xff]
  %v600 = vld [vmem:[%s2 + $0x480] sm:$0xff]
  %v601 = vld [vmem:[%s2 + $0x488] sm:$0xff]
  %v602 = vld [vmem:[%s2 + $0x490] sm:$0xff]
  %v603 = vld [vmem:[%s2 + $0x498] sm:$0xff]
  %v604 = vld [vmem:[%s2 + $0x4a0] sm:$0xff]
  %v605 = vld [vmem:[%s2 + $0x4a8] sm:$0xf]
  %v606 = vld [vmem:[%s2 + $0x4ac] sm:$0xff]
  %v607 = vld [vmem:[%s2 + $0x4b4] sm:$0xff]
  %v608 = vld [vmem:[%s2 + $0x4bc] sm:$0xff]
  %v609 = vld [vmem:[%s2 + $0x4c4] sm:$0xff]
  %v610 = vld [vmem:[%s2 + $0x4cc] sm:$0xff]
  %v611 = vld [vmem:[%s2 + $0x4d4] sm:$0xff]
  %v612 = vld [vmem:[%s2 + $0x4dc] sm:$0xf]
  %v613 = vld [vmem:[%s2 + $0x4e0] sm:$0xff]
  %v614 = vld [vmem:[%s2 + $0x4e8] sm:$0xff]
  %v615 = vld [vmem:[%s2 + $0x4f0] sm:$0xff]
  %v616 = vld [vmem:[%s2 + $0x4f8] sm:$0xff]
  %v617 = vld [vmem:[%s2 + $0x500] sm:$0xff]
  %v618 = vld [vmem:[%s2 + $0x508] sm:$0xff]
  %v619 = vld [vmem:[%s2 + $0x510] sm:$0xf]
  %v620 = vld [vmem:[%s2 + $0x514] sm:$0xff]
  %v621 = vld [vmem:[%s2 + $0x51c] sm:$0xff]
  %v622 = vld [vmem:[%s2 + $0x524] sm:$0xff]
  %v623 = vld [vmem:[%s2 + $0x52c] sm:$0xff]
  %v624 = vld [vmem:[%s2 + $0x534] sm:$0xff]
  %v625 = vld [vmem:[%s2 + $0x53c] sm:$0xff]
  %v626 = vld [vmem:[%s2 + $0x544] sm:$0xf]
  %v627 = vld [vmem:[%s2 + $0x548] sm:$0xff]
  %v628 = vld [vmem:[%s2 + $0x550] sm:$0xff]
  %v629 = vld [vmem:[%s2 + $0x558] sm:$0xff]
  %v630 = vld [vmem:[%s2 + $0x560] sm:$0xff]
  %v631 = vld [vmem:[%s2 + $0x568] sm:$0xff]
  %v632 = vld [vmem:[%s2 + $0x570] sm:$0xff]
  %v633 = vld [vmem:[%s2 + $0x578] sm:$0xf]
  %v634 = vld [vmem:[%s2 + $0x57c] sm:$0xff]
  %v635 = vld [vmem:[%s2 + $0x584] sm:$0xff]
  %v636 = vld [vmem:[%s2 + $0x58c] sm:$0xff]
  %v637 = vld [vmem:[%s2 + $0x594] sm:$0xff]
  %v638 = vld [vmem:[%s2 + $0x59c] sm:$0xff]
  %v639 = vld [vmem:[%s2 + $0x5a4] sm:$0xff]
  %v640 = vld [vmem:[%s2 + $0x5ac] sm:$0xf]
  %v641 = vld [vmem:[%s2 + $0x5b0] sm:$0xff]
  %v642 = vld [vmem:[%s2 + $0x5b8] sm:$0xff]
  %v643 = vld [vmem:[%s2 + $0x5c0] sm:$0xff]
  %v644 = vld [vmem:[%s2 + $0x5c8] sm:$0xff]
  %v645 = vld [vmem:[%s2 + $0x5d0] sm:$0xff]
  %v646 = vld [vmem:[%s2 + $0x5d8] sm:$0xff]
  %v647 = vld [vmem:[%s2 + $0x5e0] sm:$0xf]
  %v648 = vld [vmem:[%s2 + $0x5e4] sm:$0xff]
  %v649 = vld [vmem:[%s2 + $0x5ec] sm:$0xff]
  %v650 = vld [vmem:[%s2 + $0x5f4] sm:$0xff]
  %v651 = vld [vmem:[%s2 + $0x5fc] sm:$0xff]
  %v652 = vld [vmem:[%s2 + $0x604] sm:$0xff]
  %v653 = vld [vmem:[%s2 + $0x60c] sm:$0xff]
  %v654 = vld [vmem:[%s2 + $0x614] sm:$0xf]
  %v655 = vld [vmem:[%s2 + $0x618] sm:$0xff]
  %v656 = vld [vmem:[%s2 + $0x620] sm:$0xff]
  %v657 = vld [vmem:[%s2 + $0x628] sm:$0xff]
  %v658 = vld [vmem:[%s2 + $0x630] sm:$0xff]
  %v659 = vld [vmem:[%s2 + $0x638] sm:$0xff]
  %v660 = vld [vmem:[%s2 + $0x640] sm:$0xff]
  %v661 = vld [vmem:[%s2 + $0x648] sm:$0xf]
  %v662 = vld [vmem:[%s2 + $0x64c] sm:$0xff]
  %v663 = vld [vmem:[%s2 + $0x654] sm:$0xff]
  %v664 = vld [vmem:[%s2 + $0x65c] sm:$0xff]
  %v665 = vld [vmem:[%s2 + $0x664] sm:$0xff]
  %v666 = vld [vmem:[%s2 + $0x66c] sm:$0xff]
  %v667 = vld [vmem:[%s2 + $0x674] sm:$0xff]
  %v668 = vld [vmem:[%s2 + $0x67c] sm:$0xf]
  %v669 = vpack.c.bf16 %v429, %v427
  %v670 = vpack.c.bf16 %v430, %v428
  %v671 = vpack.c.bf16 %v433, %v431
  %v672 = vpack.c.bf16 %v434, %v432
  %v673 = vpack.c.bf16 %v437, %v435
  %v674 = vpack.c.bf16 %v438, %v436
  %v675 = vpack.c.bf16 %v441, %v439
  %v676 = vpack.c.bf16 %v442, %v440
  %v677 = vpack.c.bf16 %v443, %v443
  %v678 = vpack.c.bf16 %v444, %v444
  %v679 = vunpack.c.l.bf16 %v669
  %v680 = vunpack.c.l.bf16 %v670
  %v681 = vunpack.c.h.bf16 %v669
  %v682 = vunpack.c.h.bf16 %v670
  %v683 = vunpack.c.l.bf16 %v671
  %v684 = vunpack.c.l.bf16 %v672
  %v685 = vunpack.c.h.bf16 %v671
  %v686 = vunpack.c.h.bf16 %v672
  %v687 = vunpack.c.l.bf16 %v673
  %v688 = vunpack.c.l.bf16 %v674
  %v689 = vunpack.c.h.bf16 %v673
  %v690 = vunpack.c.h.bf16 %v674
  %v691 = vunpack.c.l.bf16 %v675
  %v692 = vunpack.c.l.bf16 %v676
  %v693 = vunpack.c.h.bf16 %v675
  %v694 = vunpack.c.h.bf16 %v676
  %v695 = vunpack.c.l.bf16 %v677
  %v696 = vunpack.c.l.bf16 %v678
  %v697 = vsub.f32 %v427, %v679
  %v698 = vsub.f32 %v428, %v680
  %v699 = vsub.f32 %v429, %v681
  %v700 = vsub.f32 %v430, %v682
  %v701 = vsub.f32 %v431, %v683
  %v702 = vsub.f32 %v432, %v684
  %v703 = vsub.f32 %v433, %v685
  %v704 = vsub.f32 %v434, %v686
  %v705 = vsub.f32 %v435, %v687
  %v706 = vsub.f32 %v436, %v688
  %v707 = vsub.f32 %v437, %v689
  %v708 = vsub.f32 %v438, %v690
  %v709 = vsub.f32 %v439, %v691
  %v710 = vsub.f32 %v440, %v692
  %v711 = vsub.f32 %v441, %v693
  %v712 = vsub.f32 %v442, %v694
  %v713 = vsub.f32 %v443, %v695
  %v714 = vsub.f32 %v444, %v696
  %v715 = vpack.c.bf16 %v699, %v697
  %v716 = vpack.c.bf16 %v700, %v698
  %v717 = vpack.c.bf16 %v703, %v701
  %v718 = vpack.c.bf16 %v704, %v702
  %v719 = vpack.c.bf16 %v707, %v705
  %v720 = vpack.c.bf16 %v708, %v706
  %v721 = vpack.c.bf16 %v711, %v709
  %v722 = vpack.c.bf16 %v712, %v710
  %v723 = vpack.c.bf16 %v713, %v713
  %v724 = vpack.c.bf16 %v714, %v714
  %v949 = vunpack.c.l.b16 %v445
  %v950 = vunpack.c.h.b16 %v445
  %v951 = vunpack.c.l.b16 %v446
  %v952 = vunpack.c.h.b16 %v446
  %v953 = vunpack.c.l.b16 %v447
  %v954 = vunpack.c.h.b16 %v447
  %v955 = vunpack.c.l.b16 %v448
  %v956 = vunpack.c.h.b16 %v448
  %v957 = vunpack.c.l.b16 %v449
  %v958 = vunpack.c.h.b16 %v449
  %v959 = vunpack.c.l.b16 %v450
  %v960 = vunpack.c.h.b16 %v450
  %v961 = vunpack.c.l.b16 %v451
  %v962 = vunpack.c.l.b16 %v452
  %v963 = vunpack.c.h.b16 %v452
  %v964 = vunpack.c.l.b16 %v453
  %v965 = vunpack.c.h.b16 %v453
  %v966 = vunpack.c.l.b16 %v454
  %v967 = vunpack.c.h.b16 %v454
  %v968 = vunpack.c.l.b16 %v455
  %v969 = vunpack.c.h.b16 %v455
  %v970 = vunpack.c.l.b16 %v456
  %v971 = vunpack.c.h.b16 %v456
  %v972 = vunpack.c.l.b16 %v457
  %v973 = vunpack.c.h.b16 %v457
  %v974 = vunpack.c.l.b16 %v458
  %v975 = vunpack.c.l.b16 %v459
  %v976 = vunpack.c.h.b16 %v459
  %v977 = vunpack.c.l.b16 %v460
  %v978 = vunpack.c.h.b16 %v460
  %v979 = vunpack.c.l.b16 %v461
  %v980 = vunpack.c.h.b16 %v461
  %v981 = vunpack.c.l.b16 %v462
  %v982 = vunpack.c.h.b16 %v462
  %v983 = vunpack.c.l.b16 %v463
  %v984 = vunpack.c.h.b16 %v463
  %v985 = vunpack.c.l.b16 %v464
  %v986 = vunpack.c.h.b16 %v464
  %v987 = vunpack.c.l.b16 %v465
  %v988 = vunpack.c.l.b16 %v466
  %v989 = vunpack.c.h.b16 %v466
  %v990 = vunpack.c.l.b16 %v467
  %v991 = vunpack.c.h.b16 %v467
  %v992 = vunpack.c.l.b16 %v468
  %v993 = vunpack.c.h.b16 %v468
  %v994 = vunpack.c.l.b16 %v469
  %v995 = vunpack.c.h.b16 %v469
  %v996 = vunpack.c.l.b16 %v470
  %v997 = vunpack.c.h.b16 %v470
  %v998 = vunpack.c.l.b16 %v471
  %v999 = vunpack.c.h.b16 %v471
  %v1000 = vunpack.c.l.b16 %v472
  %v1001 = vunpack.c.l.b16 %v473
  %v1002 = vunpack.c.h.b16 %v473
  %v1003 = vunpack.c.l.b16 %v474
  %v1004 = vunpack.c.h.b16 %v474
  %v1005 = vunpack.c.l.b16 %v475
  %v1006 = vunpack.c.h.b16 %v475
  %v1007 = vunpack.c.l.b16 %v476
  %v1008 = vunpack.c.h.b16 %v476
  %v1009 = vunpack.c.l.b16 %v477
  %v1010 = vunpack.c.h.b16 %v477
  %v1011 = vunpack.c.l.b16 %v478
  %v1012 = vunpack.c.h.b16 %v478
  %v1013 = vunpack.c.l.b16 %v479
  %v1014 = vunpack.c.l.b16 %v480
  %v1015 = vunpack.c.h.b16 %v480
  %v1016 = vunpack.c.l.b16 %v481
  %v1017 = vunpack.c.h.b16 %v481
  %v1018 = vunpack.c.l.b16 %v482
  %v1019 = vunpack.c.h.b16 %v482
  %v1020 = vunpack.c.l.b16 %v483
  %v1021 = vunpack.c.h.b16 %v483
  %v1022 = vunpack.c.l.b16 %v484
  %v1023 = vunpack.c.h.b16 %v484
  %v1024 = vunpack.c.l.b16 %v485
  %v1025 = vunpack.c.h.b16 %v485
  %v1026 = vunpack.c.l.b16 %v486
  %v1027 = vunpack.c.l.b16 %v487
  %v1028 = vunpack.c.h.b16 %v487
  %v1029 = vunpack.c.l.b16 %v488
  %v1030 = vunpack.c.h.b16 %v488
  %v1031 = vunpack.c.l.b16 %v489
  %v1032 = vunpack.c.h.b16 %v489
  %v1033 = vunpack.c.l.b16 %v490
  %v1034 = vunpack.c.h.b16 %v490
  %v1035 = vunpack.c.l.b16 %v491
  %v1036 = vunpack.c.h.b16 %v491
  %v1037 = vunpack.c.l.b16 %v492
  %v1038 = vunpack.c.h.b16 %v492
  %v1039 = vunpack.c.l.b16 %v493
  %v1040 = vunpack.c.l.b16 %v494
  %v1041 = vunpack.c.h.b16 %v494
  %v1042 = vunpack.c.l.b16 %v495
  %v1043 = vunpack.c.h.b16 %v495
  %v1044 = vunpack.c.l.b16 %v496
  %v1045 = vunpack.c.h.b16 %v496
  %v1046 = vunpack.c.l.b16 %v497
  %v1047 = vunpack.c.h.b16 %v497
  %v1048 = vunpack.c.l.b16 %v498
  %v1049 = vunpack.c.h.b16 %v498
  %v1050 = vunpack.c.l.b16 %v499
  %v1051 = vunpack.c.h.b16 %v499
  %v1052 = vunpack.c.l.b16 %v500
  %v1053 = vunpack.c.l.b16 %v501
  %v1054 = vunpack.c.h.b16 %v501
  %v1055 = vunpack.c.l.b16 %v502
  %v1056 = vunpack.c.h.b16 %v502
  %v1057 = vunpack.c.l.b16 %v503
  %v1058 = vunpack.c.h.b16 %v503
  %v1059 = vunpack.c.l.b16 %v504
  %v1060 = vunpack.c.h.b16 %v504
  %v1061 = vunpack.c.l.b16 %v505
  %v1062 = vunpack.c.h.b16 %v505
  %v1063 = vunpack.c.l.b16 %v506
  %v1064 = vunpack.c.h.b16 %v506
  %v1065 = vunpack.c.l.b16 %v507
  %v1066 = vunpack.c.l.b16 %v508
  %v1067 = vunpack.c.h.b16 %v508
  %v1068 = vunpack.c.l.b16 %v509
  %v1069 = vunpack.c.h.b16 %v509
  %v1070 = vunpack.c.l.b16 %v510
  %v1071 = vunpack.c.h.b16 %v510
  %v1072 = vunpack.c.l.b16 %v511
  %v1073 = vunpack.c.h.b16 %v511
  %v1074 = vunpack.c.l.b16 %v512
  %v1075 = vunpack.c.h.b16 %v512
  %v1076 = vunpack.c.l.b16 %v513
  %v1077 = vunpack.c.h.b16 %v513
  %v1078 = vunpack.c.l.b16 %v514
  %v1079 = vunpack.c.l.b16 %v515
  %v1080 = vunpack.c.h.b16 %v515
  %v1081 = vunpack.c.l.b16 %v516
  %v1082 = vunpack.c.h.b16 %v516
  %v1083 = vunpack.c.l.b16 %v517
  %v1084 = vunpack.c.h.b16 %v517
  %v1085 = vunpack.c.l.b16 %v518
  %v1086 = vunpack.c.h.b16 %v518
  %v1087 = vunpack.c.l.b16 %v519
  %v1088 = vunpack.c.h.b16 %v519
  %v1089 = vunpack.c.l.b16 %v520
  %v1090 = vunpack.c.h.b16 %v520
  %v1091 = vunpack.c.l.b16 %v521
  %v1092 = vunpack.c.l.b16 %v522
  %v1093 = vunpack.c.h.b16 %v522
  %v1094 = vunpack.c.l.b16 %v523
  %v1095 = vunpack.c.h.b16 %v523
  %v1096 = vunpack.c.l.b16 %v524
  %v1097 = vunpack.c.h.b16 %v524
  %v1098 = vunpack.c.l.b16 %v525
  %v1099 = vunpack.c.h.b16 %v525
  %v1100 = vunpack.c.l.b16 %v526
  %v1101 = vunpack.c.h.b16 %v526
  %v1102 = vunpack.c.l.b16 %v527
  %v1103 = vunpack.c.h.b16 %v527
  %v1104 = vunpack.c.l.b16 %v528
  %v1105 = vunpack.c.l.b16 %v529
  %v1106 = vunpack.c.h.b16 %v529
  %v1107 = vunpack.c.l.b16 %v530
  %v1108 = vunpack.c.h.b16 %v530
  %v1109 = vunpack.c.l.b16 %v531
  %v1110 = vunpack.c.h.b16 %v531
  %v1111 = vunpack.c.l.b16 %v532
  %v1112 = vunpack.c.h.b16 %v532
  %v1113 = vunpack.c.l.b16 %v533
  %v1114 = vunpack.c.h.b16 %v533
  %v1115 = vunpack.c.l.b16 %v534
  %v1116 = vunpack.c.h.b16 %v534
  %v1117 = vunpack.c.l.b16 %v535
  %v1118 = vunpack.c.l.b16 %v536
  %v1119 = vunpack.c.h.b16 %v536
  %v1120 = vunpack.c.l.b16 %v537
  %v1121 = vunpack.c.h.b16 %v537
  %v1122 = vunpack.c.l.b16 %v538
  %v1123 = vunpack.c.h.b16 %v538
  %v1124 = vunpack.c.l.b16 %v539
  %v1125 = vunpack.c.h.b16 %v539
  %v1126 = vunpack.c.l.b16 %v540
  %v1127 = vunpack.c.h.b16 %v540
  %v1128 = vunpack.c.l.b16 %v541
  %v1129 = vunpack.c.h.b16 %v541
  %v1130 = vunpack.c.l.b16 %v542
  %v1131 = vunpack.c.l.b16 %v543
  %v1132 = vunpack.c.h.b16 %v543
  %v1133 = vunpack.c.l.b16 %v544
  %v1134 = vunpack.c.h.b16 %v544
  %v1135 = vunpack.c.l.b16 %v545
  %v1136 = vunpack.c.h.b16 %v545
  %v1137 = vunpack.c.l.b16 %v546
  %v1138 = vunpack.c.h.b16 %v546
  %v1139 = vunpack.c.l.b16 %v547
  %v1140 = vunpack.c.h.b16 %v547
  %v1141 = vunpack.c.l.b16 %v548
  %v1142 = vunpack.c.h.b16 %v548
  %v1143 = vunpack.c.l.b16 %v549
  %v1144 = vunpack.c.l.b16 %v550
  %v1145 = vunpack.c.h.b16 %v550
  %v1146 = vunpack.c.l.b16 %v551
  %v1147 = vunpack.c.h.b16 %v551
  %v1148 = vunpack.c.l.b16 %v552
  %v1149 = vunpack.c.h.b16 %v552
  %v1150 = vunpack.c.l.b16 %v553
  %v1151 = vunpack.c.h.b16 %v553
  %v1152 = vunpack.c.l.b16 %v554
  %v1153 = vunpack.c.h.b16 %v554
  %v1154 = vunpack.c.l.b16 %v555
  %v1155 = vunpack.c.h.b16 %v555
  %v1156 = vunpack.c.l.b16 %v556
  %v1157 = vunpack.c.l.b16 %v557
  %v1158 = vunpack.c.h.b16 %v557
  %v1159 = vunpack.c.l.b16 %v558
  %v1160 = vunpack.c.h.b16 %v558
  %v1161 = vunpack.c.l.b16 %v559
  %v1162 = vunpack.c.h.b16 %v559
  %v1163 = vunpack.c.l.b16 %v560
  %v1164 = vunpack.c.h.b16 %v560
  %v1165 = vunpack.c.l.b16 %v561
  %v1166 = vunpack.c.h.b16 %v561
  %v1167 = vunpack.c.l.b16 %v562
  %v1168 = vunpack.c.h.b16 %v562
  %v1169 = vunpack.c.l.b16 %v563
  %v1170 = vunpack.c.l.b16 %v564
  %v1171 = vunpack.c.h.b16 %v564
  %v1172 = vunpack.c.l.b16 %v565
  %v1173 = vunpack.c.h.b16 %v565
  %v1174 = vunpack.c.l.b16 %v566
  %v1175 = vunpack.c.h.b16 %v566
  %v1176 = vunpack.c.l.b16 %v567
  %v1177 = vunpack.c.h.b16 %v567
  %v1178 = vunpack.c.l.b16 %v568
  %v1179 = vunpack.c.h.b16 %v568
  %v1180 = vunpack.c.l.b16 %v569
  %v1181 = vunpack.c.h.b16 %v569
  %v1182 = vunpack.c.l.b16 %v570
  %v1183 = vunpack.c.l.b16 %v571
  %v1184 = vunpack.c.h.b16 %v571
  %v1185 = vunpack.c.l.b16 %v572
  %v1186 = vunpack.c.h.b16 %v572
  %v1187 = vunpack.c.l.b16 %v573
  %v1188 = vunpack.c.h.b16 %v573
  %v1189 = vunpack.c.l.b16 %v574
  %v1190 = vunpack.c.h.b16 %v574
  %v1191 = vunpack.c.l.b16 %v575
  %v1192 = vunpack.c.h.b16 %v575
  %v1193 = vunpack.c.l.b16 %v576
  %v1194 = vunpack.c.h.b16 %v576
  %v1195 = vunpack.c.l.b16 %v577
  %v1196 = vunpack.c.l.b16 %v578
  %v1197 = vunpack.c.h.b16 %v578
  %v1198 = vunpack.c.l.b16 %v579
  %v1199 = vunpack.c.h.b16 %v579
  %v1200 = vunpack.c.l.b16 %v580
  %v1201 = vunpack.c.h.b16 %v580
  %v1202 = vunpack.c.l.b16 %v581
  %v1203 = vunpack.c.h.b16 %v581
  %v1204 = vunpack.c.l.b16 %v582
  %v1205 = vunpack.c.h.b16 %v582
  %v1206 = vunpack.c.l.b16 %v583
  %v1207 = vunpack.c.h.b16 %v583
  %v1208 = vunpack.c.l.b16 %v584
  %v1209 = vunpack.c.l.b16 %v585
  %v1210 = vunpack.c.h.b16 %v585
  %v1211 = vunpack.c.l.b16 %v586
  %v1212 = vunpack.c.h.b16 %v586
  %v1213 = vunpack.c.l.b16 %v587
  %v1214 = vunpack.c.h.b16 %v587
  %v1215 = vunpack.c.l.b16 %v588
  %v1216 = vunpack.c.h.b16 %v588
  %v1217 = vunpack.c.l.b16 %v589
  %v1218 = vunpack.c.h.b16 %v589
  %v1219 = vunpack.c.l.b16 %v590
  %v1220 = vunpack.c.h.b16 %v590
  %v1221 = vunpack.c.l.b16 %v591
  %v1222 = vunpack.c.l.b16 %v592
  %v1223 = vunpack.c.h.b16 %v592
  %v1224 = vunpack.c.l.b16 %v593
  %v1225 = vunpack.c.h.b16 %v593
  %v1226 = vunpack.c.l.b16 %v594
  %v1227 = vunpack.c.h.b16 %v594
  %v1228 = vunpack.c.l.b16 %v595
  %v1229 = vunpack.c.h.b16 %v595
  %v1230 = vunpack.c.l.b16 %v596
  %v1231 = vunpack.c.h.b16 %v596
  %v1232 = vunpack.c.l.b16 %v597
  %v1233 = vunpack.c.h.b16 %v597
  %v1234 = vunpack.c.l.b16 %v598
  %v1235 = vunpack.c.l.b16 %v599
  %v1236 = vunpack.c.h.b16 %v599
  %v1237 = vunpack.c.l.b16 %v600
  %v1238 = vunpack.c.h.b16 %v600
  %v1239 = vunpack.c.l.b16 %v601
  %v1240 = vunpack.c.h.b16 %v601
  %v1241 = vunpack.c.l.b16 %v602
  %v1242 = vunpack.c.h.b16 %v602
  %v1243 = vunpack.c.l.b16 %v603
  %v1244 = vunpack.c.h.b16 %v603
  %v1245 = vunpack.c.l.b16 %v604
  %v1246 = vunpack.c.h.b16 %v604
  %v1247 = vunpack.c.l.b16 %v605
  %v1248 = vunpack.c.l.b16 %v606
  %v1249 = vunpack.c.h.b16 %v606
  %v1250 = vunpack.c.l.b16 %v607
  %v1251 = vunpack.c.h.b16 %v607
  %v1252 = vunpack.c.l.b16 %v608
  %v1253 = vunpack.c.h.b16 %v608
  %v1254 = vunpack.c.l.b16 %v609
  %v1255 = vunpack.c.h.b16 %v609
  %v1256 = vunpack.c.l.b16 %v610
  %v1257 = vunpack.c.h.b16 %v610
  %v1258 = vunpack.c.l.b16 %v611
  %v1259 = vunpack.c.h.b16 %v611
  %v1260 = vunpack.c.l.b16 %v612
  %v1261 = vunpack.c.l.b16 %v613
  %v1262 = vunpack.c.h.b16 %v613
  %v1263 = vunpack.c.l.b16 %v614
  %v1264 = vunpack.c.h.b16 %v614
  %v1265 = vunpack.c.l.b16 %v615
  %v1266 = vunpack.c.h.b16 %v615
  %v1267 = vunpack.c.l.b16 %v616
  %v1268 = vunpack.c.h.b16 %v616
  %v1269 = vunpack.c.l.b16 %v617
  %v1270 = vunpack.c.h.b16 %v617
  %v1271 = vunpack.c.l.b16 %v618
  %v1272 = vunpack.c.h.b16 %v618
  %v1273 = vunpack.c.l.b16 %v619
  %v1274 = vunpack.c.l.b16 %v620
  %v1275 = vunpack.c.h.b16 %v620
  %v1276 = vunpack.c.l.b16 %v621
  %v1277 = vunpack.c.h.b16 %v621
  %v1278 = vunpack.c.l.b16 %v622
  %v1279 = vunpack.c.h.b16 %v622
  %v1280 = vunpack.c.l.b16 %v623
  %v1281 = vunpack.c.h.b16 %v623
  %v1282 = vunpack.c.l.b16 %v624
  %v1283 = vunpack.c.h.b16 %v624
  %v1284 = vunpack.c.l.b16 %v625
  %v1285 = vunpack.c.h.b16 %v625
  %v1286 = vunpack.c.l.b16 %v626
  %v1287 = vunpack.c.l.b16 %v627
  %v1288 = vunpack.c.h.b16 %v627
  %v1289 = vunpack.c.l.b16 %v628
  %v1290 = vunpack.c.h.b16 %v628
  %v1291 = vunpack.c.l.b16 %v629
  %v1292 = vunpack.c.h.b16 %v629
  %v1293 = vunpack.c.l.b16 %v630
  %v1294 = vunpack.c.h.b16 %v630
  %v1295 = vunpack.c.l.b16 %v631
  %v1296 = vunpack.c.h.b16 %v631
  %v1297 = vunpack.c.l.b16 %v632
  %v1298 = vunpack.c.h.b16 %v632
  %v1299 = vunpack.c.l.b16 %v633
  %v1300 = vunpack.c.l.b16 %v634
  %v1301 = vunpack.c.h.b16 %v634
  %v1302 = vunpack.c.l.b16 %v635
  %v1303 = vunpack.c.h.b16 %v635
  %v1304 = vunpack.c.l.b16 %v636
  %v1305 = vunpack.c.h.b16 %v636
  %v1306 = vunpack.c.l.b16 %v637
  %v1307 = vunpack.c.h.b16 %v637
  %v1308 = vunpack.c.l.b16 %v638
  %v1309 = vunpack.c.h.b16 %v638
  %v1310 = vunpack.c.l.b16 %v639
  %v1311 = vunpack.c.h.b16 %v639
  %v1312 = vunpack.c.l.b16 %v640
  %v1313 = vunpack.c.l.b16 %v641
  %v1314 = vunpack.c.h.b16 %v641
  %v1315 = vunpack.c.l.b16 %v642
  %v1316 = vunpack.c.h.b16 %v642
  %v1317 = vunpack.c.l.b16 %v643
  %v1318 = vunpack.c.h.b16 %v643
  %v1319 = vunpack.c.l.b16 %v644
  %v1320 = vunpack.c.h.b16 %v644
  %v1321 = vunpack.c.l.b16 %v645
  %v1322 = vunpack.c.h.b16 %v645
  %v1323 = vunpack.c.l.b16 %v646
  %v1324 = vunpack.c.h.b16 %v646
  %v1325 = vunpack.c.l.b16 %v647
  %v1326 = vunpack.c.l.b16 %v648
  %v1327 = vunpack.c.h.b16 %v648
  %v1328 = vunpack.c.l.b16 %v649
  %v1329 = vunpack.c.h.b16 %v649
  %v1330 = vunpack.c.l.b16 %v650
  %v1331 = vunpack.c.h.b16 %v650
  %v1332 = vunpack.c.l.b16 %v651
  %v1333 = vunpack.c.h.b16 %v651
  %v1334 = vunpack.c.l.b16 %v652
  %v1335 = vunpack.c.h.b16 %v652
  %v1336 = vunpack.c.l.b16 %v653
  %v1337 = vunpack.c.h.b16 %v653
  %v1338 = vunpack.c.l.b16 %v654
  %v1339 = vunpack.c.l.b16 %v655
  %v1340 = vunpack.c.h.b16 %v655
  %v1341 = vunpack.c.l.b16 %v656
  %v1342 = vunpack.c.h.b16 %v656
  %v1343 = vunpack.c.l.b16 %v657
  %v1344 = vunpack.c.h.b16 %v657
  %v1345 = vunpack.c.l.b16 %v658
  %v1346 = vunpack.c.h.b16 %v658
  %v1347 = vunpack.c.l.b16 %v659
  %v1348 = vunpack.c.h.b16 %v659
  %v1349 = vunpack.c.l.b16 %v660
  %v1350 = vunpack.c.h.b16 %v660
  %v1351 = vunpack.c.l.b16 %v661
  %v1352 = vunpack.c.l.b16 %v662
  %v1353 = vunpack.c.h.b16 %v662
  %v1354 = vunpack.c.l.b16 %v663
  %v1355 = vunpack.c.h.b16 %v663
  %v1356 = vunpack.c.l.b16 %v664
  %v1357 = vunpack.c.h.b16 %v664
  %v1358 = vunpack.c.l.b16 %v665
  %v1359 = vunpack.c.h.b16 %v665
  %v1360 = vunpack.c.l.b16 %v666
  %v1361 = vunpack.c.h.b16 %v666
  %v1362 = vunpack.c.l.b16 %v667
  %v1363 = vunpack.c.h.b16 %v667
  %v1364 = vunpack.c.l.b16 %v668
  %v1365 = vpack.c.b16 %v962, %v949
  %v1366 = vpack.c.b16 %v963, %v950
  %v1367 = vpack.c.b16 %v964, %v951
  %v1368 = vpack.c.b16 %v965, %v952
  %v1369 = vpack.c.b16 %v966, %v953
  %v1370 = vpack.c.b16 %v967, %v954
  %v1371 = vpack.c.b16 %v968, %v955
  %v1372 = vpack.c.b16 %v969, %v956
  %v1373 = vpack.c.b16 %v970, %v957
  %v1374 = vpack.c.b16 %v971, %v958
  %v1375 = vpack.c.b16 %v972, %v959
  %v1376 = vpack.c.b16 %v973, %v960
  %v1377 = vpack.c.b16 %v974, %v961
  %v1378 = vpack.c.b16 %v988, %v975
  %v1379 = vpack.c.b16 %v989, %v976
  %v1380 = vpack.c.b16 %v990, %v977
  %v1381 = vpack.c.b16 %v991, %v978
  %v1382 = vpack.c.b16 %v992, %v979
  %v1383 = vpack.c.b16 %v993, %v980
  %v1384 = vpack.c.b16 %v994, %v981
  %v1385 = vpack.c.b16 %v995, %v982
  %v1386 = vpack.c.b16 %v996, %v983
  %v1387 = vpack.c.b16 %v997, %v984
  %v1388 = vpack.c.b16 %v998, %v985
  %v1389 = vpack.c.b16 %v999, %v986
  %v1390 = vpack.c.b16 %v1000, %v987
  %v1391 = vpack.c.b16 %v1014, %v1001
  %v1392 = vpack.c.b16 %v1015, %v1002
  %v1393 = vpack.c.b16 %v1016, %v1003
  %v1394 = vpack.c.b16 %v1017, %v1004
  %v1395 = vpack.c.b16 %v1018, %v1005
  %v1396 = vpack.c.b16 %v1019, %v1006
  %v1397 = vpack.c.b16 %v1020, %v1007
  %v1398 = vpack.c.b16 %v1021, %v1008
  %v1399 = vpack.c.b16 %v1022, %v1009
  %v1400 = vpack.c.b16 %v1023, %v1010
  %v1401 = vpack.c.b16 %v1024, %v1011
  %v1402 = vpack.c.b16 %v1025, %v1012
  %v1403 = vpack.c.b16 %v1026, %v1013
  %v1404 = vpack.c.b16 %v1040, %v1027
  %v1405 = vpack.c.b16 %v1041, %v1028
  %v1406 = vpack.c.b16 %v1042, %v1029
  %v1407 = vpack.c.b16 %v1043, %v1030
  %v1408 = vpack.c.b16 %v1044, %v1031
  %v1409 = vpack.c.b16 %v1045, %v1032
  %v1410 = vpack.c.b16 %v1046, %v1033
  %v1411 = vpack.c.b16 %v1047, %v1034
  %v1412 = vpack.c.b16 %v1048, %v1035
  %v1413 = vpack.c.b16 %v1049, %v1036
  %v1414 = vpack.c.b16 %v1050, %v1037
  %v1415 = vpack.c.b16 %v1051, %v1038
  %v1416 = vpack.c.b16 %v1052, %v1039
  %v1417 = vpack.c.b16 %v1066, %v1053
  %v1418 = vpack.c.b16 %v1067, %v1054
  %v1419 = vpack.c.b16 %v1068, %v1055
  %v1420 = vpack.c.b16 %v1069, %v1056
  %v1421 = vpack.c.b16 %v1070, %v1057
  %v1422 = vpack.c.b16 %v1071, %v1058
  %v1423 = vpack.c.b16 %v1072, %v1059
  %v1424 = vpack.c.b16 %v1073, %v1060
  %v1425 = vpack.c.b16 %v1074, %v1061
  %v1426 = vpack.c.b16 %v1075, %v1062
  %v1427 = vpack.c.b16 %v1076, %v1063
  %v1428 = vpack.c.b16 %v1077, %v1064
  %v1429 = vpack.c.b16 %v1078, %v1065
  %v1430 = vpack.c.b16 %v1092, %v1079
  %v1431 = vpack.c.b16 %v1093, %v1080
  %v1432 = vpack.c.b16 %v1094, %v1081
  %v1433 = vpack.c.b16 %v1095, %v1082
  %v1434 = vpack.c.b16 %v1096, %v1083
  %v1435 = vpack.c.b16 %v1097, %v1084
  %v1436 = vpack.c.b16 %v1098, %v1085
  %v1437 = vpack.c.b16 %v1099, %v1086
  %v1438 = vpack.c.b16 %v1100, %v1087
  %v1439 = vpack.c.b16 %v1101, %v1088
  %v1440 = vpack.c.b16 %v1102, %v1089
  %v1441 = vpack.c.b16 %v1103, %v1090
  %v1442 = vpack.c.b16 %v1104, %v1091
  %v1443 = vpack.c.b16 %v1118, %v1105
  %v1444 = vpack.c.b16 %v1119, %v1106
  %v1445 = vpack.c.b16 %v1120, %v1107
  %v1446 = vpack.c.b16 %v1121, %v1108
  %v1447 = vpack.c.b16 %v1122, %v1109
  %v1448 = vpack.c.b16 %v1123, %v1110
  %v1449 = vpack.c.b16 %v1124, %v1111
  %v1450 = vpack.c.b16 %v1125, %v1112
  %v1451 = vpack.c.b16 %v1126, %v1113
  %v1452 = vpack.c.b16 %v1127, %v1114
  %v1453 = vpack.c.b16 %v1128, %v1115
  %v1454 = vpack.c.b16 %v1129, %v1116
  %v1455 = vpack.c.b16 %v1130, %v1117
  %v1456 = vpack.c.b16 %v1144, %v1131
  %v1457 = vpack.c.b16 %v1145, %v1132
  %v1458 = vpack.c.b16 %v1146, %v1133
  %v1459 = vpack.c.b16 %v1147, %v1134
  %v1460 = vpack.c.b16 %v1148, %v1135
  %v1461 = vpack.c.b16 %v1149, %v1136
  %v1462 = vpack.c.b16 %v1150, %v1137
  %v1463 = vpack.c.b16 %v1151, %v1138
  %v1464 = vpack.c.b16 %v1152, %v1139
  %v1465 = vpack.c.b16 %v1153, %v1140
  %v1466 = vpack.c.b16 %v1154, %v1141
  %v1467 = vpack.c.b16 %v1155, %v1142
  %v1468 = vpack.c.b16 %v1156, %v1143
  %v1469 = vpack.c.b16 %v1170, %v1157
  %v1470 = vpack.c.b16 %v1171, %v1158
  %v1471 = vpack.c.b16 %v1172, %v1159
  %v1472 = vpack.c.b16 %v1173, %v1160
  %v1473 = vpack.c.b16 %v1174, %v1161
  %v1474 = vpack.c.b16 %v1175, %v1162
  %v1475 = vpack.c.b16 %v1176, %v1163
  %v1476 = vpack.c.b16 %v1177, %v1164
  %v1477 = vpack.c.b16 %v1178, %v1165
  %v1478 = vpack.c.b16 %v1179, %v1166
  %v1479 = vpack.c.b16 %v1180, %v1167
  %v1480 = vpack.c.b16 %v1181, %v1168
  %v1481 = vpack.c.b16 %v1182, %v1169
  %v1482 = vpack.c.b16 %v1196, %v1183
  %v1483 = vpack.c.b16 %v1197, %v1184
  %v1484 = vpack.c.b16 %v1198, %v1185
  %v1485 = vpack.c.b16 %v1199, %v1186
  %v1486 = vpack.c.b16 %v1200, %v1187
  %v1487 = vpack.c.b16 %v1201, %v1188
  %v1488 = vpack.c.b16 %v1202, %v1189
  %v1489 = vpack.c.b16 %v1203, %v1190
  %v1490 = vpack.c.b16 %v1204, %v1191
  %v1491 = vpack.c.b16 %v1205, %v1192
  %v1492 = vpack.c.b16 %v1206, %v1193
  %v1493 = vpack.c.b16 %v1207, %v1194
  %v1494 = vpack.c.b16 %v1208, %v1195
  %v1495 = vpack.c.b16 %v1222, %v1209
  %v1496 = vpack.c.b16 %v1223, %v1210
  %v1497 = vpack.c.b16 %v1224, %v1211
  %v1498 = vpack.c.b16 %v1225, %v1212
  %v1499 = vpack.c.b16 %v1226, %v1213
  %v1500 = vpack.c.b16 %v1227, %v1214
  %v1501 = vpack.c.b16 %v1228, %v1215
  %v1502 = vpack.c.b16 %v1229, %v1216
  %v1503 = vpack.c.b16 %v1230, %v1217
  %v1504 = vpack.c.b16 %v1231, %v1218
  %v1505 = vpack.c.b16 %v1232, %v1219
  %v1506 = vpack.c.b16 %v1233, %v1220
  %v1507 = vpack.c.b16 %v1234, %v1221
  %v1508 = vpack.c.b16 %v1248, %v1235
  %v1509 = vpack.c.b16 %v1249, %v1236
  %v1510 = vpack.c.b16 %v1250, %v1237
  %v1511 = vpack.c.b16 %v1251, %v1238
  %v1512 = vpack.c.b16 %v1252, %v1239
  %v1513 = vpack.c.b16 %v1253, %v1240
  %v1514 = vpack.c.b16 %v1254, %v1241
  %v1515 = vpack.c.b16 %v1255, %v1242
  %v1516 = vpack.c.b16 %v1256, %v1243
  %v1517 = vpack.c.b16 %v1257, %v1244
  %v1518 = vpack.c.b16 %v1258, %v1245
  %v1519 = vpack.c.b16 %v1259, %v1246
  %v1520 = vpack.c.b16 %v1260, %v1247
  %v1521 = vpack.c.b16 %v1274, %v1261
  %v1522 = vpack.c.b16 %v1275, %v1262
  %v1523 = vpack.c.b16 %v1276, %v1263
  %v1524 = vpack.c.b16 %v1277, %v1264
  %v1525 = vpack.c.b16 %v1278, %v1265
  %v1526 = vpack.c.b16 %v1279, %v1266
  %v1527 = vpack.c.b16 %v1280, %v1267
  %v1528 = vpack.c.b16 %v1281, %v1268
  %v1529 = vpack.c.b16 %v1282, %v1269
  %v1530 = vpack.c.b16 %v1283, %v1270
  %v1531 = vpack.c.b16 %v1284, %v1271
  %v1532 = vpack.c.b16 %v1285, %v1272
  %v1533 = vpack.c.b16 %v1286, %v1273
  %v1534 = vpack.c.b16 %v1300, %v1287
  %v1535 = vpack.c.b16 %v1301, %v1288
  %v1536 = vpack.c.b16 %v1302, %v1289
  %v1537 = vpack.c.b16 %v1303, %v1290
  %v1538 = vpack.c.b16 %v1304, %v1291
  %v1539 = vpack.c.b16 %v1305, %v1292
  %v1540 = vpack.c.b16 %v1306, %v1293
  %v1541 = vpack.c.b16 %v1307, %v1294
  %v1542 = vpack.c.b16 %v1308, %v1295
  %v1543 = vpack.c.b16 %v1309, %v1296
  %v1544 = vpack.c.b16 %v1310, %v1297
  %v1545 = vpack.c.b16 %v1311, %v1298
  %v1546 = vpack.c.b16 %v1312, %v1299
  %v1547 = vpack.c.b16 %v1326, %v1313
  %v1548 = vpack.c.b16 %v1327, %v1314
  %v1549 = vpack.c.b16 %v1328, %v1315
  %v1550 = vpack.c.b16 %v1329, %v1316
  %v1551 = vpack.c.b16 %v1330, %v1317
  %v1552 = vpack.c.b16 %v1331, %v1318
  %v1553 = vpack.c.b16 %v1332, %v1319
  %v1554 = vpack.c.b16 %v1333, %v1320
  %v1555 = vpack.c.b16 %v1334, %v1321
  %v1556 = vpack.c.b16 %v1335, %v1322
  %v1557 = vpack.c.b16 %v1336, %v1323
  %v1558 = vpack.c.b16 %v1337, %v1324
  %v1559 = vpack.c.b16 %v1338, %v1325
  %v1560 = vpack.c.b16 %v1352, %v1339
  %v1561 = vpack.c.b16 %v1353, %v1340
  %v1562 = vpack.c.b16 %v1354, %v1341
  %v1563 = vpack.c.b16 %v1355, %v1342
  %v1564 = vpack.c.b16 %v1356, %v1343
  %v1565 = vpack.c.b16 %v1357, %v1344
  %v1566 = vpack.c.b16 %v1358, %v1345
  %v1567 = vpack.c.b16 %v1359, %v1346
  %v1568 = vpack.c.b16 %v1360, %v1347
  %v1569 = vpack.c.b16 %v1361, %v1348
  %v1570 = vpack.c.b16 %v1362, %v1349
  %v1571 = vpack.c.b16 %v1363, %v1350
  %v1572 = vpack.c.b16 %v1364, %v1351
  %1781 = vmatprep.subr.bf16.mxu0 %v1366
  %1782 = vmatpush1.bf16.msra.mxu0 %v1365
  %1783 = vmatprep.subr.bf16.mxu0 %v1379
  %1784 = vmatpush1.bf16.msra.mxu0 %v1378
  %1785 = vmatprep.subr.bf16.mxu0 %v1392
  %1786 = vmatpush1.bf16.msra.mxu0 %v1391
  %1787 = vmatprep.subr.bf16.mxu0 %v1405
  %1788 = vmatpush1.bf16.msra.mxu0 %v1404
  %1789 = vmatprep.subr.bf16.mxu0 %v1418
  %1790 = vmatpush1.bf16.msra.mxu0 %v1417
  %1791 = vmatprep.subr.bf16.mxu0 %v1431
  %1792 = vmatpush1.bf16.msra.mxu0 %v1430
  %1793 = vmatprep.subr.bf16.mxu0 %v1444
  %1794 = vmatpush1.bf16.msra.mxu0 %v1443
  %1795 = vmatprep.subr.bf16.mxu0 %v1457
  %1796 = vmatpush1.bf16.msra.mxu0 %v1456
  %1797 = vmatprep.subr.bf16.mxu0 %v1470
  %1798 = vmatpush1.bf16.msra.mxu0 %v1469
  %1799 = vmatprep.subr.bf16.mxu0 %v1483
  %1800 = vmatpush1.bf16.msra.mxu0 %v1482
  %1801 = vmatprep.subr.bf16.mxu0 %v1496
  %1802 = vmatpush1.bf16.msra.mxu0 %v1495
  %1803 = vmatprep.subr.bf16.mxu0 %v1509
  %1804 = vmatpush1.bf16.msra.mxu0 %v1508
  %1805 = vmatprep.subr.bf16.mxu0 %v1522
  %1806 = vmatpush1.bf16.msra.mxu0 %v1521
  %1807 = vmatprep.subr.bf16.mxu0 %v1535
  %1808 = vmatpush1.bf16.msra.mxu0 %v1534
  %1809 = vmatprep.subr.bf16.mxu0 %v1548
  %1810 = vmatpush1.bf16.msra.mxu0 %v1547
  %1811 = vmatprep.subr.bf16.mxu0 %v1561
  %1812 = vmatpush1.bf16.msra.mxu0 %v1560
  %1813 = vmatprep.mubr.bf16.mxu0 %v716
  %1814 = vmatmul.mubr.bf16.gmra.mrb[0].mxu0 %v715
  %v1815 = vpop.f32.mrb[0].mxu0
  %v1816 = vadd.f32 0.0, %v1815
  %v1817 = vpop.f32.mrb[0].mxu0
  %v1818 = vadd.f32 0.0, %v1817
  %v1819 = vpop.f32.mrb[0].mxu0
  %v1820 = vadd.f32 0.0, %v1819
  %v1821 = vpop.f32.mrb[0].mxu0
  %v1822 = vadd.f32 0.0, %v1821
  %1823 = vmatprep.mubr.bf16.mxu0 %v718
  %1824 = vmatmul.mubr.bf16.gmra.mrb[0].mxu0 %v717
  %v1825 = vpop.f32.mrb[0].mxu0
  %v1826 = vadd.f32 0.0, %v1825
  %v1827 = vpop.f32.mrb[0].mxu0
  %v1828 = vadd.f32 0.0, %v1827
  %v1829 = vpop.f32.mrb[0].mxu0
  %v1830 = vadd.f32 0.0, %v1829
  %v1831 = vpop.f32.mrb[0].mxu0
  %v1832 = vadd.f32 0.0, %v1831
  %1833 = vmatprep.mubr.bf16.mxu0 %v720
  %1834 = vmatmul.mubr.bf16.gmra.mrb[0].mxu0 %v719
  %v1835 = vpop.f32.mrb[0].mxu0
  %v1836 = vadd.f32 0.0, %v1835
  %v1837 = vpop.f32.mrb[0].mxu0
  %v1838 = vadd.f32 0.0, %v1837
  %v1839 = vpop.f32.mrb[0].mxu0
  %v1840 = vadd.f32 0.0, %v1839
  %v1841 = vpop.f32.mrb[0].mxu0
  %v1842 = vadd.f32 0.0, %v1841
  %1843 = vmatprep.mubr.bf16.mxu0 %v722
  %1844 = vmatmul.mubr.bf16.gmra.mrb[0].mxu0 %v721
  %v1845 = vpop.f32.mrb[0].mxu0
  %v1846 = vadd.f32 0.0, %v1845
  %v1847 = vpop.f32.mrb[0].mxu0
  %v1848 = vadd.f32 0.0, %v1847
  %v1849 = vpop.f32.mrb[0].mxu0
  %v1850 = vadd.f32 0.0, %v1849
  %v1851 = vpop.f32.mrb[0].mxu0
  %v1852 = vadd.f32 0.0, %v1851
  %1853 = vmatprep.mubr.bf16.mxu0 %v724
  %1854 = vmatmul.mubr.bf16.gmra.mrb[0].mxu0 %v723
  %v1855 = vpop.f32.mrb[0].mxu0
  %v1856 = vadd.f32 0.0, %v1855
  %v1857 = vpop.f32.mrb[0].mxu0
  %v1858 = vadd.f32 0.0, %v1857
  %v1859 = vpop.f32.mrb[0].mxu0
  %v1860 = vpop.f32.mrb[0].mxu0
  %1861 = vdwg.mxu0
  %1862 = vmatprep.subr.bf16.mxu0 %v1368
  %1863 = vmatpush1.bf16.msra.mxu0 %v1367
  %1864 = vmatprep.subr.bf16.mxu0 %v1381
  %1865 = vmatpush1.bf16.msra.mxu0 %v1380
  %1866 = vmatprep.subr.bf16.mxu0 %v1394
  %1867 = vmatpush1.bf16.msra.mxu0 %v1393
  %1868 = vmatprep.subr.bf16.mxu0 %v1407
  %1869 = vmatpush1.bf16.msra.mxu0 %v1406
  %1870 = vmatprep.subr.bf16.mxu0 %v1420
  %1871 = vmatpush1.bf16.msra.mxu0 %v1419
  %1872 = vmatprep.subr.bf16.mxu0 %v1433
  %1873 = vmatpush1.bf16.msra.mxu0 %v1432
  %1874 = vmatprep.subr.bf16.mxu0 %v1446
  %1875 = vmatpush1.bf16.msra.mxu0 %v1445
  %1876 = vmatprep.subr.bf16.mxu0 %v1459
  %1877 = vmatpush1.bf16.msra.mxu0 %v1458
  %1878 = vmatprep.subr.bf16.mxu0 %v1472
  %1879 = vmatpush1.bf16.msra.mxu0 %v1471
  %1880 = vmatprep.subr.bf16.mxu0 %v1485
  %1881 = vmatpush1.bf16.msra.mxu0 %v1484
  %1882 = vmatprep.subr.bf16.mxu0 %v1498
  %1883 = vmatpush1.bf16.msra.mxu0 %v1497
  %1884 = vmatprep.subr.bf16.mxu0 %v1511
  %1885 = vmatpush1.bf16.msra.mxu0 %v1510
  %1886 = vmatprep.subr.bf16.mxu0 %v1524
  %1887 = vmatpush1.bf16.msra.mxu0 %v1523
  %1888 = vmatprep.subr.bf16.mxu0 %v1537
  %1889 = vmatpush1.bf16.msra.mxu0 %v1536
  %1890 = vmatprep.subr.bf16.mxu0 %v1550
  %1891 = vmatpush1.bf16.msra.mxu0 %v1549
  %1892 = vmatprep.subr.bf16.mxu0 %v1563
  %1893 = vmatpush1.bf16.msra.mxu0 %v1562
  %1894 = vmatprep.mubr.bf16.mxu0 %v716
  %1895 = vmatmul.mubr.bf16.gmra.mrb[0].mxu0 %v715
  %v1896 = vpop.f32.mrb[0].mxu0
  %v1897 = vadd.f32 0.0, %v1896
  %v1898 = vpop.f32.mrb[0].mxu0
  %v1899 = vadd.f32 0.0, %v1898
  %v1900 = vpop.f32.mrb[0].mxu0
  %v1901 = vadd.f32 0.0, %v1900
  %v1902 = vpop.f32.mrb[0].mxu0
  %v1903 = vadd.f32 0.0, %v1902
  %1904 = vmatprep.mubr.bf16.mxu0 %v718
  %1905 = vmatmul.mubr.bf16.gmra.mrb[0].mxu0 %v717
  %v1906 = vpop.f32.mrb[0].mxu0
  %v1907 = vadd.f32 0.0, %v1906
  %v1908 = vpop.f32.mrb[0].mxu0
  %v1909 = vadd.f32 0.0, %v1908
  %v1910 = vpop.f32.mrb[0].mxu0
  %v1911 = vadd.f32 0.0, %v1910
  %v1912 = vpop.f32.mrb[0].mxu0
  %v1913 = vadd.f32 0.0, %v1912
  %1914 = vmatprep.mubr.bf16.mxu0 %v720
  %1915 = vmatmul.mubr.bf16.gmra.mrb[0].mxu0 %v719
  %v1916 = vpop.f32.mrb[0].mxu0
  %v1917 = vadd.f32 0.0, %v1916
  %v1918 = vpop.f32.mrb[0].mxu0
  %v1919 = vadd.f32 0.0, %v1918
  %v1920 = vpop.f32.mrb[0].mxu0
  %v1921 = vadd.f32 0.0, %v1920
  %v1922 = vpop.f32.mrb[0].mxu0
  %v1923 = vadd.f32 0.0, %v1922
  %1924 = vmatprep.mubr.bf16.mxu0 %v722
  %1925 = vmatmul.mubr.bf16.gmra.mrb[0].mxu0 %v721
  %v1926 = vpop.f32.mrb[0].mxu0
  %v1927 = vadd.f32 0.0, %v1926
  %v1928 = vpop.f32.mrb[0].mxu0
  %v1929 = vadd.f32 0.0, %v1928
  %v1930 = vpop.f32.mrb[0].mxu0
  %v1931 = vadd.f32 0.0, %v1930
  %v1932 = vpop.f32.mrb[0].mxu0
  %v1933 = vadd.f32 0.0, %v1932
  %1934 = vmatprep.mubr.bf16.mxu0 %v724
  %1935 = vmatmul.mubr.bf16.gmra.mrb[0].mxu0 %v723
  %v1936 = vpop.f32.mrb[0].mxu0
  %v1937 = vadd.f32 0.0, %v1936
  %v1938 = vpop.f32.mrb[0].mxu0
  %v1939 = vadd.f32 0.0, %v1938
  %v1940 = vpop.f32.mrb[0].mxu0
  %v1941 = vpop.f32.mrb[0].mxu0
  %1942 = vdwg.mxu0
  %1943 = vmatprep.subr.bf16.mxu0 %v1370
  %1944 = vmatpush1.bf16.msra.mxu0 %v1369
  %1945 = vmatprep.subr.bf16.mxu0 %v1383
  %1946 = vmatpush1.bf16.msra.mxu0 %v1382
  %1947 = vmatprep.subr.bf16.mxu0 %v1396
  %1948 = vmatpush1.bf16.msra.mxu0 %v1395
  %1949 = vmatprep.subr.bf16.mxu0 %v1409
  %1950 = vmatpush1.bf16.msra.mxu0 %v1408
  %1951 = vmatprep.subr.bf16.mxu0 %v1422
  %1952 = vmatpush1.bf16.msra.mxu0 %v1421
  %1953 = vmatprep.subr.bf16.mxu0 %v1435
  %1954 = vmatpush1.bf16.msra.mxu0 %v1434
  %1955 = vmatprep.subr.bf16.mxu0 %v1448
  %1956 = vmatpush1.bf16.msra.mxu0 %v1447
  %1957 = vmatprep.subr.bf16.mxu0 %v1461
  %1958 = vmatpush1.bf16.msra.mxu0 %v1460
  %1959 = vmatprep.subr.bf16.mxu0 %v1474
  %1960 = vmatpush1.bf16.msra.mxu0 %v1473
  %1961 = vmatprep.subr.bf16.mxu0 %v1487
  %1962 = vmatpush1.bf16.msra.mxu0 %v1486
  %1963 = vmatprep.subr.bf16.mxu0 %v1500
  %1964 = vmatpush1.bf16.msra.mxu0 %v1499
  %1965 = vmatprep.subr.bf16.mxu0 %v1513
  %1966 = vmatpush1.bf16.msra.mxu0 %v1512
  %1967 = vmatprep.subr.bf16.mxu0 %v1526
  %1968 = vmatpush1.bf16.msra.mxu0 %v1525
  %1969 = vmatprep.subr.bf16.mxu0 %v1539
  %1970 = vmatpush1.bf16.msra.mxu0 %v1538
  %1971 = vmatprep.subr.bf16.mxu0 %v1552
  %1972 = vmatpush1.bf16.msra.mxu0 %v1551
  %1973 = vmatprep.subr.bf16.mxu0 %v1565
  %1974 = vmatpush1.bf16.msra.mxu0 %v1564
  %1975 = vmatprep.mubr.bf16.mxu0 %v716
  %1976 = vmatmul.mubr.bf16.gmra.mrb[0].mxu0 %v715
  %v1977 = vpop.f32.mrb[0].mxu0
  %v1978 = vadd.f32 0.0, %v1977
  %v1979 = vpop.f32.mrb[0].mxu0
  %v1980 = vadd.f32 0.0, %v1979
  %v1981 = vpop.f32.mrb[0].mxu0
  %v1982 = vadd.f32 0.0, %v1981
  %v1983 = vpop.f32.mrb[0].mxu0
  %v1984 = vadd.f32 0.0, %v1983
  %1985 = vmatprep.mubr.bf16.mxu0 %v718
  %1986 = vmatmul.mubr.bf16.gmra.mrb[0].mxu0 %v717
  %v1987 = vpop.f32.mrb[0].mxu0
  %v1988 = vadd.f32 0.0, %v1987
  %v1989 = vpop.f32.mrb[0].mxu0
  %v1990 = vadd.f32 0.0, %v1989
  %v1991 = vpop.f32.mrb[0].mxu0
  %v1992 = vadd.f32 0.0, %v1991
  %v1993 = vpop.f32.mrb[0].mxu0
  %v1994 = vadd.f32 0.0, %v1993
  %1995 = vmatprep.mubr.bf16.mxu0 %v720
  %1996 = vmatmul.mubr.bf16.gmra.mrb[0].mxu0 %v719
  %v1997 = vpop.f32.mrb[0].mxu0
  %v1998 = vadd.f32 0.0, %v1997
  %v1999 = vpop.f32.mrb[0].mxu0
  %v2000 = vadd.f32 0.0, %v1999
  %v2001 = vpop.f32.mrb[0].mxu0
  %v2002 = vadd.f32 0.0, %v2001
  %v2003 = vpop.f32.mrb[0].mxu0
  %v2004 = vadd.f32 0.0, %v2003
  %2005 = vmatprep.mubr.bf16.mxu0 %v722
  %2006 = vmatmul.mubr.bf16.gmra.mrb[0].mxu0 %v721
  %v2007 = vpop.f32.mrb[0].mxu0
  %v2008 = vadd.f32 0.0, %v2007
  %v2009 = vpop.f32.mrb[0].mxu0
  %v2010 = vadd.f32 0.0, %v2009
  %v2011 = vpop.f32.mrb[0].mxu0
  %v2012 = vadd.f32 0.0, %v2011
  %v2013 = vpop.f32.mrb[0].mxu0
  %v2014 = vadd.f32 0.0, %v2013
  %2015 = vmatprep.mubr.bf16.mxu0 %v724
  %2016 = vmatmul.mubr.bf16.gmra.mrb[0].mxu0 %v723
  %v2017 = vpop.f32.mrb[0].mxu0
  %v2018 = vadd.f32 0.0, %v2017
  %v2019 = vpop.f32.mrb[0].mxu0
  %v2020 = vadd.f32 0.0, %v2019
  %v2021 = vpop.f32.mrb[0].mxu0
  %v2022 = vpop.f32.mrb[0].mxu0
  %2023 = vdwg.mxu0
  %2024 = vmatprep.subr.bf16.mxu0 %v1372
  %2025 = vmatpush1.bf16.msra.mxu0 %v1371
  %2026 = vmatprep.subr.bf16.mxu0 %v1385
  %2027 = vmatpush1.bf16.msra.mxu0 %v1384
  %2028 = vmatprep.subr.bf16.mxu0 %v1398
  %2029 = vmatpush1.bf16.msra.mxu0 %v1397
  %2030 = vmatprep.subr.bf16.mxu0 %v1411
  %2031 = vmatpush1.bf16.msra.mxu0 %v1410
  %2032 = vmatprep.subr.bf16.mxu0 %v1424
  %2033 = vmatpush1.bf16.msra.mxu0 %v1423
  %2034 = vmatprep.subr.bf16.mxu0 %v1437
  %2035 = vmatpush1.bf16.msra.mxu0 %v1436
  %2036 = vmatprep.subr.bf16.mxu0 %v1450
  %2037 = vmatpush1.bf16.msra.mxu0 %v1449
  %2038 = vmatprep.subr.bf16.mxu0 %v1463
  %2039 = vmatpush1.bf16.msra.mxu0 %v1462
  %2040 = vmatprep.subr.bf16.mxu0 %v1476
  %2041 = vmatpush1.bf16.msra.mxu0 %v1475
  %2042 = vmatprep.subr.bf16.mxu0 %v1489
  %2043 = vmatpush1.bf16.msra.mxu0 %v1488
  %2044 = vmatprep.subr.bf16.mxu0 %v1502
  %2045 = vmatpush1.bf16.msra.mxu0 %v1501
  %2046 = vmatprep.subr.bf16.mxu0 %v1515
  %2047 = vmatpush1.bf16.msra.mxu0 %v1514
  %2048 = vmatprep.subr.bf16.mxu0 %v1528
  %2049 = vmatpush1.bf16.msra.mxu0 %v1527
  %2050 = vmatprep.subr.bf16.mxu0 %v1541
  %2051 = vmatpush1.bf16.msra.mxu0 %v1540
  %2052 = vmatprep.subr.bf16.mxu0 %v1554
  %2053 = vmatpush1.bf16.msra.mxu0 %v1553
  %2054 = vmatprep.subr.bf16.mxu0 %v1567
  %2055 = vmatpush1.bf16.msra.mxu0 %v1566
  %2056 = vmatprep.mubr.bf16.mxu0 %v716
  %2057 = vmatmul.mubr.bf16.gmra.mrb[0].mxu0 %v715
  %v2058 = vpop.f32.mrb[0].mxu0
  %v2059 = vadd.f32 0.0, %v2058
  %v2060 = vpop.f32.mrb[0].mxu0
  %v2061 = vadd.f32 0.0, %v2060
  %v2062 = vpop.f32.mrb[0].mxu0
  %v2063 = vadd.f32 0.0, %v2062
  %v2064 = vpop.f32.mrb[0].mxu0
  %v2065 = vadd.f32 0.0, %v2064
  %2066 = vmatprep.mubr.bf16.mxu0 %v718
  %2067 = vmatmul.mubr.bf16.gmra.mrb[0].mxu0 %v717
  %v2068 = vpop.f32.mrb[0].mxu0
  %v2069 = vadd.f32 0.0, %v2068
  %v2070 = vpop.f32.mrb[0].mxu0
  %v2071 = vadd.f32 0.0, %v2070
  %v2072 = vpop.f32.mrb[0].mxu0
  %v2073 = vadd.f32 0.0, %v2072
  %v2074 = vpop.f32.mrb[0].mxu0
  %v2075 = vadd.f32 0.0, %v2074
  %2076 = vmatprep.mubr.bf16.mxu0 %v720
  %2077 = vmatmul.mubr.bf16.gmra.mrb[0].mxu0 %v719
  %v2078 = vpop.f32.mrb[0].mxu0
  %v2079 = vadd.f32 0.0, %v2078
  %v2080 = vpop.f32.mrb[0].mxu0
  %v2081 = vadd.f32 0.0, %v2080
  %v2082 = vpop.f32.mrb[0].mxu0
  %v2083 = vadd.f32 0.0, %v2082
  %v2084 = vpop.f32.mrb[0].mxu0
  %v2085 = vadd.f32 0.0, %v2084
  %2086 = vmatprep.mubr.bf16.mxu0 %v722
  %2087 = vmatmul.mubr.bf16.gmra.mrb[0].mxu0 %v721
  %v2088 = vpop.f32.mrb[0].mxu0
  %v2089 = vadd.f32 0.0, %v2088
  %v2090 = vpop.f32.mrb[0].mxu0
  %v2091 = vadd.f32 0.0, %v2090
  %v2092 = vpop.f32.mrb[0].mxu0
  %v2093 = vadd.f32 0.0, %v2092
  %v2094 = vpop.f32.mrb[0].mxu0
  %v2095 = vadd.f32 0.0, %v2094
  %2096 = vmatprep.mubr.bf16.mxu0 %v724
  %2097 = vmatmul.mubr.bf16.gmra.mrb[0].mxu0 %v723
  %v2098 = vpop.f32.mrb[0].mxu0
  %v2099 = vadd.f32 0.0, %v2098
  %v2100 = vpop.f32.mrb[0].mxu0
  %v2101 = vadd.f32 0.0, %v2100
  %v2102 = vpop.f32.mrb[0].mxu0
  %v2103 = vpop.f32.mrb[0].mxu0
  %2104 = vdwg.mxu0
  %2105 = vmatprep.subr.bf16.mxu0 %v1374
  %2106 = vmatpush1.bf16.msra.mxu0 %v1373
  %2107 = vmatprep.subr.bf16.mxu0 %v1387
  %2108 = vmatpush1.bf16.msra.mxu0 %v1386
  %2109 = vmatprep.subr.bf16.mxu0 %v1400
  %2110 = vmatpush1.bf16.msra.mxu0 %v1399
  %2111 = vmatprep.subr.bf16.mxu0 %v1413
  %2112 = vmatpush1.bf16.msra.mxu0 %v1412
  %2113 = vmatprep.subr.bf16.mxu0 %v1426
  %2114 = vmatpush1.bf16.msra.mxu0 %v1425
  %2115 = vmatprep.subr.bf16.mxu0 %v1439
  %2116 = vmatpush1.bf16.msra.mxu0 %v1438
  %2117 = vmatprep.subr.bf16.mxu0 %v1452
  %2118 = vmatpush1.bf16.msra.mxu0 %v1451
  %2119 = vmatprep.subr.bf16.mxu0 %v1465
  %2120 = vmatpush1.bf16.msra.mxu0 %v1464
  %2121 = vmatprep.subr.bf16.mxu0 %v1478
  %2122 = vmatpush1.bf16.msra.mxu0 %v1477
  %2123 = vmatprep.subr.bf16.mxu0 %v1491
  %2124 = vmatpush1.bf16.msra.mxu0 %v1490
  %2125 = vmatprep.subr.bf16.mxu0 %v1504
  %2126 = vmatpush1.bf16.msra.mxu0 %v1503
  %2127 = vmatprep.subr.bf16.mxu0 %v1517
  %2128 = vmatpush1.bf16.msra.mxu0 %v1516
  %2129 = vmatprep.subr.bf16.mxu0 %v1530
  %2130 = vmatpush1.bf16.msra.mxu0 %v1529
  %2131 = vmatprep.subr.bf16.mxu0 %v1543
  %2132 = vmatpush1.bf16.msra.mxu0 %v1542
  %2133 = vmatprep.subr.bf16.mxu0 %v1556
  %2134 = vmatpush1.bf16.msra.mxu0 %v1555
  %2135 = vmatprep.subr.bf16.mxu0 %v1569
  %2136 = vmatpush1.bf16.msra.mxu0 %v1568
  %2137 = vmatprep.mubr.bf16.mxu0 %v716
  %2138 = vmatmul.mubr.bf16.gmra.mrb[0].mxu0 %v715
  %v2139 = vpop.f32.mrb[0].mxu0
  %v2140 = vadd.f32 0.0, %v2139
  %v2141 = vpop.f32.mrb[0].mxu0
  %v2142 = vadd.f32 0.0, %v2141
  %v2143 = vpop.f32.mrb[0].mxu0
  %v2144 = vadd.f32 0.0, %v2143
  %v2145 = vpop.f32.mrb[0].mxu0
  %v2146 = vadd.f32 0.0, %v2145
  %2147 = vmatprep.mubr.bf16.mxu0 %v718
  %2148 = vmatmul.mubr.bf16.gmra.mrb[0].mxu0 %v717
  %v2149 = vpop.f32.mrb[0].mxu0
  %v2150 = vadd.f32 0.0, %v2149
  %v2151 = vpop.f32.mrb[0].mxu0
  %v2152 = vadd.f32 0.0, %v2151
  %v2153 = vpop.f32.mrb[0].mxu0
  %v2154 = vadd.f32 0.0, %v2153
  %v2155 = vpop.f32.mrb[0].mxu0
  %v2156 = vadd.f32 0.0, %v2155
  %2157 = vmatprep.mubr.bf16.mxu0 %v720
  %2158 = vmatmul.mubr.bf16.gmra.mrb[0].mxu0 %v719
  %v2159 = vpop.f32.mrb[0].mxu0
  %v2160 = vadd.f32 0.0, %v2159
  %v2161 = vpop.f32.mrb[0].mxu0
  %v2162 = vadd.f32 0.0, %v2161
  %v2163 = vpop.f32.mrb[0].mxu0
  %v2164 = vadd.f32 0.0, %v2163
  %v2165 = vpop.f32.mrb[0].mxu0
  %v2166 = vadd.f32 0.0, %v2165
  %2167 = vmatprep.mubr.bf16.mxu0 %v722
  %2168 = vmatmul.mubr.bf16.gmra.mrb[0].mxu0 %v721
  %v2169 = vpop.f32.mrb[0].mxu0
  %v2170 = vadd.f32 0.0, %v2169
  %v2171 = vpop.f32.mrb[0].mxu0
  %v2172 = vadd.f32 0.0, %v2171
  %v2173 = vpop.f32.mrb[0].mxu0
  %v2174 = vadd.f32 0.0, %v2173
  %v2175 = vpop.f32.mrb[0].mxu0
  %v2176 = vadd.f32 0.0, %v2175
  %2177 = vmatprep.mubr.bf16.mxu0 %v724
  %2178 = vmatmul.mubr.bf16.gmra.mrb[0].mxu0 %v723
  %v2179 = vpop.f32.mrb[0].mxu0
  %v2180 = vadd.f32 0.0, %v2179
  %v2181 = vpop.f32.mrb[0].mxu0
  %v2182 = vadd.f32 0.0, %v2181
  %v2183 = vpop.f32.mrb[0].mxu0
  %v2184 = vpop.f32.mrb[0].mxu0
  %2185 = vdwg.mxu0
  %2186 = vmatprep.subr.bf16.mxu0 %v1376
  %2187 = vmatpush1.bf16.msra.mxu0 %v1375
  %2188 = vmatprep.subr.bf16.mxu0 %v1389
  %2189 = vmatpush1.bf16.msra.mxu0 %v1388
  %2190 = vmatprep.subr.bf16.mxu0 %v1402
  %2191 = vmatpush1.bf16.msra.mxu0 %v1401
  %2192 = vmatprep.subr.bf16.mxu0 %v1415
  %2193 = vmatpush1.bf16.msra.mxu0 %v1414
  %2194 = vmatprep.subr.bf16.mxu0 %v1428
  %2195 = vmatpush1.bf16.msra.mxu0 %v1427
  %2196 = vmatprep.subr.bf16.mxu0 %v1441
  %2197 = vmatpush1.bf16.msra.mxu0 %v1440
  %2198 = vmatprep.subr.bf16.mxu0 %v1454
  %2199 = vmatpush1.bf16.msra.mxu0 %v1453
  %2200 = vmatprep.subr.bf16.mxu0 %v1467
  %2201 = vmatpush1.bf16.msra.mxu0 %v1466
  %2202 = vmatprep.subr.bf16.mxu0 %v1480
  %2203 = vmatpush1.bf16.msra.mxu0 %v1479
  %2204 = vmatprep.subr.bf16.mxu0 %v1493
  %2205 = vmatpush1.bf16.msra.mxu0 %v1492
  %2206 = vmatprep.subr.bf16.mxu0 %v1506
  %2207 = vmatpush1.bf16.msra.mxu0 %v1505
  %2208 = vmatprep.subr.bf16.mxu0 %v1519
  %2209 = vmatpush1.bf16.msra.mxu0 %v1518
  %2210 = vmatprep.subr.bf16.mxu0 %v1532
  %2211 = vmatpush1.bf16.msra.mxu0 %v1531
  %2212 = vmatprep.subr.bf16.mxu0 %v1545
  %2213 = vmatpush1.bf16.msra.mxu0 %v1544
  %2214 = vmatprep.subr.bf16.mxu0 %v1558
  %2215 = vmatpush1.bf16.msra.mxu0 %v1557
  %2216 = vmatprep.subr.bf16.mxu0 %v1571
  %2217 = vmatpush1.bf16.msra.mxu0 %v1570
  %2218 = vmatprep.mubr.bf16.mxu0 %v716
  %2219 = vmatmul.mubr.bf16.gmra.mrb[0].mxu0 %v715
  %v2220 = vpop.f32.mrb[0].mxu0
  %v2221 = vadd.f32 0.0, %v2220
  %v2222 = vpop.f32.mrb[0].mxu0
  %v2223 = vadd.f32 0.0, %v2222
  %v2224 = vpop.f32.mrb[0].mxu0
  %v2225 = vadd.f32 0.0, %v2224
  %v2226 = vpop.f32.mrb[0].mxu0
  %v2227 = vadd.f32 0.0, %v2226
  %2228 = vmatprep.mubr.bf16.mxu0 %v718
  %2229 = vmatmul.mubr.bf16.gmra.mrb[0].mxu0 %v717
  %v2230 = vpop.f32.mrb[0].mxu0
  %v2231 = vadd.f32 0.0, %v2230
  %v2232 = vpop.f32.mrb[0].mxu0
  %v2233 = vadd.f32 0.0, %v2232
  %v2234 = vpop.f32.mrb[0].mxu0
  %v2235 = vadd.f32 0.0, %v2234
  %v2236 = vpop.f32.mrb[0].mxu0
  %v2237 = vadd.f32 0.0, %v2236
  %2238 = vmatprep.mubr.bf16.mxu0 %v720
  %2239 = vmatmul.mubr.bf16.gmra.mrb[0].mxu0 %v719
  %v2240 = vpop.f32.mrb[0].mxu0
  %v2241 = vadd.f32 0.0, %v2240
  %v2242 = vpop.f32.mrb[0].mxu0
  %v2243 = vadd.f32 0.0, %v2242
  %v2244 = vpop.f32.mrb[0].mxu0
  %v2245 = vadd.f32 0.0, %v2244
  %v2246 = vpop.f32.mrb[0].mxu0
  %v2247 = vadd.f32 0.0, %v2246
  %2248 = vmatprep.mubr.bf16.mxu0 %v722
  %2249 = vmatmul.mubr.bf16.gmra.mrb[0].mxu0 %v721
  %v2250 = vpop.f32.mrb[0].mxu0
  %v2251 = vadd.f32 0.0, %v2250
  %v2252 = vpop.f32.mrb[0].mxu0
  %v2253 = vadd.f32 0.0, %v2252
  %v2254 = vpop.f32.mrb[0].mxu0
  %v2255 = vadd.f32 0.0, %v2254
  %v2256 = vpop.f32.mrb[0].mxu0
  %v2257 = vadd.f32 0.0, %v2256
  %2258 = vmatprep.mubr.bf16.mxu0 %v724
  %2259 = vmatmul.mubr.bf16.gmra.mrb[0].mxu0 %v723
  %v2260 = vpop.f32.mrb[0].mxu0
  %v2261 = vadd.f32 0.0, %v2260
  %v2262 = vpop.f32.mrb[0].mxu0
  %v2263 = vadd.f32 0.0, %v2262
  %v2264 = vpop.f32.mrb[0].mxu0
  %v2265 = vpop.f32.mrb[0].mxu0
  %2266 = vdwg.mxu0
  %2267 = vmatprep.subr.bf16.mxu0 0
  %2268 = vmatpush1.bf16.msra.mxu0 %v1377
  %2269 = vmatprep.subr.bf16.mxu0 0
  %2270 = vmatpush1.bf16.msra.mxu0 %v1390
  %2271 = vmatprep.subr.bf16.mxu0 0
  %2272 = vmatpush1.bf16.msra.mxu0 %v1403
  %2273 = vmatprep.subr.bf16.mxu0 0
  %2274 = vmatpush1.bf16.msra.mxu0 %v1416
  %2275 = vmatprep.subr.bf16.mxu0 0
  %2276 = vmatpush1.bf16.msra.mxu0 %v1429
  %2277 = vmatprep.subr.bf16.mxu0 0
  %2278 = vmatpush1.bf16.msra.mxu0 %v1442
  %2279 = vmatprep.subr.bf16.mxu0 0
  %2280 = vmatpush1.bf16.msra.mxu0 %v1455
  %2281 = vmatprep.subr.bf16.mxu0 0
  %2282 = vmatpush1.bf16.msra.mxu0 %v1468
  %2283 = vmatprep.subr.bf16.mxu0 0
  %2284 = vmatpush1.bf16.msra.mxu0 %v1481
  %2285 = vmatprep.subr.bf16.mxu0 0
  %2286 = vmatpush1.bf16.msra.mxu0 %v1494
  %2287 = vmatprep.subr.bf16.mxu0 0
  %2288 = vmatpush1.bf16.msra.mxu0 %v1507
  %2289 = vmatprep.subr.bf16.mxu0 0
  %2290 = vmatpush1.bf16.msra.mxu0 %v1520
  %2291 = vmatprep.subr.bf16.mxu0 0
  %2292 = vmatpush1.bf16.msra.mxu0 %v1533
  %2293 = vmatprep.subr.bf16.mxu0 0
  %2294 = vmatpush1.bf16.msra.mxu0 %v1546
  %2295 = vmatprep.subr.bf16.mxu0 0
  %2296 = vmatpush1.bf16.msra.mxu0 %v1559
  %2297 = vmatprep.subr.bf16.mxu0 0
  %2298 = vmatpush1.bf16.msra.mxu0 %v1572
  %2299 = vmatprep.mubr.bf16.mxu0 %v716
  %2300 = vmatmul.mubr.bf16.gmra.mrb[0].mxu0 %v715
  %v2301 = vpop.f32.mrb[0].mxu0
  %v2302 = vadd.f32 0.0, %v2301
  %v2303 = vpop.f32.mrb[0].mxu0
  %v2304 = vpop.f32.mrb[0].mxu0
  %v2305 = vadd.f32 0.0, %v2304
  %v2306 = vpop.f32.mrb[0].mxu0
  %2307 = vmatprep.mubr.bf16.mxu0 %v718
  %2308 = vmatmul.mubr.bf16.gmra.mrb[0].mxu0 %v717
  %v2309 = vpop.f32.mrb[0].mxu0
  %v2310 = vadd.f32 0.0, %v2309
  %v2311 = vpop.f32.mrb[0].mxu0
  %v2312 = vpop.f32.mrb[0].mxu0
  %v2313 = vadd.f32 0.0, %v2312
  %v2314 = vpop.f32.mrb[0].mxu0
  %2315 = vmatprep.mubr.bf16.mxu0 %v720
  %2316 = vmatmul.mubr.bf16.gmra.mrb[0].mxu0 %v719
  %v2317 = vpop.f32.mrb[0].mxu0
  %v2318 = vadd.f32 0.0, %v2317
  %v2319 = vpop.f32.mrb[0].mxu0
  %v2320 = vpop.f32.mrb[0].mxu0
  %v2321 = vadd.f32 0.0, %v2320
  %v2322 = vpop.f32.mrb[0].mxu0
  %2323 = vmatprep.mubr.bf16.mxu0 %v722
  %2324 = vmatmul.mubr.bf16.gmra.mrb[0].mxu0 %v721
  %v2325 = vpop.f32.mrb[0].mxu0
  %v2326 = vadd.f32 0.0, %v2325
  %v2327 = vpop.f32.mrb[0].mxu0
  %v2328 = vpop.f32.mrb[0].mxu0
  %v2329 = vadd.f32 0.0, %v2328
  %v2330 = vpop.f32.mrb[0].mxu0
  %2331 = vmatprep.mubr.bf16.mxu0 %v724
  %2332 = vmatmul.mubr.bf16.gmra.mrb[0].mxu0 %v723
  %v2333 = vpop.f32.mrb[0].mxu0
  %v2334 = vadd.f32 0.0, %v2333
  %v2335 = vpop.f32.mrb[0].mxu0
  %v2336 = vpop.f32.mrb[0].mxu0
  %v2337 = vpop.f32.mrb[0].mxu0
  %2338 = vdwg.mxu0
  %2339 = vmatprep.subr.bf16.mxu0 %v1366
  %2340 = vmatpush1.bf16.msra.mxu0 %v1365
  %2341 = vmatprep.subr.bf16.mxu0 %v1379
  %2342 = vmatpush1.bf16.msra.mxu0 %v1378
  %2343 = vmatprep.subr.bf16.mxu0 %v1392
  %2344 = vmatpush1.bf16.msra.mxu0 %v1391
  %2345 = vmatprep.subr.bf16.mxu0 %v1405
  %2346 = vmatpush1.bf16.msra.mxu0 %v1404
  %2347 = vmatprep.subr.bf16.mxu0 %v1418
  %2348 = vmatpush1.bf16.msra.mxu0 %v1417
  %2349 = vmatprep.subr.bf16.mxu0 %v1431
  %2350 = vmatpush1.bf16.msra.mxu0 %v1430
  %2351 = vmatprep.subr.bf16.mxu0 %v1444
  %2352 = vmatpush1.bf16.msra.mxu0 %v1443
  %2353 = vmatprep.subr.bf16.mxu0 %v1457
  %2354 = vmatpush1.bf16.msra.mxu0 %v1456
  %2355 = vmatprep.subr.bf16.mxu0 %v1470
  %2356 = vmatpush1.bf16.msra.mxu0 %v1469
  %2357 = vmatprep.subr.bf16.mxu0 %v1483
  %2358 = vmatpush1.bf16.msra.mxu0 %v1482
  %2359 = vmatprep.subr.bf16.mxu0 %v1496
  %2360 = vmatpush1.bf16.msra.mxu0 %v1495
  %2361 = vmatprep.subr.bf16.mxu0 %v1509
  %2362 = vmatpush1.bf16.msra.mxu0 %v1508
  %2363 = vmatprep.subr.bf16.mxu0 %v1522
  %2364 = vmatpush1.bf16.msra.mxu0 %v1521
  %2365 = vmatprep.subr.bf16.mxu0 %v1535
  %2366 = vmatpush1.bf16.msra.mxu0 %v1534
  %2367 = vmatprep.subr.bf16.mxu0 %v1548
  %2368 = vmatpush1.bf16.msra.mxu0 %v1547
  %2369 = vmatprep.subr.bf16.mxu0 %v1561
  %2370 = vmatpush1.bf16.msra.mxu0 %v1560
  %2371 = vmatprep.mubr.bf16.mxu0 %v670
  %2372 = vmatmul.mubr.bf16.gmra.mrb[0].mxu0 %v669
  %v2373 = vpop.f32.mrb[0].mxu0
  %v2374 = vadd.f32 %v1816, %v2373
  %v2375 = vpop.f32.mrb[0].mxu0
  %v2376 = vadd.f32 %v1818, %v2375
  %v2377 = vpop.f32.mrb[0].mxu0
  %v2378 = vadd.f32 %v1820, %v2377
  %v2379 = vpop.f32.mrb[0].mxu0
  %v2380 = vadd.f32 %v1822, %v2379
  %2381 = vmatprep.mubr.bf16.mxu0 %v672
  %2382 = vmatmul.mubr.bf16.gmra.mrb[0].mxu0 %v671
  %v2383 = vpop.f32.mrb[0].mxu0
  %v2384 = vadd.f32 %v1826, %v2383
  %v2385 = vpop.f32.mrb[0].mxu0
  %v2386 = vadd.f32 %v1828, %v2385
  %v2387 = vpop.f32.mrb[0].mxu0
  %v2388 = vadd.f32 %v1830, %v2387
  %v2389 = vpop.f32.mrb[0].mxu0
  %v2390 = vadd.f32 %v1832, %v2389
  %2391 = vmatprep.mubr.bf16.mxu0 %v674
  %2392 = vmatmul.mubr.bf16.gmra.mrb[0].mxu0 %v673
  %v2393 = vpop.f32.mrb[0].mxu0
  %v2394 = vadd.f32 %v1836, %v2393
  %v2395 = vpop.f32.mrb[0].mxu0
  %v2396 = vadd.f32 %v1838, %v2395
  %v2397 = vpop.f32.mrb[0].mxu0
  %v2398 = vadd.f32 %v1840, %v2397
  %v2399 = vpop.f32.mrb[0].mxu0
  %v2400 = vadd.f32 %v1842, %v2399
  %2401 = vmatprep.mubr.bf16.mxu0 %v676
  %2402 = vmatmul.mubr.bf16.gmra.mrb[0].mxu0 %v675
  %v2403 = vpop.f32.mrb[0].mxu0
  %v2404 = vadd.f32 %v1846, %v2403
  %v2405 = vpop.f32.mrb[0].mxu0
  %v2406 = vadd.f32 %v1848, %v2405
  %v2407 = vpop.f32.mrb[0].mxu0
  %v2408 = vadd.f32 %v1850, %v2407
  %v2409 = vpop.f32.mrb[0].mxu0
  %v2410 = vadd.f32 %v1852, %v2409
  %2411 = vmatprep.mubr.bf16.mxu0 %v678
  %2412 = vmatmul.mubr.bf16.gmra.mrb[0].mxu0 %v677
  %v2413 = vpop.f32.mrb[0].mxu0
  %v2414 = vadd.f32 %v1856, %v2413
  %v2415 = vpop.f32.mrb[0].mxu0
  %v2416 = vadd.f32 %v1858, %v2415
  %v2417 = vpop.f32.mrb[0].mxu0
  %v2418 = vpop.f32.mrb[0].mxu0
  %2419 = vdwg.mxu0
  %2420 = vmatprep.subr.bf16.mxu0 %v1368
  %2421 = vmatpush1.bf16.msra.mxu0 %v1367
  %2422 = vmatprep.subr.bf16.mxu0 %v1381
  %2423 = vmatpush1.bf16.msra.mxu0 %v1380
  %2424 = vmatprep.subr.bf16.mxu0 %v1394
  %2425 = vmatpush1.bf16.msra.mxu0 %v1393
  %2426 = vmatprep.subr.bf16.mxu0 %v1407
  %2427 = vmatpush1.bf16.msra.mxu0 %v1406
  %2428 = vmatprep.subr.bf16.mxu0 %v1420
  %2429 = vmatpush1.bf16.msra.mxu0 %v1419
  %2430 = vmatprep.subr.bf16.mxu0 %v1433
  %2431 = vmatpush1.bf16.msra.mxu0 %v1432
  %2432 = vmatprep.subr.bf16.mxu0 %v1446
  %2433 = vmatpush1.bf16.msra.mxu0 %v1445
  %2434 = vmatprep.subr.bf16.mxu0 %v1459
  %2435 = vmatpush1.bf16.msra.mxu0 %v1458
  %2436 = vmatprep.subr.bf16.mxu0 %v1472
  %2437 = vmatpush1.bf16.msra.mxu0 %v1471
  %2438 = vmatprep.subr.bf16.mxu0 %v1485
  %2439 = vmatpush1.bf16.msra.mxu0 %v1484
  %2440 = vmatprep.subr.bf16.mxu0 %v1498
  %2441 = vmatpush1.bf16.msra.mxu0 %v1497
  %2442 = vmatprep.subr.bf16.mxu0 %v1511
  %2443 = vmatpush1.bf16.msra.mxu0 %v1510
  %2444 = vmatprep.subr.bf16.mxu0 %v1524
  %2445 = vmatpush1.bf16.msra.mxu0 %v1523
  %2446 = vmatprep.subr.bf16.mxu0 %v1537
  %2447 = vmatpush1.bf16.msra.mxu0 %v1536
  %2448 = vmatprep.subr.bf16.mxu0 %v1550
  %2449 = vmatpush1.bf16.msra.mxu0 %v1549
  %2450 = vmatprep.subr.bf16.mxu0 %v1563
  %2451 = vmatpush1.bf16.msra.mxu0 %v1562
  %2452 = vmatprep.mubr.bf16.mxu0 %v670
  %2453 = vmatmul.mubr.bf16.gmra.mrb[0].mxu0 %v669
  %v2454 = vpop.f32.mrb[0].mxu0
  %v2455 = vadd.f32 %v1897, %v2454
  %v2456 = vpop.f32.mrb[0].mxu0
  %v2457 = vadd.f32 %v1899, %v2456
  %v2458 = vpop.f32.mrb[0].mxu0
  %v2459 = vadd.f32 %v1901, %v2458
  %v2460 = vpop.f32.mrb[0].mxu0
  %v2461 = vadd.f32 %v1903, %v2460
  %2462 = vmatprep.mubr.bf16.mxu0 %v672
  %2463 = vmatmul.mubr.bf16.gmra.mrb[0].mxu0 %v671
  %v2464 = vpop.f32.mrb[0].mxu0
  %v2465 = vadd.f32 %v1907, %v2464
  %v2466 = vpop.f32.mrb[0].mxu0
  %v2467 = vadd.f32 %v1909, %v2466
  %v2468 = vpop.f32.mrb[0].mxu0
  %v2469 = vadd.f32 %v1911, %v2468
  %v2470 = vpop.f32.mrb[0].mxu0
  %v2471 = vadd.f32 %v1913, %v2470
  %2472 = vmatprep.mubr.bf16.mxu0 %v674
  %2473 = vmatmul.mubr.bf16.gmra.mrb[0].mxu0 %v673
  %v2474 = vpop.f32.mrb[0].mxu0
  %v2475 = vadd.f32 %v1917, %v2474
  %v2476 = vpop.f32.mrb[0].mxu0
  %v2477 = vadd.f32 %v1919, %v2476
  %v2478 = vpop.f32.mrb[0].mxu0
  %v2479 = vadd.f32 %v1921, %v2478
  %v2480 = vpop.f32.mrb[0].mxu0
  %v2481 = vadd.f32 %v1923, %v2480
  %2482 = vmatprep.mubr.bf16.mxu0 %v676
  %2483 = vmatmul.mubr.bf16.gmra.mrb[0].mxu0 %v675
  %v2484 = vpop.f32.mrb[0].mxu0
  %v2485 = vadd.f32 %v1927, %v2484
  %v2486 = vpop.f32.mrb[0].mxu0
  %v2487 = vadd.f32 %v1929, %v2486
  %v2488 = vpop.f32.mrb[0].mxu0
  %v2489 = vadd.f32 %v1931, %v2488
  %v2490 = vpop.f32.mrb[0].mxu0
  %v2491 = vadd.f32 %v1933, %v2490
  %2492 = vmatprep.mubr.bf16.mxu0 %v678
  %2493 = vmatmul.mubr.bf16.gmra.mrb[0].mxu0 %v677
  %v2494 = vpop.f32.mrb[0].mxu0
  %v2495 = vadd.f32 %v1937, %v2494
  %v2496 = vpop.f32.mrb[0].mxu0
  %v2497 = vadd.f32 %v1939, %v2496
  %v2498 = vpop.f32.mrb[0].mxu0
  %v2499 = vpop.f32.mrb[0].mxu0
  %2500 = vdwg.mxu0
  %2501 = vmatprep.subr.bf16.mxu0 %v1370
  %2502 = vmatpush1.bf16.msra.mxu0 %v1369
  %2503 = vmatprep.subr.bf16.mxu0 %v1383
  %2504 = vmatpush1.bf16.msra.mxu0 %v1382
  %2505 = vmatprep.subr.bf16.mxu0 %v1396
  %2506 = vmatpush1.bf16.msra.mxu0 %v1395
  %2507 = vmatprep.subr.bf16.mxu0 %v1409
  %2508 = vmatpush1.bf16.msra.mxu0 %v1408
  %2509 = vmatprep.subr.bf16.mxu0 %v1422
  %2510 = vmatpush1.bf16.msra.mxu0 %v1421
  %2511 = vmatprep.subr.bf16.mxu0 %v1435
  %2512 = vmatpush1.bf16.msra.mxu0 %v1434
  %2513 = vmatprep.subr.bf16.mxu0 %v1448
  %2514 = vmatpush1.bf16.msra.mxu0 %v1447
  %2515 = vmatprep.subr.bf16.mxu0 %v1461
  %2516 = vmatpush1.bf16.msra.mxu0 %v1460
  %2517 = vmatprep.subr.bf16.mxu0 %v1474
  %2518 = vmatpush1.bf16.msra.mxu0 %v1473
  %2519 = vmatprep.subr.bf16.mxu0 %v1487
  %2520 = vmatpush1.bf16.msra.mxu0 %v1486
  %2521 = vmatprep.subr.bf16.mxu0 %v1500
  %2522 = vmatpush1.bf16.msra.mxu0 %v1499
  %2523 = vmatprep.subr.bf16.mxu0 %v1513
  %2524 = vmatpush1.bf16.msra.mxu0 %v1512
  %2525 = vmatprep.subr.bf16.mxu0 %v1526
  %2526 = vmatpush1.bf16.msra.mxu0 %v1525
  %2527 = vmatprep.subr.bf16.mxu0 %v1539
  %2528 = vmatpush1.bf16.msra.mxu0 %v1538
  %2529 = vmatprep.subr.bf16.mxu0 %v1552
  %2530 = vmatpush1.bf16.msra.mxu0 %v1551
  %2531 = vmatprep.subr.bf16.mxu0 %v1565
  %2532 = vmatpush1.bf16.msra.mxu0 %v1564
  %2533 = vmatprep.mubr.bf16.mxu0 %v670
  %2534 = vmatmul.mubr.bf16.gmra.mrb[0].mxu0 %v669
  %v2535 = vpop.f32.mrb[0].mxu0
  %v2536 = vadd.f32 %v1978, %v2535
  %v2537 = vpop.f32.mrb[0].mxu0
  %v2538 = vadd.f32 %v1980, %v2537
  %v2539 = vpop.f32.mrb[0].mxu0
  %v2540 = vadd.f32 %v1982, %v2539
  %v2541 = vpop.f32.mrb[0].mxu0
  %v2542 = vadd.f32 %v1984, %v2541
  %2543 = vmatprep.mubr.bf16.mxu0 %v672
  %2544 = vmatmul.mubr.bf16.gmra.mrb[0].mxu0 %v671
  %v2545 = vpop.f32.mrb[0].mxu0
  %v2546 = vadd.f32 %v1988, %v2545
  %v2547 = vpop.f32.mrb[0].mxu0
  %v2548 = vadd.f32 %v1990, %v2547
  %v2549 = vpop.f32.mrb[0].mxu0
  %v2550 = vadd.f32 %v1992, %v2549
  %v2551 = vpop.f32.mrb[0].mxu0
  %v2552 = vadd.f32 %v1994, %v2551
  %2553 = vmatprep.mubr.bf16.mxu0 %v674
  %2554 = vmatmul.mubr.bf16.gmra.mrb[0].mxu0 %v673
  %v2555 = vpop.f32.mrb[0].mxu0
  %v2556 = vadd.f32 %v1998, %v2555
  %v2557 = vpop.f32.mrb[0].mxu0
  %v2558 = vadd.f32 %v2000, %v2557
  %v2559 = vpop.f32.mrb[0].mxu0
  %v2560 = vadd.f32 %v2002, %v2559
  %v2561 = vpop.f32.mrb[0].mxu0
  %v2562 = vadd.f32 %v2004, %v2561
  %2563 = vmatprep.mubr.bf16.mxu0 %v676
  %2564 = vmatmul.mubr.bf16.gmra.mrb[0].mxu0 %v675
  %v2565 = vpop.f32.mrb[0].mxu0
  %v2566 = vadd.f32 %v2008, %v2565
  %v2567 = vpop.f32.mrb[0].mxu0
  %v2568 = vadd.f32 %v2010, %v2567
  %v2569 = vpop.f32.mrb[0].mxu0
  %v2570 = vadd.f32 %v2012, %v2569
  %v2571 = vpop.f32.mrb[0].mxu0
  %v2572 = vadd.f32 %v2014, %v2571
  %2573 = vmatprep.mubr.bf16.mxu0 %v678
  %2574 = vmatmul.mubr.bf16.gmra.mrb[0].mxu0 %v677
  %v2575 = vpop.f32.mrb[0].mxu0
  %v2576 = vadd.f32 %v2018, %v2575
  %v2577 = vpop.f32.mrb[0].mxu0
  %v2578 = vadd.f32 %v2020, %v2577
  %v2579 = vpop.f32.mrb[0].mxu0
  %v2580 = vpop.f32.mrb[0].mxu0
  %2581 = vdwg.mxu0
  %2582 = vmatprep.subr.bf16.mxu0 %v1372
  %2583 = vmatpush1.bf16.msra.mxu0 %v1371
  %2584 = vmatprep.subr.bf16.mxu0 %v1385
  %2585 = vmatpush1.bf16.msra.mxu0 %v1384
  %2586 = vmatprep.subr.bf16.mxu0 %v1398
  %2587 = vmatpush1.bf16.msra.mxu0 %v1397
  %2588 = vmatprep.subr.bf16.mxu0 %v1411
  %2589 = vmatpush1.bf16.msra.mxu0 %v1410
  %2590 = vmatprep.subr.bf16.mxu0 %v1424
  %2591 = vmatpush1.bf16.msra.mxu0 %v1423
  %2592 = vmatprep.subr.bf16.mxu0 %v1437
  %2593 = vmatpush1.bf16.msra.mxu0 %v1436
  %2594 = vmatprep.subr.bf16.mxu0 %v1450
  %2595 = vmatpush1.bf16.msra.mxu0 %v1449
  %2596 = vmatprep.subr.bf16.mxu0 %v1463
  %2597 = vmatpush1.bf16.msra.mxu0 %v1462
  %2598 = vmatprep.subr.bf16.mxu0 %v1476
  %2599 = vmatpush1.bf16.msra.mxu0 %v1475
  %2600 = vmatprep.subr.bf16.mxu0 %v1489
  %2601 = vmatpush1.bf16.msra.mxu0 %v1488
  %2602 = vmatprep.subr.bf16.mxu0 %v1502
  %2603 = vmatpush1.bf16.msra.mxu0 %v1501
  %2604 = vmatprep.subr.bf16.mxu0 %v1515
  %2605 = vmatpush1.bf16.msra.mxu0 %v1514
  %2606 = vmatprep.subr.bf16.mxu0 %v1528
  %2607 = vmatpush1.bf16.msra.mxu0 %v1527
  %2608 = vmatprep.subr.bf16.mxu0 %v1541
  %2609 = vmatpush1.bf16.msra.mxu0 %v1540
  %2610 = vmatprep.subr.bf16.mxu0 %v1554
  %2611 = vmatpush1.bf16.msra.mxu0 %v1553
  %2612 = vmatprep.subr.bf16.mxu0 %v1567
  %2613 = vmatpush1.bf16.msra.mxu0 %v1566
  %2614 = vmatprep.mubr.bf16.mxu0 %v670
  %2615 = vmatmul.mubr.bf16.gmra.mrb[0].mxu0 %v669
  %v2616 = vpop.f32.mrb[0].mxu0
  %v2617 = vadd.f32 %v2059, %v2616
  %v2618 = vpop.f32.mrb[0].mxu0
  %v2619 = vadd.f32 %v2061, %v2618
  %v2620 = vpop.f32.mrb[0].mxu0
  %v2621 = vadd.f32 %v2063, %v2620
  %v2622 = vpop.f32.mrb[0].mxu0
  %v2623 = vadd.f32 %v2065, %v2622
  %2624 = vmatprep.mubr.bf16.mxu0 %v672
  %2625 = vmatmul.mubr.bf16.gmra.mrb[0].mxu0 %v671
  %v2626 = vpop.f32.mrb[0].mxu0
  %v2627 = vadd.f32 %v2069, %v2626
  %v2628 = vpop.f32.mrb[0].mxu0
  %v2629 = vadd.f32 %v2071, %v2628
  %v2630 = vpop.f32.mrb[0].mxu0
  %v2631 = vadd.f32 %v2073, %v2630
  %v2632 = vpop.f32.mrb[0].mxu0
  %v2633 = vadd.f32 %v2075, %v2632
  %2634 = vmatprep.mubr.bf16.mxu0 %v674
  %2635 = vmatmul.mubr.bf16.gmra.mrb[0].mxu0 %v673
  %v2636 = vpop.f32.mrb[0].mxu0
  %v2637 = vadd.f32 %v2079, %v2636
  %v2638 = vpop.f32.mrb[0].mxu0
  %v2639 = vadd.f32 %v2081, %v2638
  %v2640 = vpop.f32.mrb[0].mxu0
  %v2641 = vadd.f32 %v2083, %v2640
  %v2642 = vpop.f32.mrb[0].mxu0
  %v2643 = vadd.f32 %v2085, %v2642
  %2644 = vmatprep.mubr.bf16.mxu0 %v676
  %2645 = vmatmul.mubr.bf16.gmra.mrb[0].mxu0 %v675
  %v2646 = vpop.f32.mrb[0].mxu0
  %v2647 = vadd.f32 %v2089, %v2646
  %v2648 = vpop.f32.mrb[0].mxu0
  %v2649 = vadd.f32 %v2091, %v2648
  %v2650 = vpop.f32.mrb[0].mxu0
  %v2651 = vadd.f32 %v2093, %v2650
  %v2652 = vpop.f32.mrb[0].mxu0
  %v2653 = vadd.f32 %v2095, %v2652
  %2654 = vmatprep.mubr.bf16.mxu0 %v678
  %2655 = vmatmul.mubr.bf16.gmra.mrb[0].mxu0 %v677
  %v2656 = vpop.f32.mrb[0].mxu0
  %v2657 = vadd.f32 %v2099, %v2656
  %v2658 = vpop.f32.mrb[0].mxu0
  %v2659 = vadd.f32 %v2101, %v2658
  %v2660 = vpop.f32.mrb[0].mxu0
  %v2661 = vpop.f32.mrb[0].mxu0
  %2662 = vdwg.mxu0
  %2663 = vmatprep.subr.bf16.mxu0 %v1374
  %2664 = vmatpush1.bf16.msra.mxu0 %v1373
  %2665 = vmatprep.subr.bf16.mxu0 %v1387
  %2666 = vmatpush1.bf16.msra.mxu0 %v1386
  %2667 = vmatprep.subr.bf16.mxu0 %v1400
  %2668 = vmatpush1.bf16.msra.mxu0 %v1399
  %2669 = vmatprep.subr.bf16.mxu0 %v1413
  %2670 = vmatpush1.bf16.msra.mxu0 %v1412
  %2671 = vmatprep.subr.bf16.mxu0 %v1426
  %2672 = vmatpush1.bf16.msra.mxu0 %v1425
  %2673 = vmatprep.subr.bf16.mxu0 %v1439
  %2674 = vmatpush1.bf16.msra.mxu0 %v1438
  %2675 = vmatprep.subr.bf16.mxu0 %v1452
  %2676 = vmatpush1.bf16.msra.mxu0 %v1451
  %2677 = vmatprep.subr.bf16.mxu0 %v1465
  %2678 = vmatpush1.bf16.msra.mxu0 %v1464
  %2679 = vmatprep.subr.bf16.mxu0 %v1478
  %2680 = vmatpush1.bf16.msra.mxu0 %v1477
  %2681 = vmatprep.subr.bf16.mxu0 %v1491
  %2682 = vmatpush1.bf16.msra.mxu0 %v1490
  %2683 = vmatprep.subr.bf16.mxu0 %v1504
  %2684 = vmatpush1.bf16.msra.mxu0 %v1503
  %2685 = vmatprep.subr.bf16.mxu0 %v1517
  %2686 = vmatpush1.bf16.msra.mxu0 %v1516
  %2687 = vmatprep.subr.bf16.mxu0 %v1530
  %2688 = vmatpush1.bf16.msra.mxu0 %v1529
  %2689 = vmatprep.subr.bf16.mxu0 %v1543
  %2690 = vmatpush1.bf16.msra.mxu0 %v1542
  %2691 = vmatprep.subr.bf16.mxu0 %v1556
  %2692 = vmatpush1.bf16.msra.mxu0 %v1555
  %2693 = vmatprep.subr.bf16.mxu0 %v1569
  %2694 = vmatpush1.bf16.msra.mxu0 %v1568
  %2695 = vmatprep.mubr.bf16.mxu0 %v670
  %2696 = vmatmul.mubr.bf16.gmra.mrb[0].mxu0 %v669
  %v2697 = vpop.f32.mrb[0].mxu0
  %v2698 = vadd.f32 %v2140, %v2697
  %v2699 = vpop.f32.mrb[0].mxu0
  %v2700 = vadd.f32 %v2142, %v2699
  %v2701 = vpop.f32.mrb[0].mxu0
  %v2702 = vadd.f32 %v2144, %v2701
  %v2703 = vpop.f32.mrb[0].mxu0
  %v2704 = vadd.f32 %v2146, %v2703
  %2705 = vmatprep.mubr.bf16.mxu0 %v672
  %2706 = vmatmul.mubr.bf16.gmra.mrb[0].mxu0 %v671
  %v2707 = vpop.f32.mrb[0].mxu0
  %v2708 = vadd.f32 %v2150, %v2707
  %v2709 = vpop.f32.mrb[0].mxu0
  %v2710 = vadd.f32 %v2152, %v2709
  %v2711 = vpop.f32.mrb[0].mxu0
  %v2712 = vadd.f32 %v2154, %v2711
  %v2713 = vpop.f32.mrb[0].mxu0
  %v2714 = vadd.f32 %v2156, %v2713
  %2715 = vmatprep.mubr.bf16.mxu0 %v674
  %2716 = vmatmul.mubr.bf16.gmra.mrb[0].mxu0 %v673
  %v2717 = vpop.f32.mrb[0].mxu0
  %v2718 = vadd.f32 %v2160, %v2717
  %v2719 = vpop.f32.mrb[0].mxu0
  %v2720 = vadd.f32 %v2162, %v2719
  %v2721 = vpop.f32.mrb[0].mxu0
  %v2722 = vadd.f32 %v2164, %v2721
  %v2723 = vpop.f32.mrb[0].mxu0
  %v2724 = vadd.f32 %v2166, %v2723
  %2725 = vmatprep.mubr.bf16.mxu0 %v676
  %2726 = vmatmul.mubr.bf16.gmra.mrb[0].mxu0 %v675
  %v2727 = vpop.f32.mrb[0].mxu0
  %v2728 = vadd.f32 %v2170, %v2727
  %v2729 = vpop.f32.mrb[0].mxu0
  %v2730 = vadd.f32 %v2172, %v2729
  %v2731 = vpop.f32.mrb[0].mxu0
  %v2732 = vadd.f32 %v2174, %v2731
  %v2733 = vpop.f32.mrb[0].mxu0
  %v2734 = vadd.f32 %v2176, %v2733
  %2735 = vmatprep.mubr.bf16.mxu0 %v678
  %2736 = vmatmul.mubr.bf16.gmra.mrb[0].mxu0 %v677
  %v2737 = vpop.f32.mrb[0].mxu0
  %v2738 = vadd.f32 %v2180, %v2737
  %v2739 = vpop.f32.mrb[0].mxu0
  %v2740 = vadd.f32 %v2182, %v2739
  %v2741 = vpop.f32.mrb[0].mxu0
  %v2742 = vpop.f32.mrb[0].mxu0
  %2743 = vdwg.mxu0
  %2744 = vmatprep.subr.bf16.mxu0 %v1376
  %2745 = vmatpush1.bf16.msra.mxu0 %v1375
  %2746 = vmatprep.subr.bf16.mxu0 %v1389
  %2747 = vmatpush1.bf16.msra.mxu0 %v1388
  %2748 = vmatprep.subr.bf16.mxu0 %v1402
  %2749 = vmatpush1.bf16.msra.mxu0 %v1401
  %2750 = vmatprep.subr.bf16.mxu0 %v1415
  %2751 = vmatpush1.bf16.msra.mxu0 %v1414
  %2752 = vmatprep.subr.bf16.mxu0 %v1428
  %2753 = vmatpush1.bf16.msra.mxu0 %v1427
  %2754 = vmatprep.subr.bf16.mxu0 %v1441
  %2755 = vmatpush1.bf16.msra.mxu0 %v1440
  %2756 = vmatprep.subr.bf16.mxu0 %v1454
  %2757 = vmatpush1.bf16.msra.mxu0 %v1453
  %2758 = vmatprep.subr.bf16.mxu0 %v1467
  %2759 = vmatpush1.bf16.msra.mxu0 %v1466
  %2760 = vmatprep.subr.bf16.mxu0 %v1480
  %2761 = vmatpush1.bf16.msra.mxu0 %v1479
  %2762 = vmatprep.subr.bf16.mxu0 %v1493
  %2763 = vmatpush1.bf16.msra.mxu0 %v1492
  %2764 = vmatprep.subr.bf16.mxu0 %v1506
  %2765 = vmatpush1.bf16.msra.mxu0 %v1505
  %2766 = vmatprep.subr.bf16.mxu0 %v1519
  %2767 = vmatpush1.bf16.msra.mxu0 %v1518
  %2768 = vmatprep.subr.bf16.mxu0 %v1532
  %2769 = vmatpush1.bf16.msra.mxu0 %v1531
  %2770 = vmatprep.subr.bf16.mxu0 %v1545
  %2771 = vmatpush1.bf16.msra.mxu0 %v1544
  %2772 = vmatprep.subr.bf16.mxu0 %v1558
  %2773 = vmatpush1.bf16.msra.mxu0 %v1557
  %2774 = vmatprep.subr.bf16.mxu0 %v1571
  %2775 = vmatpush1.bf16.msra.mxu0 %v1570
  %2776 = vmatprep.mubr.bf16.mxu0 %v670
  %2777 = vmatmul.mubr.bf16.gmra.mrb[0].mxu0 %v669
  %v2778 = vpop.f32.mrb[0].mxu0
  %v2779 = vadd.f32 %v2221, %v2778
  %v2780 = vpop.f32.mrb[0].mxu0
  %v2781 = vadd.f32 %v2223, %v2780
  %v2782 = vpop.f32.mrb[0].mxu0
  %v2783 = vadd.f32 %v2225, %v2782
  %v2784 = vpop.f32.mrb[0].mxu0
  %v2785 = vadd.f32 %v2227, %v2784
  %2786 = vmatprep.mubr.bf16.mxu0 %v672
  %2787 = vmatmul.mubr.bf16.gmra.mrb[0].mxu0 %v671
  %v2788 = vpop.f32.mrb[0].mxu0
  %v2789 = vadd.f32 %v2231, %v2788
  %v2790 = vpop.f32.mrb[0].mxu0
  %v2791 = vadd.f32 %v2233, %v2790
  %v2792 = vpop.f32.mrb[0].mxu0
  %v2793 = vadd.f32 %v2235, %v2792
  %v2794 = vpop.f32.mrb[0].mxu0
  %v2795 = vadd.f32 %v2237, %v2794
  %2796 = vmatprep.mubr.bf16.mxu0 %v674
  %2797 = vmatmul.mubr.bf16.gmra.mrb[0].mxu0 %v673
  %v2798 = vpop.f32.mrb[0].mxu0
  %v2799 = vadd.f32 %v2241, %v2798
  %v2800 = vpop.f32.mrb[0].mxu0
  %v2801 = vadd.f32 %v2243, %v2800
  %v2802 = vpop.f32.mrb[0].mxu0
  %v2803 = vadd.f32 %v2245, %v2802
  %v2804 = vpop.f32.mrb[0].mxu0
  %v2805 = vadd.f32 %v2247, %v2804
  %2806 = vmatprep.mubr.bf16.mxu0 %v676
  %2807 = vmatmul.mubr.bf16.gmra.mrb[0].mxu0 %v675
  %v2808 = vpop.f32.mrb[0].mxu0
  %v2809 = vadd.f32 %v2251, %v2808
  %v2810 = vpop.f32.mrb[0].mxu0
  %v2811 = vadd.f32 %v2253, %v2810
  %v2812 = vpop.f32.mrb[0].mxu0
  %v2813 = vadd.f32 %v2255, %v2812
  %v2814 = vpop.f32.mrb[0].mxu0
  %v2815 = vadd.f32 %v2257, %v2814
  %2816 = vmatprep.mubr.bf16.mxu0 %v678
  %2817 = vmatmul.mubr.bf16.gmra.mrb[0].mxu0 %v677
  %v2818 = vpop.f32.mrb[0].mxu0
  %v2819 = vadd.f32 %v2261, %v2818
  %v2820 = vpop.f32.mrb[0].mxu0
  %v2821 = vadd.f32 %v2263, %v2820
  %v2822 = vpop.f32.mrb[0].mxu0
  %v2823 = vpop.f32.mrb[0].mxu0
  %2824 = vdwg.mxu0
  %2825 = vmatprep.subr.bf16.mxu0 0
  %2826 = vmatpush1.bf16.msra.mxu0 %v1377
  %2827 = vmatprep.subr.bf16.mxu0 0
  %2828 = vmatpush1.bf16.msra.mxu0 %v1390
  %2829 = vmatprep.subr.bf16.mxu0 0
  %2830 = vmatpush1.bf16.msra.mxu0 %v1403
  %2831 = vmatprep.subr.bf16.mxu0 0
  %2832 = vmatpush1.bf16.msra.mxu0 %v1416
  %2833 = vmatprep.subr.bf16.mxu0 0
  %2834 = vmatpush1.bf16.msra.mxu0 %v1429
  %2835 = vmatprep.subr.bf16.mxu0 0
  %2836 = vmatpush1.bf16.msra.mxu0 %v1442
  %2837 = vmatprep.subr.bf16.mxu0 0
  %2838 = vmatpush1.bf16.msra.mxu0 %v1455
  %2839 = vmatprep.subr.bf16.mxu0 0
  %2840 = vmatpush1.bf16.msra.mxu0 %v1468
  %2841 = vmatprep.subr.bf16.mxu0 0
  %2842 = vmatpush1.bf16.msra.mxu0 %v1481
  %2843 = vmatprep.subr.bf16.mxu0 0
  %2844 = vmatpush1.bf16.msra.mxu0 %v1494
  %2845 = vmatprep.subr.bf16.mxu0 0
  %2846 = vmatpush1.bf16.msra.mxu0 %v1507
  %2847 = vmatprep.subr.bf16.mxu0 0
  %2848 = vmatpush1.bf16.msra.mxu0 %v1520
  %2849 = vmatprep.subr.bf16.mxu0 0
  %2850 = vmatpush1.bf16.msra.mxu0 %v1533
  %2851 = vmatprep.subr.bf16.mxu0 0
  %2852 = vmatpush1.bf16.msra.mxu0 %v1546
  %2853 = vmatprep.subr.bf16.mxu0 0
  %2854 = vmatpush1.bf16.msra.mxu0 %v1559
  %2855 = vmatprep.subr.bf16.mxu0 0
  %2856 = vmatpush1.bf16.msra.mxu0 %v1572
  %2857 = vmatprep.mubr.bf16.mxu0 %v670
  %2858 = vmatmul.mubr.bf16.gmra.mrb[0].mxu0 %v669
  %v2859 = vpop.f32.mrb[0].mxu0
  %v2860 = vadd.f32 %v2302, %v2859
  %v2861 = vpop.f32.mrb[0].mxu0
  %v2862 = vpop.f32.mrb[0].mxu0
  %v2863 = vadd.f32 %v2305, %v2862
  %v2864 = vpop.f32.mrb[0].mxu0
  %2865 = vmatprep.mubr.bf16.mxu0 %v672
  %2866 = vmatmul.mubr.bf16.gmra.mrb[0].mxu0 %v671
  %v2867 = vpop.f32.mrb[0].mxu0
  %v2868 = vadd.f32 %v2310, %v2867
  %v2869 = vpop.f32.mrb[0].mxu0
  %v2870 = vpop.f32.mrb[0].mxu0
  %v2871 = vadd.f32 %v2313, %v2870
  %v2872 = vpop.f32.mrb[0].mxu0
  %2873 = vmatprep.mubr.bf16.mxu0 %v674
  %2874 = vmatmul.mubr.bf16.gmra.mrb[0].mxu0 %v673
  %v2875 = vpop.f32.mrb[0].mxu0
  %v2876 = vadd.f32 %v2318, %v2875
  %v2877 = vpop.f32.mrb[0].mxu0
  %v2878 = vpop.f32.mrb[0].mxu0
  %v2879 = vadd.f32 %v2321, %v2878
  %v2880 = vpop.f32.mrb[0].mxu0
  %2881 = vmatprep.mubr.bf16.mxu0 %v676
  %2882 = vmatmul.mubr.bf16.gmra.mrb[0].mxu0 %v675
  %v2883 = vpop.f32.mrb[0].mxu0
  %v2884 = vadd.f32 %v2326, %v2883
  %v2885 = vpop.f32.mrb[0].mxu0
  %v2886 = vpop.f32.mrb[0].mxu0
  %v2887 = vadd.f32 %v2329, %v2886
  %v2888 = vpop.f32.mrb[0].mxu0
  %2889 = vmatprep.mubr.bf16.mxu0 %v678
  %2890 = vmatmul.mubr.bf16.gmra.mrb[0].mxu0 %v677
  %v2891 = vpop.f32.mrb[0].mxu0
  %v2892 = vadd.f32 %v2334, %v2891
  %v2893 = vpop.f32.mrb[0].mxu0
  %v2894 = vpop.f32.mrb[0].mxu0
  %v2895 = vpop.f32.mrb[0].mxu0
  %2896 = vdwg.mxu0
  %v2897 = vld [vmem:[%s3] sm:$0xff]
  %v2898 = vld [vmem:[%s3 + $0x8] sm:$0xff]
  %v2899 = vld [vmem:[%s3 + $0x10] sm:$0xff]
  %v2900 = vld [vmem:[%s3 + $0x18] sm:$0xff]
  %v2901 = vld [vmem:[%s3 + $0x20] sm:$0xff]
  %v2902 = vld [vmem:[%s3 + $0x28] sm:$0xff]
  %v2903 = vld [vmem:[%s3 + $0x30] sm:$0xff]
  %v2904 = vld [vmem:[%s3 + $0x38] sm:$0xff]
  %v2905 = vld [vmem:[%s3 + $0x40] sm:$0xff]
  %2907 = vset.pattern.permute.xlu0 0
  %2908 = vperm.xlu0 %2907, %v2897
  %v2909 = vpop.permute.xlu0 %2908
  %2912 = vset.pattern.permute.xlu0 0
  %2913 = vperm.xlu0 %2912, %v2898
  %v2914 = vpop.permute.xlu0 %2913
  %2917 = vset.pattern.permute.xlu0 0
  %2918 = vperm.xlu0 %2917, %v2899
  %v2919 = vpop.permute.xlu0 %2918
  %2922 = vset.pattern.permute.xlu0 0
  %2923 = vperm.xlu0 %2922, %v2900
  %v2924 = vpop.permute.xlu0 %2923
  %2927 = vset.pattern.permute.xlu0 0
  %2928 = vperm.xlu0 %2927, %v2901
  %v2929 = vpop.permute.xlu0 %2928
  %2932 = vset.pattern.permute.xlu0 0
  %2933 = vperm.xlu0 %2932, %v2902
  %v2934 = vpop.permute.xlu0 %2933
  %2937 = vset.pattern.permute.xlu0 0
  %2938 = vperm.xlu0 %2937, %v2903
  %v2939 = vpop.permute.xlu0 %2938
  %2942 = vset.pattern.permute.xlu0 0
  %2943 = vperm.xlu0 %2942, %v2904
  %v2944 = vpop.permute.xlu0 %2943
  %2947 = vset.pattern.permute.xlu0 0
  %2948 = vperm.xlu0 %2947, %v2905
  %v2949 = vpop.permute.xlu0 %2948
  %v2951 = vmul.f32 %v2374, %v2909
  %v2952 = vmul.f32 %v2378, %v2914
  %v2953 = vmul.f32 %v2384, %v2919
  %v2954 = vmul.f32 %v2388, %v2924
  %v2955 = vmul.f32 %v2394, %v2929
  %v2956 = vmul.f32 %v2398, %v2934
  %v2957 = vmul.f32 %v2404, %v2939
  %v2958 = vmul.f32 %v2408, %v2944
  %v2959 = vmul.f32 %v2414, %v2949
  %v2960 = vadd.f32 %v2951, 0.0
  %v2961 = vadd.f32 %v2952, 0.0
  %v2962 = vadd.f32 %v2953, 0.0
  %v2963 = vadd.f32 %v2954, 0.0
  %v2964 = vadd.f32 %v2955, 0.0
  %v2965 = vadd.f32 %v2956, 0.0
  %v2966 = vadd.f32 %v2957, 0.0
  %v2967 = vadd.f32 %v2958, 0.0
  %v2968 = vadd.f32 %v2959, 0.0
  %2969 = vset.pattern.permute.xlu0 1
  %2970 = vperm.xlu0 %2969, %v2897
  %v2971 = vpop.permute.xlu0 %2970
  %2973 = vset.pattern.permute.xlu0 1
  %2974 = vperm.xlu0 %2973, %v2898
  %v2975 = vpop.permute.xlu0 %2974
  %2977 = vset.pattern.permute.xlu0 1
  %2978 = vperm.xlu0 %2977, %v2899
  %v2979 = vpop.permute.xlu0 %2978
  %2981 = vset.pattern.permute.xlu0 1
  %2982 = vperm.xlu0 %2981, %v2900
  %v2983 = vpop.permute.xlu0 %2982
  %2985 = vset.pattern.permute.xlu0 1
  %2986 = vperm.xlu0 %2985, %v2901
  %v2987 = vpop.permute.xlu0 %2986
  %2989 = vset.pattern.permute.xlu0 1
  %2990 = vperm.xlu0 %2989, %v2902
  %v2991 = vpop.permute.xlu0 %2990
  %2993 = vset.pattern.permute.xlu0 1
  %2994 = vperm.xlu0 %2993, %v2903
  %v2995 = vpop.permute.xlu0 %2994
  %2997 = vset.pattern.permute.xlu0 1
  %2998 = vperm.xlu0 %2997, %v2904
  %v2999 = vpop.permute.xlu0 %2998
  %3001 = vset.pattern.permute.xlu0 1
  %3002 = vperm.xlu0 %3001, %v2905
  %v3003 = vpop.permute.xlu0 %3002
  %v3005 = vmul.f32 %v2374, %v2971
  %v3006 = vmul.f32 %v2378, %v2975
  %v3007 = vmul.f32 %v2384, %v2979
  %v3008 = vmul.f32 %v2388, %v2983
  %v3009 = vmul.f32 %v2394, %v2987
  %v3010 = vmul.f32 %v2398, %v2991
  %v3011 = vmul.f32 %v2404, %v2995
  %v3012 = vmul.f32 %v2408, %v2999
  %v3013 = vmul.f32 %v2414, %v3003
  %3023 = vrot.lane.b32.xlu0 %v3005, 64
  %v3024 = vpop.permute.xlu0 %3023
  %3025 = vrot.lane.b32.xlu0 %v3006, 64
  %v3026 = vpop.permute.xlu0 %3025
  %3027 = vrot.lane.b32.xlu0 %v3007, 64
  %v3028 = vpop.permute.xlu0 %3027
  %3029 = vrot.lane.b32.xlu0 %v3008, 64
  %v3030 = vpop.permute.xlu0 %3029
  %3031 = vrot.lane.b32.xlu0 %v3009, 64
  %v3032 = vpop.permute.xlu0 %3031
  %3033 = vrot.lane.b32.xlu0 %v3010, 64
  %v3034 = vpop.permute.xlu0 %3033
  %3035 = vrot.lane.b32.xlu0 %v3011, 64
  %v3036 = vpop.permute.xlu0 %3035
  %3037 = vrot.lane.b32.xlu0 %v3012, 64
  %v3038 = vpop.permute.xlu0 %3037
  %3039 = vrot.lane.b32.xlu0 %v3013, 64
  %v3040 = vpop.permute.xlu0 %3039
  %v3050 = vadd.f32 %v2960, %v3024
  %v3051 = vadd.f32 %v2961, %v3026
  %v3052 = vadd.f32 %v2962, %v3028
  %v3053 = vadd.f32 %v2963, %v3030
  %v3054 = vadd.f32 %v2964, %v3032
  %v3055 = vadd.f32 %v2965, %v3034
  %v3056 = vadd.f32 %v2966, %v3036
  %v3057 = vadd.f32 %v2967, %v3038
  %v3058 = vadd.f32 %v2968, %v3040
  %3059 = vset.pattern.permute.xlu0 2
  %3060 = vperm.xlu0 %3059, %v2897
  %v3061 = vpop.permute.xlu0 %3060
  %3063 = vset.pattern.permute.xlu0 2
  %3064 = vperm.xlu0 %3063, %v2898
  %v3065 = vpop.permute.xlu0 %3064
  %3067 = vset.pattern.permute.xlu0 2
  %3068 = vperm.xlu0 %3067, %v2899
  %v3069 = vpop.permute.xlu0 %3068
  %3071 = vset.pattern.permute.xlu0 2
  %3072 = vperm.xlu0 %3071, %v2900
  %v3073 = vpop.permute.xlu0 %3072
  %3075 = vset.pattern.permute.xlu0 2
  %3076 = vperm.xlu0 %3075, %v2901
  %v3077 = vpop.permute.xlu0 %3076
  %3079 = vset.pattern.permute.xlu0 2
  %3080 = vperm.xlu0 %3079, %v2902
  %v3081 = vpop.permute.xlu0 %3080
  %3083 = vset.pattern.permute.xlu0 2
  %3084 = vperm.xlu0 %3083, %v2903
  %v3085 = vpop.permute.xlu0 %3084
  %3087 = vset.pattern.permute.xlu0 2
  %3088 = vperm.xlu0 %3087, %v2904
  %v3089 = vpop.permute.xlu0 %3088
  %3091 = vset.pattern.permute.xlu0 2
  %3092 = vperm.xlu0 %3091, %v2905
  %v3093 = vpop.permute.xlu0 %3092
  %v3095 = vmul.f32 %v2376, %v3061
  %v3096 = vmul.f32 %v2380, %v3065
  %v3097 = vmul.f32 %v2386, %v3069
  %v3098 = vmul.f32 %v2390, %v3073
  %v3099 = vmul.f32 %v2396, %v3077
  %v3100 = vmul.f32 %v2400, %v3081
  %v3101 = vmul.f32 %v2406, %v3085
  %v3102 = vmul.f32 %v2410, %v3089
  %v3103 = vmul.f32 %v2416, %v3093
  %v3104 = vadd.f32 %v3050, %v3095
  %v3105 = vadd.f32 %v3051, %v3096
  %v3106 = vadd.f32 %v3052, %v3097
  %v3107 = vadd.f32 %v3053, %v3098
  %v3108 = vadd.f32 %v3054, %v3099
  %v3109 = vadd.f32 %v3055, %v3100
  %v3110 = vadd.f32 %v3056, %v3101
  %v3111 = vadd.f32 %v3057, %v3102
  %v3112 = vadd.f32 %v3058, %v3103
  %3113 = vset.pattern.permute.xlu0 3
  %3114 = vperm.xlu0 %3113, %v2897
  %v3115 = vpop.permute.xlu0 %3114
  %3117 = vset.pattern.permute.xlu0 3
  %3118 = vperm.xlu0 %3117, %v2898
  %v3119 = vpop.permute.xlu0 %3118
  %3121 = vset.pattern.permute.xlu0 3
  %3122 = vperm.xlu0 %3121, %v2899
  %v3123 = vpop.permute.xlu0 %3122
  %3125 = vset.pattern.permute.xlu0 3
  %3126 = vperm.xlu0 %3125, %v2900
  %v3127 = vpop.permute.xlu0 %3126
  %3129 = vset.pattern.permute.xlu0 3
  %3130 = vperm.xlu0 %3129, %v2901
  %v3131 = vpop.permute.xlu0 %3130
  %3133 = vset.pattern.permute.xlu0 3
  %3134 = vperm.xlu0 %3133, %v2902
  %v3135 = vpop.permute.xlu0 %3134
  %3137 = vset.pattern.permute.xlu0 3
  %3138 = vperm.xlu0 %3137, %v2903
  %v3139 = vpop.permute.xlu0 %3138
  %3141 = vset.pattern.permute.xlu0 3
  %3142 = vperm.xlu0 %3141, %v2904
  %v3143 = vpop.permute.xlu0 %3142
  %3145 = vset.pattern.permute.xlu0 3
  %3146 = vperm.xlu0 %3145, %v2905
  %v3147 = vpop.permute.xlu0 %3146
  %v3149 = vmul.f32 %v2376, %v3115
  %v3150 = vmul.f32 %v2380, %v3119
  %v3151 = vmul.f32 %v2386, %v3123
  %v3152 = vmul.f32 %v2390, %v3127
  %v3153 = vmul.f32 %v2396, %v3131
  %v3154 = vmul.f32 %v2400, %v3135
  %v3155 = vmul.f32 %v2406, %v3139
  %v3156 = vmul.f32 %v2410, %v3143
  %v3157 = vmul.f32 %v2416, %v3147
  %3167 = vrot.lane.b32.xlu0 %v3149, 64
  %v3168 = vpop.permute.xlu0 %3167
  %3169 = vrot.lane.b32.xlu0 %v3150, 64
  %v3170 = vpop.permute.xlu0 %3169
  %3171 = vrot.lane.b32.xlu0 %v3151, 64
  %v3172 = vpop.permute.xlu0 %3171
  %3173 = vrot.lane.b32.xlu0 %v3152, 64
  %v3174 = vpop.permute.xlu0 %3173
  %3175 = vrot.lane.b32.xlu0 %v3153, 64
  %v3176 = vpop.permute.xlu0 %3175
  %3177 = vrot.lane.b32.xlu0 %v3154, 64
  %v3178 = vpop.permute.xlu0 %3177
  %3179 = vrot.lane.b32.xlu0 %v3155, 64
  %v3180 = vpop.permute.xlu0 %3179
  %3181 = vrot.lane.b32.xlu0 %v3156, 64
  %v3182 = vpop.permute.xlu0 %3181
  %3183 = vrot.lane.b32.xlu0 %v3157, 64
  %v3184 = vpop.permute.xlu0 %3183
  %v3194 = vadd.f32 %v3104, %v3168
  %v3195 = vadd.f32 %v3105, %v3170
  %v3196 = vadd.f32 %v3106, %v3172
  %v3197 = vadd.f32 %v3107, %v3174
  %v3198 = vadd.f32 %v3108, %v3176
  %v3199 = vadd.f32 %v3109, %v3178
  %v3200 = vadd.f32 %v3110, %v3180
  %v3201 = vadd.f32 %v3111, %v3182
  %v3202 = vadd.f32 %v3112, %v3184
  %3203 = vset.pattern.permute.xlu0 4
  %3204 = vperm.xlu0 %3203, %v2897
  %v3205 = vpop.permute.xlu0 %3204
  %3207 = vset.pattern.permute.xlu0 4
  %3208 = vperm.xlu0 %3207, %v2898
  %v3209 = vpop.permute.xlu0 %3208
  %3211 = vset.pattern.permute.xlu0 4
  %3212 = vperm.xlu0 %3211, %v2899
  %v3213 = vpop.permute.xlu0 %3212
  %3215 = vset.pattern.permute.xlu0 4
  %3216 = vperm.xlu0 %3215, %v2900
  %v3217 = vpop.permute.xlu0 %3216
  %3219 = vset.pattern.permute.xlu0 4
  %3220 = vperm.xlu0 %3219, %v2901
  %v3221 = vpop.permute.xlu0 %3220
  %3223 = vset.pattern.permute.xlu0 4
  %3224 = vperm.xlu0 %3223, %v2902
  %v3225 = vpop.permute.xlu0 %3224
  %3227 = vset.pattern.permute.xlu0 4
  %3228 = vperm.xlu0 %3227, %v2903
  %v3229 = vpop.permute.xlu0 %3228
  %3231 = vset.pattern.permute.xlu0 4
  %3232 = vperm.xlu0 %3231, %v2904
  %v3233 = vpop.permute.xlu0 %3232
  %3235 = vset.pattern.permute.xlu0 4
  %3236 = vperm.xlu0 %3235, %v2905
  %v3237 = vpop.permute.xlu0 %3236
  %v3239 = vmul.f32 %v2455, %v3205
  %v3240 = vmul.f32 %v2459, %v3209
  %v3241 = vmul.f32 %v2465, %v3213
  %v3242 = vmul.f32 %v2469, %v3217
  %v3243 = vmul.f32 %v2475, %v3221
  %v3244 = vmul.f32 %v2479, %v3225
  %v3245 = vmul.f32 %v2485, %v3229
  %v3246 = vmul.f32 %v2489, %v3233
  %v3247 = vmul.f32 %v2495, %v3237
  %v3248 = vadd.f32 %v3194, %v3239
  %v3249 = vadd.f32 %v3195, %v3240
  %v3250 = vadd.f32 %v3196, %v3241
  %v3251 = vadd.f32 %v3197, %v3242
  %v3252 = vadd.f32 %v3198, %v3243
  %v3253 = vadd.f32 %v3199, %v3244
  %v3254 = vadd.f32 %v3200, %v3245
  %v3255 = vadd.f32 %v3201, %v3246
  %v3256 = vadd.f32 %v3202, %v3247
  %3257 = vset.pattern.permute.xlu0 5
  %3258 = vperm.xlu0 %3257, %v2897
  %v3259 = vpop.permute.xlu0 %3258
  %3261 = vset.pattern.permute.xlu0 5
  %3262 = vperm.xlu0 %3261, %v2898
  %v3263 = vpop.permute.xlu0 %3262
  %3265 = vset.pattern.permute.xlu0 5
  %3266 = vperm.xlu0 %3265, %v2899
  %v3267 = vpop.permute.xlu0 %3266
  %3269 = vset.pattern.permute.xlu0 5
  %3270 = vperm.xlu0 %3269, %v2900
  %v3271 = vpop.permute.xlu0 %3270
  %3273 = vset.pattern.permute.xlu0 5
  %3274 = vperm.xlu0 %3273, %v2901
  %v3275 = vpop.permute.xlu0 %3274
  %3277 = vset.pattern.permute.xlu0 5
  %3278 = vperm.xlu0 %3277, %v2902
  %v3279 = vpop.permute.xlu0 %3278
  %3281 = vset.pattern.permute.xlu0 5
  %3282 = vperm.xlu0 %3281, %v2903
  %v3283 = vpop.permute.xlu0 %3282
  %3285 = vset.pattern.permute.xlu0 5
  %3286 = vperm.xlu0 %3285, %v2904
  %v3287 = vpop.permute.xlu0 %3286
  %3289 = vset.pattern.permute.xlu0 5
  %3290 = vperm.xlu0 %3289, %v2905
  %v3291 = vpop.permute.xlu0 %3290
  %v3293 = vmul.f32 %v2455, %v3259
  %v3294 = vmul.f32 %v2459, %v3263
  %v3295 = vmul.f32 %v2465, %v3267
  %v3296 = vmul.f32 %v2469, %v3271
  %v3297 = vmul.f32 %v2475, %v3275
  %v3298 = vmul.f32 %v2479, %v3279
  %v3299 = vmul.f32 %v2485, %v3283
  %v3300 = vmul.f32 %v2489, %v3287
  %v3301 = vmul.f32 %v2495, %v3291
  %3311 = vrot.lane.b32.xlu0 %v3293, 64
  %v3312 = vpop.permute.xlu0 %3311
  %3313 = vrot.lane.b32.xlu0 %v3294, 64
  %v3314 = vpop.permute.xlu0 %3313
  %3315 = vrot.lane.b32.xlu0 %v3295, 64
  %v3316 = vpop.permute.xlu0 %3315
  %3317 = vrot.lane.b32.xlu0 %v3296, 64
  %v3318 = vpop.permute.xlu0 %3317
  %3319 = vrot.lane.b32.xlu0 %v3297, 64
  %v3320 = vpop.permute.xlu0 %3319
  %3321 = vrot.lane.b32.xlu0 %v3298, 64
  %v3322 = vpop.permute.xlu0 %3321
  %3323 = vrot.lane.b32.xlu0 %v3299, 64
  %v3324 = vpop.permute.xlu0 %3323
  %3325 = vrot.lane.b32.xlu0 %v3300, 64
  %v3326 = vpop.permute.xlu0 %3325
  %3327 = vrot.lane.b32.xlu0 %v3301, 64
  %v3328 = vpop.permute.xlu0 %3327
  %v3338 = vadd.f32 %v3248, %v3312
  %v3339 = vadd.f32 %v3249, %v3314
  %v3340 = vadd.f32 %v3250, %v3316
  %v3341 = vadd.f32 %v3251, %v3318
  %v3342 = vadd.f32 %v3252, %v3320
  %v3343 = vadd.f32 %v3253, %v3322
  %v3344 = vadd.f32 %v3254, %v3324
  %v3345 = vadd.f32 %v3255, %v3326
  %v3346 = vadd.f32 %v3256, %v3328
  %3347 = vset.pattern.permute.xlu0 6
  %3348 = vperm.xlu0 %3347, %v2897
  %v3349 = vpop.permute.xlu0 %3348
  %3351 = vset.pattern.permute.xlu0 6
  %3352 = vperm.xlu0 %3351, %v2898
  %v3353 = vpop.permute.xlu0 %3352
  %3355 = vset.pattern.permute.xlu0 6
  %3356 = vperm.xlu0 %3355, %v2899
  %v3357 = vpop.permute.xlu0 %3356
  %3359 = vset.pattern.permute.xlu0 6
  %3360 = vperm.xlu0 %3359, %v2900
  %v3361 = vpop.permute.xlu0 %3360
  %3363 = vset.pattern.permute.xlu0 6
  %3364 = vperm.xlu0 %3363, %v2901
  %v3365 = vpop.permute.xlu0 %3364
  %3367 = vset.pattern.permute.xlu0 6
  %3368 = vperm.xlu0 %3367, %v2902
  %v3369 = vpop.permute.xlu0 %3368
  %3371 = vset.pattern.permute.xlu0 6
  %3372 = vperm.xlu0 %3371, %v2903
  %v3373 = vpop.permute.xlu0 %3372
  %3375 = vset.pattern.permute.xlu0 6
  %3376 = vperm.xlu0 %3375, %v2904
  %v3377 = vpop.permute.xlu0 %3376
  %3379 = vset.pattern.permute.xlu0 6
  %3380 = vperm.xlu0 %3379, %v2905
  %v3381 = vpop.permute.xlu0 %3380
  %v3383 = vmul.f32 %v2457, %v3349
  %v3384 = vmul.f32 %v2461, %v3353
  %v3385 = vmul.f32 %v2467, %v3357
  %v3386 = vmul.f32 %v2471, %v3361
  %v3387 = vmul.f32 %v2477, %v3365
  %v3388 = vmul.f32 %v2481, %v3369
  %v3389 = vmul.f32 %v2487, %v3373
  %v3390 = vmul.f32 %v2491, %v3377
  %v3391 = vmul.f32 %v2497, %v3381
  %v3392 = vadd.f32 %v3338, %v3383
  %v3393 = vadd.f32 %v3339, %v3384
  %v3394 = vadd.f32 %v3340, %v3385
  %v3395 = vadd.f32 %v3341, %v3386
  %v3396 = vadd.f32 %v3342, %v3387
  %v3397 = vadd.f32 %v3343, %v3388
  %v3398 = vadd.f32 %v3344, %v3389
  %v3399 = vadd.f32 %v3345, %v3390
  %v3400 = vadd.f32 %v3346, %v3391
  %3401 = vset.pattern.permute.xlu0 7
  %3402 = vperm.xlu0 %3401, %v2897
  %v3403 = vpop.permute.xlu0 %3402
  %3405 = vset.pattern.permute.xlu0 7
  %3406 = vperm.xlu0 %3405, %v2898
  %v3407 = vpop.permute.xlu0 %3406
  %3409 = vset.pattern.permute.xlu0 7
  %3410 = vperm.xlu0 %3409, %v2899
  %v3411 = vpop.permute.xlu0 %3410
  %3413 = vset.pattern.permute.xlu0 7
  %3414 = vperm.xlu0 %3413, %v2900
  %v3415 = vpop.permute.xlu0 %3414
  %3417 = vset.pattern.permute.xlu0 7
  %3418 = vperm.xlu0 %3417, %v2901
  %v3419 = vpop.permute.xlu0 %3418
  %3421 = vset.pattern.permute.xlu0 7
  %3422 = vperm.xlu0 %3421, %v2902
  %v3423 = vpop.permute.xlu0 %3422
  %3425 = vset.pattern.permute.xlu0 7
  %3426 = vperm.xlu0 %3425, %v2903
  %v3427 = vpop.permute.xlu0 %3426
  %3429 = vset.pattern.permute.xlu0 7
  %3430 = vperm.xlu0 %3429, %v2904
  %v3431 = vpop.permute.xlu0 %3430
  %3433 = vset.pattern.permute.xlu0 7
  %3434 = vperm.xlu0 %3433, %v2905
  %v3435 = vpop.permute.xlu0 %3434
  %v3437 = vmul.f32 %v2457, %v3403
  %v3438 = vmul.f32 %v2461, %v3407
  %v3439 = vmul.f32 %v2467, %v3411
  %v3440 = vmul.f32 %v2471, %v3415
  %v3441 = vmul.f32 %v2477, %v3419
  %v3442 = vmul.f32 %v2481, %v3423
  %v3443 = vmul.f32 %v2487, %v3427
  %v3444 = vmul.f32 %v2491, %v3431
  %v3445 = vmul.f32 %v2497, %v3435
  %3455 = vrot.lane.b32.xlu0 %v3437, 64
  %v3456 = vpop.permute.xlu0 %3455
  %3457 = vrot.lane.b32.xlu0 %v3438, 64
  %v3458 = vpop.permute.xlu0 %3457
  %3459 = vrot.lane.b32.xlu0 %v3439, 64
  %v3460 = vpop.permute.xlu0 %3459
  %3461 = vrot.lane.b32.xlu0 %v3440, 64
  %v3462 = vpop.permute.xlu0 %3461
  %3463 = vrot.lane.b32.xlu0 %v3441, 64
  %v3464 = vpop.permute.xlu0 %3463
  %3465 = vrot.lane.b32.xlu0 %v3442, 64
  %v3466 = vpop.permute.xlu0 %3465
  %3467 = vrot.lane.b32.xlu0 %v3443, 64
  %v3468 = vpop.permute.xlu0 %3467
  %3469 = vrot.lane.b32.xlu0 %v3444, 64
  %v3470 = vpop.permute.xlu0 %3469
  %3471 = vrot.lane.b32.xlu0 %v3445, 64
  %v3472 = vpop.permute.xlu0 %3471
  %v3482 = vadd.f32 %v3392, %v3456
  %v3483 = vadd.f32 %v3393, %v3458
  %v3484 = vadd.f32 %v3394, %v3460
  %v3485 = vadd.f32 %v3395, %v3462
  %v3486 = vadd.f32 %v3396, %v3464
  %v3487 = vadd.f32 %v3397, %v3466
  %v3488 = vadd.f32 %v3398, %v3468
  %v3489 = vadd.f32 %v3399, %v3470
  %v3490 = vadd.f32 %v3400, %v3472
  %3491 = vset.pattern.permute.xlu0 8
  %3492 = vperm.xlu0 %3491, %v2897
  %v3493 = vpop.permute.xlu0 %3492
  %3495 = vset.pattern.permute.xlu0 8
  %3496 = vperm.xlu0 %3495, %v2898
  %v3497 = vpop.permute.xlu0 %3496
  %3499 = vset.pattern.permute.xlu0 8
  %3500 = vperm.xlu0 %3499, %v2899
  %v3501 = vpop.permute.xlu0 %3500
  %3503 = vset.pattern.permute.xlu0 8
  %3504 = vperm.xlu0 %3503, %v2900
  %v3505 = vpop.permute.xlu0 %3504
  %3507 = vset.pattern.permute.xlu0 8
  %3508 = vperm.xlu0 %3507, %v2901
  %v3509 = vpop.permute.xlu0 %3508
  %3511 = vset.pattern.permute.xlu0 8
  %3512 = vperm.xlu0 %3511, %v2902
  %v3513 = vpop.permute.xlu0 %3512
  %3515 = vset.pattern.permute.xlu0 8
  %3516 = vperm.xlu0 %3515, %v2903
  %v3517 = vpop.permute.xlu0 %3516
  %3519 = vset.pattern.permute.xlu0 8
  %3520 = vperm.xlu0 %3519, %v2904
  %v3521 = vpop.permute.xlu0 %3520
  %3523 = vset.pattern.permute.xlu0 8
  %3524 = vperm.xlu0 %3523, %v2905
  %v3525 = vpop.permute.xlu0 %3524
  %v3527 = vmul.f32 %v2536, %v3493
  %v3528 = vmul.f32 %v2540, %v3497
  %v3529 = vmul.f32 %v2546, %v3501
  %v3530 = vmul.f32 %v2550, %v3505
  %v3531 = vmul.f32 %v2556, %v3509
  %v3532 = vmul.f32 %v2560, %v3513
  %v3533 = vmul.f32 %v2566, %v3517
  %v3534 = vmul.f32 %v2570, %v3521
  %v3535 = vmul.f32 %v2576, %v3525
  %v3536 = vadd.f32 %v3482, %v3527
  %v3537 = vadd.f32 %v3483, %v3528
  %v3538 = vadd.f32 %v3484, %v3529
  %v3539 = vadd.f32 %v3485, %v3530
  %v3540 = vadd.f32 %v3486, %v3531
  %v3541 = vadd.f32 %v3487, %v3532
  %v3542 = vadd.f32 %v3488, %v3533
  %v3543 = vadd.f32 %v3489, %v3534
  %v3544 = vadd.f32 %v3490, %v3535
  %3545 = vset.pattern.permute.xlu0 9
  %3546 = vperm.xlu0 %3545, %v2897
  %v3547 = vpop.permute.xlu0 %3546
  %3549 = vset.pattern.permute.xlu0 9
  %3550 = vperm.xlu0 %3549, %v2898
  %v3551 = vpop.permute.xlu0 %3550
  %3553 = vset.pattern.permute.xlu0 9
  %3554 = vperm.xlu0 %3553, %v2899
  %v3555 = vpop.permute.xlu0 %3554
  %3557 = vset.pattern.permute.xlu0 9
  %3558 = vperm.xlu0 %3557, %v2900
  %v3559 = vpop.permute.xlu0 %3558
  %3561 = vset.pattern.permute.xlu0 9
  %3562 = vperm.xlu0 %3561, %v2901
  %v3563 = vpop.permute.xlu0 %3562
  %3565 = vset.pattern.permute.xlu0 9
  %3566 = vperm.xlu0 %3565, %v2902
  %v3567 = vpop.permute.xlu0 %3566
  %3569 = vset.pattern.permute.xlu0 9
  %3570 = vperm.xlu0 %3569, %v2903
  %v3571 = vpop.permute.xlu0 %3570
  %3573 = vset.pattern.permute.xlu0 9
  %3574 = vperm.xlu0 %3573, %v2904
  %v3575 = vpop.permute.xlu0 %3574
  %3577 = vset.pattern.permute.xlu0 9
  %3578 = vperm.xlu0 %3577, %v2905
  %v3579 = vpop.permute.xlu0 %3578
  %v3581 = vmul.f32 %v2536, %v3547
  %v3582 = vmul.f32 %v2540, %v3551
  %v3583 = vmul.f32 %v2546, %v3555
  %v3584 = vmul.f32 %v2550, %v3559
  %v3585 = vmul.f32 %v2556, %v3563
  %v3586 = vmul.f32 %v2560, %v3567
  %v3587 = vmul.f32 %v2566, %v3571
  %v3588 = vmul.f32 %v2570, %v3575
  %v3589 = vmul.f32 %v2576, %v3579
  %3599 = vrot.lane.b32.xlu0 %v3581, 64
  %v3600 = vpop.permute.xlu0 %3599
  %3601 = vrot.lane.b32.xlu0 %v3582, 64
  %v3602 = vpop.permute.xlu0 %3601
  %3603 = vrot.lane.b32.xlu0 %v3583, 64
  %v3604 = vpop.permute.xlu0 %3603
  %3605 = vrot.lane.b32.xlu0 %v3584, 64
  %v3606 = vpop.permute.xlu0 %3605
  %3607 = vrot.lane.b32.xlu0 %v3585, 64
  %v3608 = vpop.permute.xlu0 %3607
  %3609 = vrot.lane.b32.xlu0 %v3586, 64
  %v3610 = vpop.permute.xlu0 %3609
  %3611 = vrot.lane.b32.xlu0 %v3587, 64
  %v3612 = vpop.permute.xlu0 %3611
  %3613 = vrot.lane.b32.xlu0 %v3588, 64
  %v3614 = vpop.permute.xlu0 %3613
  %3615 = vrot.lane.b32.xlu0 %v3589, 64
  %v3616 = vpop.permute.xlu0 %3615
  %v3626 = vadd.f32 %v3536, %v3600
  %v3627 = vadd.f32 %v3537, %v3602
  %v3628 = vadd.f32 %v3538, %v3604
  %v3629 = vadd.f32 %v3539, %v3606
  %v3630 = vadd.f32 %v3540, %v3608
  %v3631 = vadd.f32 %v3541, %v3610
  %v3632 = vadd.f32 %v3542, %v3612
  %v3633 = vadd.f32 %v3543, %v3614
  %v3634 = vadd.f32 %v3544, %v3616
  %3635 = vset.pattern.permute.xlu0 10
  %3636 = vperm.xlu0 %3635, %v2897
  %v3637 = vpop.permute.xlu0 %3636
  %3639 = vset.pattern.permute.xlu0 10
  %3640 = vperm.xlu0 %3639, %v2898
  %v3641 = vpop.permute.xlu0 %3640
  %3643 = vset.pattern.permute.xlu0 10
  %3644 = vperm.xlu0 %3643, %v2899
  %v3645 = vpop.permute.xlu0 %3644
  %3647 = vset.pattern.permute.xlu0 10
  %3648 = vperm.xlu0 %3647, %v2900
  %v3649 = vpop.permute.xlu0 %3648
  %3651 = vset.pattern.permute.xlu0 10
  %3652 = vperm.xlu0 %3651, %v2901
  %v3653 = vpop.permute.xlu0 %3652
  %3655 = vset.pattern.permute.xlu0 10
  %3656 = vperm.xlu0 %3655, %v2902
  %v3657 = vpop.permute.xlu0 %3656
  %3659 = vset.pattern.permute.xlu0 10
  %3660 = vperm.xlu0 %3659, %v2903
  %v3661 = vpop.permute.xlu0 %3660
  %3663 = vset.pattern.permute.xlu0 10
  %3664 = vperm.xlu0 %3663, %v2904
  %v3665 = vpop.permute.xlu0 %3664
  %3667 = vset.pattern.permute.xlu0 10
  %3668 = vperm.xlu0 %3667, %v2905
  %v3669 = vpop.permute.xlu0 %3668
  %v3671 = vmul.f32 %v2538, %v3637
  %v3672 = vmul.f32 %v2542, %v3641
  %v3673 = vmul.f32 %v2548, %v3645
  %v3674 = vmul.f32 %v2552, %v3649
  %v3675 = vmul.f32 %v2558, %v3653
  %v3676 = vmul.f32 %v2562, %v3657
  %v3677 = vmul.f32 %v2568, %v3661
  %v3678 = vmul.f32 %v2572, %v3665
  %v3679 = vmul.f32 %v2578, %v3669
  %v3680 = vadd.f32 %v3626, %v3671
  %v3681 = vadd.f32 %v3627, %v3672
  %v3682 = vadd.f32 %v3628, %v3673
  %v3683 = vadd.f32 %v3629, %v3674
  %v3684 = vadd.f32 %v3630, %v3675
  %v3685 = vadd.f32 %v3631, %v3676
  %v3686 = vadd.f32 %v3632, %v3677
  %v3687 = vadd.f32 %v3633, %v3678
  %v3688 = vadd.f32 %v3634, %v3679
  %3689 = vset.pattern.permute.xlu0 11
  %3690 = vperm.xlu0 %3689, %v2897
  %v3691 = vpop.permute.xlu0 %3690
  %3693 = vset.pattern.permute.xlu0 11
  %3694 = vperm.xlu0 %3693, %v2898
  %v3695 = vpop.permute.xlu0 %3694
  %3697 = vset.pattern.permute.xlu0 11
  %3698 = vperm.xlu0 %3697, %v2899
  %v3699 = vpop.permute.xlu0 %3698
  %3701 = vset.pattern.permute.xlu0 11
  %3702 = vperm.xlu0 %3701, %v2900
  %v3703 = vpop.permute.xlu0 %3702
  %3705 = vset.pattern.permute.xlu0 11
  %3706 = vperm.xlu0 %3705, %v2901
  %v3707 = vpop.permute.xlu0 %3706
  %3709 = vset.pattern.permute.xlu0 11
  %3710 = vperm.xlu0 %3709, %v2902
  %v3711 = vpop.permute.xlu0 %3710
  %3713 = vset.pattern.permute.xlu0 11
  %3714 = vperm.xlu0 %3713, %v2903
  %v3715 = vpop.permute.xlu0 %3714
  %3717 = vset.pattern.permute.xlu0 11
  %3718 = vperm.xlu0 %3717, %v2904
  %v3719 = vpop.permute.xlu0 %3718
  %3721 = vset.pattern.permute.xlu0 11
  %3722 = vperm.xlu0 %3721, %v2905
  %v3723 = vpop.permute.xlu0 %3722
  %v3725 = vmul.f32 %v2538, %v3691
  %v3726 = vmul.f32 %v2542, %v3695
  %v3727 = vmul.f32 %v2548, %v3699
  %v3728 = vmul.f32 %v2552, %v3703
  %v3729 = vmul.f32 %v2558, %v3707
  %v3730 = vmul.f32 %v2562, %v3711
  %v3731 = vmul.f32 %v2568, %v3715
  %v3732 = vmul.f32 %v2572, %v3719
  %v3733 = vmul.f32 %v2578, %v3723
  %3743 = vrot.lane.b32.xlu0 %v3725, 64
  %v3744 = vpop.permute.xlu0 %3743
  %3745 = vrot.lane.b32.xlu0 %v3726, 64
  %v3746 = vpop.permute.xlu0 %3745
  %3747 = vrot.lane.b32.xlu0 %v3727, 64
  %v3748 = vpop.permute.xlu0 %3747
  %3749 = vrot.lane.b32.xlu0 %v3728, 64
  %v3750 = vpop.permute.xlu0 %3749
  %3751 = vrot.lane.b32.xlu0 %v3729, 64
  %v3752 = vpop.permute.xlu0 %3751
  %3753 = vrot.lane.b32.xlu0 %v3730, 64
  %v3754 = vpop.permute.xlu0 %3753
  %3755 = vrot.lane.b32.xlu0 %v3731, 64
  %v3756 = vpop.permute.xlu0 %3755
  %3757 = vrot.lane.b32.xlu0 %v3732, 64
  %v3758 = vpop.permute.xlu0 %3757
  %3759 = vrot.lane.b32.xlu0 %v3733, 64
  %v3760 = vpop.permute.xlu0 %3759
  %v3770 = vadd.f32 %v3680, %v3744
  %v3771 = vadd.f32 %v3681, %v3746
  %v3772 = vadd.f32 %v3682, %v3748
  %v3773 = vadd.f32 %v3683, %v3750
  %v3774 = vadd.f32 %v3684, %v3752
  %v3775 = vadd.f32 %v3685, %v3754
  %v3776 = vadd.f32 %v3686, %v3756
  %v3777 = vadd.f32 %v3687, %v3758
  %v3778 = vadd.f32 %v3688, %v3760
  %3779 = vset.pattern.permute.xlu0 12
  %3780 = vperm.xlu0 %3779, %v2897
  %v3781 = vpop.permute.xlu0 %3780
  %3783 = vset.pattern.permute.xlu0 12
  %3784 = vperm.xlu0 %3783, %v2898
  %v3785 = vpop.permute.xlu0 %3784
  %3787 = vset.pattern.permute.xlu0 12
  %3788 = vperm.xlu0 %3787, %v2899
  %v3789 = vpop.permute.xlu0 %3788
  %3791 = vset.pattern.permute.xlu0 12
  %3792 = vperm.xlu0 %3791, %v2900
  %v3793 = vpop.permute.xlu0 %3792
  %3795 = vset.pattern.permute.xlu0 12
  %3796 = vperm.xlu0 %3795, %v2901
  %v3797 = vpop.permute.xlu0 %3796
  %3799 = vset.pattern.permute.xlu0 12
  %3800 = vperm.xlu0 %3799, %v2902
  %v3801 = vpop.permute.xlu0 %3800
  %3803 = vset.pattern.permute.xlu0 12
  %3804 = vperm.xlu0 %3803, %v2903
  %v3805 = vpop.permute.xlu0 %3804
  %3807 = vset.pattern.permute.xlu0 12
  %3808 = vperm.xlu0 %3807, %v2904
  %v3809 = vpop.permute.xlu0 %3808
  %3811 = vset.pattern.permute.xlu0 12
  %3812 = vperm.xlu0 %3811, %v2905
  %v3813 = vpop.permute.xlu0 %3812
  %v3815 = vmul.f32 %v2617, %v3781
  %v3816 = vmul.f32 %v2621, %v3785
  %v3817 = vmul.f32 %v2627, %v3789
  %v3818 = vmul.f32 %v2631, %v3793
  %v3819 = vmul.f32 %v2637, %v3797
  %v3820 = vmul.f32 %v2641, %v3801
  %v3821 = vmul.f32 %v2647, %v3805
  %v3822 = vmul.f32 %v2651, %v3809
  %v3823 = vmul.f32 %v2657, %v3813
  %v3824 = vadd.f32 %v3770, %v3815
  %v3825 = vadd.f32 %v3771, %v3816
  %v3826 = vadd.f32 %v3772, %v3817
  %v3827 = vadd.f32 %v3773, %v3818
  %v3828 = vadd.f32 %v3774, %v3819
  %v3829 = vadd.f32 %v3775, %v3820
  %v3830 = vadd.f32 %v3776, %v3821
  %v3831 = vadd.f32 %v3777, %v3822
  %v3832 = vadd.f32 %v3778, %v3823
  %3833 = vset.pattern.permute.xlu0 13
  %3834 = vperm.xlu0 %3833, %v2897
  %v3835 = vpop.permute.xlu0 %3834
  %3837 = vset.pattern.permute.xlu0 13
  %3838 = vperm.xlu0 %3837, %v2898
  %v3839 = vpop.permute.xlu0 %3838
  %3841 = vset.pattern.permute.xlu0 13
  %3842 = vperm.xlu0 %3841, %v2899
  %v3843 = vpop.permute.xlu0 %3842
  %3845 = vset.pattern.permute.xlu0 13
  %3846 = vperm.xlu0 %3845, %v2900
  %v3847 = vpop.permute.xlu0 %3846
  %3849 = vset.pattern.permute.xlu0 13
  %3850 = vperm.xlu0 %3849, %v2901
  %v3851 = vpop.permute.xlu0 %3850
  %3853 = vset.pattern.permute.xlu0 13
  %3854 = vperm.xlu0 %3853, %v2902
  %v3855 = vpop.permute.xlu0 %3854
  %3857 = vset.pattern.permute.xlu0 13
  %3858 = vperm.xlu0 %3857, %v2903
  %v3859 = vpop.permute.xlu0 %3858
  %3861 = vset.pattern.permute.xlu0 13
  %3862 = vperm.xlu0 %3861, %v2904
  %v3863 = vpop.permute.xlu0 %3862
  %3865 = vset.pattern.permute.xlu0 13
  %3866 = vperm.xlu0 %3865, %v2905
  %v3867 = vpop.permute.xlu0 %3866
  %v3869 = vmul.f32 %v2617, %v3835
  %v3870 = vmul.f32 %v2621, %v3839
  %v3871 = vmul.f32 %v2627, %v3843
  %v3872 = vmul.f32 %v2631, %v3847
  %v3873 = vmul.f32 %v2637, %v3851
  %v3874 = vmul.f32 %v2641, %v3855
  %v3875 = vmul.f32 %v2647, %v3859
  %v3876 = vmul.f32 %v2651, %v3863
  %v3877 = vmul.f32 %v2657, %v3867
  %3887 = vrot.lane.b32.xlu0 %v3869, 64
  %v3888 = vpop.permute.xlu0 %3887
  %3889 = vrot.lane.b32.xlu0 %v3870, 64
  %v3890 = vpop.permute.xlu0 %3889
  %3891 = vrot.lane.b32.xlu0 %v3871, 64
  %v3892 = vpop.permute.xlu0 %3891
  %3893 = vrot.lane.b32.xlu0 %v3872, 64
  %v3894 = vpop.permute.xlu0 %3893
  %3895 = vrot.lane.b32.xlu0 %v3873, 64
  %v3896 = vpop.permute.xlu0 %3895
  %3897 = vrot.lane.b32.xlu0 %v3874, 64
  %v3898 = vpop.permute.xlu0 %3897
  %3899 = vrot.lane.b32.xlu0 %v3875, 64
  %v3900 = vpop.permute.xlu0 %3899
  %3901 = vrot.lane.b32.xlu0 %v3876, 64
  %v3902 = vpop.permute.xlu0 %3901
  %3903 = vrot.lane.b32.xlu0 %v3877, 64
  %v3904 = vpop.permute.xlu0 %3903
  %v3914 = vadd.f32 %v3824, %v3888
  %v3915 = vadd.f32 %v3825, %v3890
  %v3916 = vadd.f32 %v3826, %v3892
  %v3917 = vadd.f32 %v3827, %v3894
  %v3918 = vadd.f32 %v3828, %v3896
  %v3919 = vadd.f32 %v3829, %v3898
  %v3920 = vadd.f32 %v3830, %v3900
  %v3921 = vadd.f32 %v3831, %v3902
  %v3922 = vadd.f32 %v3832, %v3904
  %3923 = vset.pattern.permute.xlu0 14
  %3924 = vperm.xlu0 %3923, %v2897
  %v3925 = vpop.permute.xlu0 %3924
  %3927 = vset.pattern.permute.xlu0 14
  %3928 = vperm.xlu0 %3927, %v2898
  %v3929 = vpop.permute.xlu0 %3928
  %3931 = vset.pattern.permute.xlu0 14
  %3932 = vperm.xlu0 %3931, %v2899
  %v3933 = vpop.permute.xlu0 %3932
  %3935 = vset.pattern.permute.xlu0 14
  %3936 = vperm.xlu0 %3935, %v2900
  %v3937 = vpop.permute.xlu0 %3936
  %3939 = vset.pattern.permute.xlu0 14
  %3940 = vperm.xlu0 %3939, %v2901
  %v3941 = vpop.permute.xlu0 %3940
  %3943 = vset.pattern.permute.xlu0 14
  %3944 = vperm.xlu0 %3943, %v2902
  %v3945 = vpop.permute.xlu0 %3944
  %3947 = vset.pattern.permute.xlu0 14
  %3948 = vperm.xlu0 %3947, %v2903
  %v3949 = vpop.permute.xlu0 %3948
  %3951 = vset.pattern.permute.xlu0 14
  %3952 = vperm.xlu0 %3951, %v2904
  %v3953 = vpop.permute.xlu0 %3952
  %3955 = vset.pattern.permute.xlu0 14
  %3956 = vperm.xlu0 %3955, %v2905
  %v3957 = vpop.permute.xlu0 %3956
  %v3959 = vmul.f32 %v2619, %v3925
  %v3960 = vmul.f32 %v2623, %v3929
  %v3961 = vmul.f32 %v2629, %v3933
  %v3962 = vmul.f32 %v2633, %v3937
  %v3963 = vmul.f32 %v2639, %v3941
  %v3964 = vmul.f32 %v2643, %v3945
  %v3965 = vmul.f32 %v2649, %v3949
  %v3966 = vmul.f32 %v2653, %v3953
  %v3967 = vmul.f32 %v2659, %v3957
  %v3968 = vadd.f32 %v3914, %v3959
  %v3969 = vadd.f32 %v3915, %v3960
  %v3970 = vadd.f32 %v3916, %v3961
  %v3971 = vadd.f32 %v3917, %v3962
  %v3972 = vadd.f32 %v3918, %v3963
  %v3973 = vadd.f32 %v3919, %v3964
  %v3974 = vadd.f32 %v3920, %v3965
  %v3975 = vadd.f32 %v3921, %v3966
  %v3976 = vadd.f32 %v3922, %v3967
  %3977 = vset.pattern.permute.xlu0 15
  %3978 = vperm.xlu0 %3977, %v2897
  %v3979 = vpop.permute.xlu0 %3978
  %3981 = vset.pattern.permute.xlu0 15
  %3982 = vperm.xlu0 %3981, %v2898
  %v3983 = vpop.permute.xlu0 %3982
  %3985 = vset.pattern.permute.xlu0 15
  %3986 = vperm.xlu0 %3985, %v2899
  %v3987 = vpop.permute.xlu0 %3986
  %3989 = vset.pattern.permute.xlu0 15
  %3990 = vperm.xlu0 %3989, %v2900
  %v3991 = vpop.permute.xlu0 %3990
  %3993 = vset.pattern.permute.xlu0 15
  %3994 = vperm.xlu0 %3993, %v2901
  %v3995 = vpop.permute.xlu0 %3994
  %3997 = vset.pattern.permute.xlu0 15
  %3998 = vperm.xlu0 %3997, %v2902
  %v3999 = vpop.permute.xlu0 %3998
  %4001 = vset.pattern.permute.xlu0 15
  %4002 = vperm.xlu0 %4001, %v2903
  %v4003 = vpop.permute.xlu0 %4002
  %4005 = vset.pattern.permute.xlu0 15
  %4006 = vperm.xlu0 %4005, %v2904
  %v4007 = vpop.permute.xlu0 %4006
  %4009 = vset.pattern.permute.xlu0 15
  %4010 = vperm.xlu0 %4009, %v2905
  %v4011 = vpop.permute.xlu0 %4010
  %v4013 = vmul.f32 %v2619, %v3979
  %v4014 = vmul.f32 %v2623, %v3983
  %v4015 = vmul.f32 %v2629, %v3987
  %v4016 = vmul.f32 %v2633, %v3991
  %v4017 = vmul.f32 %v2639, %v3995
  %v4018 = vmul.f32 %v2643, %v3999
  %v4019 = vmul.f32 %v2649, %v4003
  %v4020 = vmul.f32 %v2653, %v4007
  %v4021 = vmul.f32 %v2659, %v4011
  %4031 = vrot.lane.b32.xlu0 %v4013, 64
  %v4032 = vpop.permute.xlu0 %4031
  %4033 = vrot.lane.b32.xlu0 %v4014, 64
  %v4034 = vpop.permute.xlu0 %4033
  %4035 = vrot.lane.b32.xlu0 %v4015, 64
  %v4036 = vpop.permute.xlu0 %4035
  %4037 = vrot.lane.b32.xlu0 %v4016, 64
  %v4038 = vpop.permute.xlu0 %4037
  %4039 = vrot.lane.b32.xlu0 %v4017, 64
  %v4040 = vpop.permute.xlu0 %4039
  %4041 = vrot.lane.b32.xlu0 %v4018, 64
  %v4042 = vpop.permute.xlu0 %4041
  %4043 = vrot.lane.b32.xlu0 %v4019, 64
  %v4044 = vpop.permute.xlu0 %4043
  %4045 = vrot.lane.b32.xlu0 %v4020, 64
  %v4046 = vpop.permute.xlu0 %4045
  %4047 = vrot.lane.b32.xlu0 %v4021, 64
  %v4048 = vpop.permute.xlu0 %4047
  %v4058 = vadd.f32 %v3968, %v4032
  %v4059 = vadd.f32 %v3969, %v4034
  %v4060 = vadd.f32 %v3970, %v4036
  %v4061 = vadd.f32 %v3971, %v4038
  %v4062 = vadd.f32 %v3972, %v4040
  %v4063 = vadd.f32 %v3973, %v4042
  %v4064 = vadd.f32 %v3974, %v4044
  %v4065 = vadd.f32 %v3975, %v4046
  %v4066 = vadd.f32 %v3976, %v4048
  %4067 = vset.pattern.permute.xlu0 16
  %4068 = vperm.xlu0 %4067, %v2897
  %v4069 = vpop.permute.xlu0 %4068
  %4071 = vset.pattern.permute.xlu0 16
  %4072 = vperm.xlu0 %4071, %v2898
  %v4073 = vpop.permute.xlu0 %4072
  %4075 = vset.pattern.permute.xlu0 16
  %4076 = vperm.xlu0 %4075, %v2899
  %v4077 = vpop.permute.xlu0 %4076
  %4079 = vset.pattern.permute.xlu0 16
  %4080 = vperm.xlu0 %4079, %v2900
  %v4081 = vpop.permute.xlu0 %4080
  %4083 = vset.pattern.permute.xlu0 16
  %4084 = vperm.xlu0 %4083, %v2901
  %v4085 = vpop.permute.xlu0 %4084
  %4087 = vset.pattern.permute.xlu0 16
  %4088 = vperm.xlu0 %4087, %v2902
  %v4089 = vpop.permute.xlu0 %4088
  %4091 = vset.pattern.permute.xlu0 16
  %4092 = vperm.xlu0 %4091, %v2903
  %v4093 = vpop.permute.xlu0 %4092
  %4095 = vset.pattern.permute.xlu0 16
  %4096 = vperm.xlu0 %4095, %v2904
  %v4097 = vpop.permute.xlu0 %4096
  %4099 = vset.pattern.permute.xlu0 16
  %4100 = vperm.xlu0 %4099, %v2905
  %v4101 = vpop.permute.xlu0 %4100
  %v4103 = vmul.f32 %v2698, %v4069
  %v4104 = vmul.f32 %v2702, %v4073
  %v4105 = vmul.f32 %v2708, %v4077
  %v4106 = vmul.f32 %v2712, %v4081
  %v4107 = vmul.f32 %v2718, %v4085
  %v4108 = vmul.f32 %v2722, %v4089
  %v4109 = vmul.f32 %v2728, %v4093
  %v4110 = vmul.f32 %v2732, %v4097
  %v4111 = vmul.f32 %v2738, %v4101
  %v4112 = vadd.f32 %v4058, %v4103
  %v4113 = vadd.f32 %v4059, %v4104
  %v4114 = vadd.f32 %v4060, %v4105
  %v4115 = vadd.f32 %v4061, %v4106
  %v4116 = vadd.f32 %v4062, %v4107
  %v4117 = vadd.f32 %v4063, %v4108
  %v4118 = vadd.f32 %v4064, %v4109
  %v4119 = vadd.f32 %v4065, %v4110
  %v4120 = vadd.f32 %v4066, %v4111
  %4121 = vset.pattern.permute.xlu0 17
  %4122 = vperm.xlu0 %4121, %v2897
  %v4123 = vpop.permute.xlu0 %4122
  %4125 = vset.pattern.permute.xlu0 17
  %4126 = vperm.xlu0 %4125, %v2898
  %v4127 = vpop.permute.xlu0 %4126
  %4129 = vset.pattern.permute.xlu0 17
  %4130 = vperm.xlu0 %4129, %v2899
  %v4131 = vpop.permute.xlu0 %4130
  %4133 = vset.pattern.permute.xlu0 17
  %4134 = vperm.xlu0 %4133, %v2900
  %v4135 = vpop.permute.xlu0 %4134
  %4137 = vset.pattern.permute.xlu0 17
  %4138 = vperm.xlu0 %4137, %v2901
  %v4139 = vpop.permute.xlu0 %4138
  %4141 = vset.pattern.permute.xlu0 17
  %4142 = vperm.xlu0 %4141, %v2902
  %v4143 = vpop.permute.xlu0 %4142
  %4145 = vset.pattern.permute.xlu0 17
  %4146 = vperm.xlu0 %4145, %v2903
  %v4147 = vpop.permute.xlu0 %4146
  %4149 = vset.pattern.permute.xlu0 17
  %4150 = vperm.xlu0 %4149, %v2904
  %v4151 = vpop.permute.xlu0 %4150
  %4153 = vset.pattern.permute.xlu0 17
  %4154 = vperm.xlu0 %4153, %v2905
  %v4155 = vpop.permute.xlu0 %4154
  %v4157 = vmul.f32 %v2698, %v4123
  %v4158 = vmul.f32 %v2702, %v4127
  %v4159 = vmul.f32 %v2708, %v4131
  %v4160 = vmul.f32 %v2712, %v4135
  %v4161 = vmul.f32 %v2718, %v4139
  %v4162 = vmul.f32 %v2722, %v4143
  %v4163 = vmul.f32 %v2728, %v4147
  %v4164 = vmul.f32 %v2732, %v4151
  %v4165 = vmul.f32 %v2738, %v4155
  %4175 = vrot.lane.b32.xlu0 %v4157, 64
  %v4176 = vpop.permute.xlu0 %4175
  %4177 = vrot.lane.b32.xlu0 %v4158, 64
  %v4178 = vpop.permute.xlu0 %4177
  %4179 = vrot.lane.b32.xlu0 %v4159, 64
  %v4180 = vpop.permute.xlu0 %4179
  %4181 = vrot.lane.b32.xlu0 %v4160, 64
  %v4182 = vpop.permute.xlu0 %4181
  %4183 = vrot.lane.b32.xlu0 %v4161, 64
  %v4184 = vpop.permute.xlu0 %4183
  %4185 = vrot.lane.b32.xlu0 %v4162, 64
  %v4186 = vpop.permute.xlu0 %4185
  %4187 = vrot.lane.b32.xlu0 %v4163, 64
  %v4188 = vpop.permute.xlu0 %4187
  %4189 = vrot.lane.b32.xlu0 %v4164, 64
  %v4190 = vpop.permute.xlu0 %4189
  %4191 = vrot.lane.b32.xlu0 %v4165, 64
  %v4192 = vpop.permute.xlu0 %4191
  %v4202 = vadd.f32 %v4112, %v4176
  %v4203 = vadd.f32 %v4113, %v4178
  %v4204 = vadd.f32 %v4114, %v4180
  %v4205 = vadd.f32 %v4115, %v4182
  %v4206 = vadd.f32 %v4116, %v4184
  %v4207 = vadd.f32 %v4117, %v4186
  %v4208 = vadd.f32 %v4118, %v4188
  %v4209 = vadd.f32 %v4119, %v4190
  %v4210 = vadd.f32 %v4120, %v4192
  %4211 = vset.pattern.permute.xlu0 18
  %4212 = vperm.xlu0 %4211, %v2897
  %v4213 = vpop.permute.xlu0 %4212
  %4215 = vset.pattern.permute.xlu0 18
  %4216 = vperm.xlu0 %4215, %v2898
  %v4217 = vpop.permute.xlu0 %4216
  %4219 = vset.pattern.permute.xlu0 18
  %4220 = vperm.xlu0 %4219, %v2899
  %v4221 = vpop.permute.xlu0 %4220
  %4223 = vset.pattern.permute.xlu0 18
  %4224 = vperm.xlu0 %4223, %v2900
  %v4225 = vpop.permute.xlu0 %4224
  %4227 = vset.pattern.permute.xlu0 18
  %4228 = vperm.xlu0 %4227, %v2901
  %v4229 = vpop.permute.xlu0 %4228
  %4231 = vset.pattern.permute.xlu0 18
  %4232 = vperm.xlu0 %4231, %v2902
  %v4233 = vpop.permute.xlu0 %4232
  %4235 = vset.pattern.permute.xlu0 18
  %4236 = vperm.xlu0 %4235, %v2903
  %v4237 = vpop.permute.xlu0 %4236
  %4239 = vset.pattern.permute.xlu0 18
  %4240 = vperm.xlu0 %4239, %v2904
  %v4241 = vpop.permute.xlu0 %4240
  %4243 = vset.pattern.permute.xlu0 18
  %4244 = vperm.xlu0 %4243, %v2905
  %v4245 = vpop.permute.xlu0 %4244
  %v4247 = vmul.f32 %v2700, %v4213
  %v4248 = vmul.f32 %v2704, %v4217
  %v4249 = vmul.f32 %v2710, %v4221
  %v4250 = vmul.f32 %v2714, %v4225
  %v4251 = vmul.f32 %v2720, %v4229
  %v4252 = vmul.f32 %v2724, %v4233
  %v4253 = vmul.f32 %v2730, %v4237
  %v4254 = vmul.f32 %v2734, %v4241
  %v4255 = vmul.f32 %v2740, %v4245
  %v4256 = vadd.f32 %v4202, %v4247
  %v4257 = vadd.f32 %v4203, %v4248
  %v4258 = vadd.f32 %v4204, %v4249
  %v4259 = vadd.f32 %v4205, %v4250
  %v4260 = vadd.f32 %v4206, %v4251
  %v4261 = vadd.f32 %v4207, %v4252
  %v4262 = vadd.f32 %v4208, %v4253
  %v4263 = vadd.f32 %v4209, %v4254
  %v4264 = vadd.f32 %v4210, %v4255
  %4265 = vset.pattern.permute.xlu0 19
  %4266 = vperm.xlu0 %4265, %v2897
  %v4267 = vpop.permute.xlu0 %4266
  %4269 = vset.pattern.permute.xlu0 19
  %4270 = vperm.xlu0 %4269, %v2898
  %v4271 = vpop.permute.xlu0 %4270
  %4273 = vset.pattern.permute.xlu0 19
  %4274 = vperm.xlu0 %4273, %v2899
  %v4275 = vpop.permute.xlu0 %4274
  %4277 = vset.pattern.permute.xlu0 19
  %4278 = vperm.xlu0 %4277, %v2900
  %v4279 = vpop.permute.xlu0 %4278
  %4281 = vset.pattern.permute.xlu0 19
  %4282 = vperm.xlu0 %4281, %v2901
  %v4283 = vpop.permute.xlu0 %4282
  %4285 = vset.pattern.permute.xlu0 19
  %4286 = vperm.xlu0 %4285, %v2902
  %v4287 = vpop.permute.xlu0 %4286
  %4289 = vset.pattern.permute.xlu0 19
  %4290 = vperm.xlu0 %4289, %v2903
  %v4291 = vpop.permute.xlu0 %4290
  %4293 = vset.pattern.permute.xlu0 19
  %4294 = vperm.xlu0 %4293, %v2904
  %v4295 = vpop.permute.xlu0 %4294
  %4297 = vset.pattern.permute.xlu0 19
  %4298 = vperm.xlu0 %4297, %v2905
  %v4299 = vpop.permute.xlu0 %4298
  %v4301 = vmul.f32 %v2700, %v4267
  %v4302 = vmul.f32 %v2704, %v4271
  %v4303 = vmul.f32 %v2710, %v4275
  %v4304 = vmul.f32 %v2714, %v4279
  %v4305 = vmul.f32 %v2720, %v4283
  %v4306 = vmul.f32 %v2724, %v4287
  %v4307 = vmul.f32 %v2730, %v4291
  %v4308 = vmul.f32 %v2734, %v4295
  %v4309 = vmul.f32 %v2740, %v4299
  %4319 = vrot.lane.b32.xlu0 %v4301, 64
  %v4320 = vpop.permute.xlu0 %4319
  %4321 = vrot.lane.b32.xlu0 %v4302, 64
  %v4322 = vpop.permute.xlu0 %4321
  %4323 = vrot.lane.b32.xlu0 %v4303, 64
  %v4324 = vpop.permute.xlu0 %4323
  %4325 = vrot.lane.b32.xlu0 %v4304, 64
  %v4326 = vpop.permute.xlu0 %4325
  %4327 = vrot.lane.b32.xlu0 %v4305, 64
  %v4328 = vpop.permute.xlu0 %4327
  %4329 = vrot.lane.b32.xlu0 %v4306, 64
  %v4330 = vpop.permute.xlu0 %4329
  %4331 = vrot.lane.b32.xlu0 %v4307, 64
  %v4332 = vpop.permute.xlu0 %4331
  %4333 = vrot.lane.b32.xlu0 %v4308, 64
  %v4334 = vpop.permute.xlu0 %4333
  %4335 = vrot.lane.b32.xlu0 %v4309, 64
  %v4336 = vpop.permute.xlu0 %4335
  %v4346 = vadd.f32 %v4256, %v4320
  %v4347 = vadd.f32 %v4257, %v4322
  %v4348 = vadd.f32 %v4258, %v4324
  %v4349 = vadd.f32 %v4259, %v4326
  %v4350 = vadd.f32 %v4260, %v4328
  %v4351 = vadd.f32 %v4261, %v4330
  %v4352 = vadd.f32 %v4262, %v4332
  %v4353 = vadd.f32 %v4263, %v4334
  %v4354 = vadd.f32 %v4264, %v4336
  %4355 = vset.pattern.permute.xlu0 20
  %4356 = vperm.xlu0 %4355, %v2897
  %v4357 = vpop.permute.xlu0 %4356
  %4359 = vset.pattern.permute.xlu0 20
  %4360 = vperm.xlu0 %4359, %v2898
  %v4361 = vpop.permute.xlu0 %4360
  %4363 = vset.pattern.permute.xlu0 20
  %4364 = vperm.xlu0 %4363, %v2899
  %v4365 = vpop.permute.xlu0 %4364
  %4367 = vset.pattern.permute.xlu0 20
  %4368 = vperm.xlu0 %4367, %v2900
  %v4369 = vpop.permute.xlu0 %4368
  %4371 = vset.pattern.permute.xlu0 20
  %4372 = vperm.xlu0 %4371, %v2901
  %v4373 = vpop.permute.xlu0 %4372
  %4375 = vset.pattern.permute.xlu0 20
  %4376 = vperm.xlu0 %4375, %v2902
  %v4377 = vpop.permute.xlu0 %4376
  %4379 = vset.pattern.permute.xlu0 20
  %4380 = vperm.xlu0 %4379, %v2903
  %v4381 = vpop.permute.xlu0 %4380
  %4383 = vset.pattern.permute.xlu0 20
  %4384 = vperm.xlu0 %4383, %v2904
  %v4385 = vpop.permute.xlu0 %4384
  %4387 = vset.pattern.permute.xlu0 20
  %4388 = vperm.xlu0 %4387, %v2905
  %v4389 = vpop.permute.xlu0 %4388
  %v4391 = vmul.f32 %v2779, %v4357
  %v4392 = vmul.f32 %v2783, %v4361
  %v4393 = vmul.f32 %v2789, %v4365
  %v4394 = vmul.f32 %v2793, %v4369
  %v4395 = vmul.f32 %v2799, %v4373
  %v4396 = vmul.f32 %v2803, %v4377
  %v4397 = vmul.f32 %v2809, %v4381
  %v4398 = vmul.f32 %v2813, %v4385
  %v4399 = vmul.f32 %v2819, %v4389
  %v4400 = vadd.f32 %v4346, %v4391
  %v4401 = vadd.f32 %v4347, %v4392
  %v4402 = vadd.f32 %v4348, %v4393
  %v4403 = vadd.f32 %v4349, %v4394
  %v4404 = vadd.f32 %v4350, %v4395
  %v4405 = vadd.f32 %v4351, %v4396
  %v4406 = vadd.f32 %v4352, %v4397
  %v4407 = vadd.f32 %v4353, %v4398
  %v4408 = vadd.f32 %v4354, %v4399
  %4409 = vset.pattern.permute.xlu0 21
  %4410 = vperm.xlu0 %4409, %v2897
  %v4411 = vpop.permute.xlu0 %4410
  %4413 = vset.pattern.permute.xlu0 21
  %4414 = vperm.xlu0 %4413, %v2898
  %v4415 = vpop.permute.xlu0 %4414
  %4417 = vset.pattern.permute.xlu0 21
  %4418 = vperm.xlu0 %4417, %v2899
  %v4419 = vpop.permute.xlu0 %4418
  %4421 = vset.pattern.permute.xlu0 21
  %4422 = vperm.xlu0 %4421, %v2900
  %v4423 = vpop.permute.xlu0 %4422
  %4425 = vset.pattern.permute.xlu0 21
  %4426 = vperm.xlu0 %4425, %v2901
  %v4427 = vpop.permute.xlu0 %4426
  %4429 = vset.pattern.permute.xlu0 21
  %4430 = vperm.xlu0 %4429, %v2902
  %v4431 = vpop.permute.xlu0 %4430
  %4433 = vset.pattern.permute.xlu0 21
  %4434 = vperm.xlu0 %4433, %v2903
  %v4435 = vpop.permute.xlu0 %4434
  %4437 = vset.pattern.permute.xlu0 21
  %4438 = vperm.xlu0 %4437, %v2904
  %v4439 = vpop.permute.xlu0 %4438
  %4441 = vset.pattern.permute.xlu0 21
  %4442 = vperm.xlu0 %4441, %v2905
  %v4443 = vpop.permute.xlu0 %4442
  %v4445 = vmul.f32 %v2779, %v4411
  %v4446 = vmul.f32 %v2783, %v4415
  %v4447 = vmul.f32 %v2789, %v4419
  %v4448 = vmul.f32 %v2793, %v4423
  %v4449 = vmul.f32 %v2799, %v4427
  %v4450 = vmul.f32 %v2803, %v4431
  %v4451 = vmul.f32 %v2809, %v4435
  %v4452 = vmul.f32 %v2813, %v4439
  %v4453 = vmul.f32 %v2819, %v4443
  %4463 = vrot.lane.b32.xlu0 %v4445, 64
  %v4464 = vpop.permute.xlu0 %4463
  %4465 = vrot.lane.b32.xlu0 %v4446, 64
  %v4466 = vpop.permute.xlu0 %4465
  %4467 = vrot.lane.b32.xlu0 %v4447, 64
  %v4468 = vpop.permute.xlu0 %4467
  %4469 = vrot.lane.b32.xlu0 %v4448, 64
  %v4470 = vpop.permute.xlu0 %4469
  %4471 = vrot.lane.b32.xlu0 %v4449, 64
  %v4472 = vpop.permute.xlu0 %4471
  %4473 = vrot.lane.b32.xlu0 %v4450, 64
  %v4474 = vpop.permute.xlu0 %4473
  %4475 = vrot.lane.b32.xlu0 %v4451, 64
  %v4476 = vpop.permute.xlu0 %4475
  %4477 = vrot.lane.b32.xlu0 %v4452, 64
  %v4478 = vpop.permute.xlu0 %4477
  %4479 = vrot.lane.b32.xlu0 %v4453, 64
  %v4480 = vpop.permute.xlu0 %4479
  %v4490 = vadd.f32 %v4400, %v4464
  %v4491 = vadd.f32 %v4401, %v4466
  %v4492 = vadd.f32 %v4402, %v4468
  %v4493 = vadd.f32 %v4403, %v4470
  %v4494 = vadd.f32 %v4404, %v4472
  %v4495 = vadd.f32 %v4405, %v4474
  %v4496 = vadd.f32 %v4406, %v4476
  %v4497 = vadd.f32 %v4407, %v4478
  %v4498 = vadd.f32 %v4408, %v4480
  %4499 = vset.pattern.permute.xlu0 22
  %4500 = vperm.xlu0 %4499, %v2897
  %v4501 = vpop.permute.xlu0 %4500
  %4503 = vset.pattern.permute.xlu0 22
  %4504 = vperm.xlu0 %4503, %v2898
  %v4505 = vpop.permute.xlu0 %4504
  %4507 = vset.pattern.permute.xlu0 22
  %4508 = vperm.xlu0 %4507, %v2899
  %v4509 = vpop.permute.xlu0 %4508
  %4511 = vset.pattern.permute.xlu0 22
  %4512 = vperm.xlu0 %4511, %v2900
  %v4513 = vpop.permute.xlu0 %4512
  %4515 = vset.pattern.permute.xlu0 22
  %4516 = vperm.xlu0 %4515, %v2901
  %v4517 = vpop.permute.xlu0 %4516
  %4519 = vset.pattern.permute.xlu0 22
  %4520 = vperm.xlu0 %4519, %v2902
  %v4521 = vpop.permute.xlu0 %4520
  %4523 = vset.pattern.permute.xlu0 22
  %4524 = vperm.xlu0 %4523, %v2903
  %v4525 = vpop.permute.xlu0 %4524
  %4527 = vset.pattern.permute.xlu0 22
  %4528 = vperm.xlu0 %4527, %v2904
  %v4529 = vpop.permute.xlu0 %4528
  %4531 = vset.pattern.permute.xlu0 22
  %4532 = vperm.xlu0 %4531, %v2905
  %v4533 = vpop.permute.xlu0 %4532
  %v4535 = vmul.f32 %v2781, %v4501
  %v4536 = vmul.f32 %v2785, %v4505
  %v4537 = vmul.f32 %v2791, %v4509
  %v4538 = vmul.f32 %v2795, %v4513
  %v4539 = vmul.f32 %v2801, %v4517
  %v4540 = vmul.f32 %v2805, %v4521
  %v4541 = vmul.f32 %v2811, %v4525
  %v4542 = vmul.f32 %v2815, %v4529
  %v4543 = vmul.f32 %v2821, %v4533
  %v4544 = vadd.f32 %v4490, %v4535
  %v4545 = vadd.f32 %v4491, %v4536
  %v4546 = vadd.f32 %v4492, %v4537
  %v4547 = vadd.f32 %v4493, %v4538
  %v4548 = vadd.f32 %v4494, %v4539
  %v4549 = vadd.f32 %v4495, %v4540
  %v4550 = vadd.f32 %v4496, %v4541
  %v4551 = vadd.f32 %v4497, %v4542
  %v4552 = vadd.f32 %v4498, %v4543
  %4553 = vset.pattern.permute.xlu0 23
  %4554 = vperm.xlu0 %4553, %v2897
  %v4555 = vpop.permute.xlu0 %4554
  %4557 = vset.pattern.permute.xlu0 23
  %4558 = vperm.xlu0 %4557, %v2898
  %v4559 = vpop.permute.xlu0 %4558
  %4561 = vset.pattern.permute.xlu0 23
  %4562 = vperm.xlu0 %4561, %v2899
  %v4563 = vpop.permute.xlu0 %4562
  %4565 = vset.pattern.permute.xlu0 23
  %4566 = vperm.xlu0 %4565, %v2900
  %v4567 = vpop.permute.xlu0 %4566
  %4569 = vset.pattern.permute.xlu0 23
  %4570 = vperm.xlu0 %4569, %v2901
  %v4571 = vpop.permute.xlu0 %4570
  %4573 = vset.pattern.permute.xlu0 23
  %4574 = vperm.xlu0 %4573, %v2902
  %v4575 = vpop.permute.xlu0 %4574
  %4577 = vset.pattern.permute.xlu0 23
  %4578 = vperm.xlu0 %4577, %v2903
  %v4579 = vpop.permute.xlu0 %4578
  %4581 = vset.pattern.permute.xlu0 23
  %4582 = vperm.xlu0 %4581, %v2904
  %v4583 = vpop.permute.xlu0 %4582
  %4585 = vset.pattern.permute.xlu0 23
  %4586 = vperm.xlu0 %4585, %v2905
  %v4587 = vpop.permute.xlu0 %4586
  %v4589 = vmul.f32 %v2781, %v4555
  %v4590 = vmul.f32 %v2785, %v4559
  %v4591 = vmul.f32 %v2791, %v4563
  %v4592 = vmul.f32 %v2795, %v4567
  %v4593 = vmul.f32 %v2801, %v4571
  %v4594 = vmul.f32 %v2805, %v4575
  %v4595 = vmul.f32 %v2811, %v4579
  %v4596 = vmul.f32 %v2815, %v4583
  %v4597 = vmul.f32 %v2821, %v4587
  %4607 = vrot.lane.b32.xlu0 %v4589, 64
  %v4608 = vpop.permute.xlu0 %4607
  %4609 = vrot.lane.b32.xlu0 %v4590, 64
  %v4610 = vpop.permute.xlu0 %4609
  %4611 = vrot.lane.b32.xlu0 %v4591, 64
  %v4612 = vpop.permute.xlu0 %4611
  %4613 = vrot.lane.b32.xlu0 %v4592, 64
  %v4614 = vpop.permute.xlu0 %4613
  %4615 = vrot.lane.b32.xlu0 %v4593, 64
  %v4616 = vpop.permute.xlu0 %4615
  %4617 = vrot.lane.b32.xlu0 %v4594, 64
  %v4618 = vpop.permute.xlu0 %4617
  %4619 = vrot.lane.b32.xlu0 %v4595, 64
  %v4620 = vpop.permute.xlu0 %4619
  %4621 = vrot.lane.b32.xlu0 %v4596, 64
  %v4622 = vpop.permute.xlu0 %4621
  %4623 = vrot.lane.b32.xlu0 %v4597, 64
  %v4624 = vpop.permute.xlu0 %4623
  %v4634 = vadd.f32 %v4544, %v4608
  %v4635 = vadd.f32 %v4545, %v4610
  %v4636 = vadd.f32 %v4546, %v4612
  %v4637 = vadd.f32 %v4547, %v4614
  %v4638 = vadd.f32 %v4548, %v4616
  %v4639 = vadd.f32 %v4549, %v4618
  %v4640 = vadd.f32 %v4550, %v4620
  %v4641 = vadd.f32 %v4551, %v4622
  %v4642 = vadd.f32 %v4552, %v4624
  %4643 = vset.pattern.permute.xlu0 24
  %4644 = vperm.xlu0 %4643, %v2897
  %v4645 = vpop.permute.xlu0 %4644
  %4647 = vset.pattern.permute.xlu0 24
  %4648 = vperm.xlu0 %4647, %v2898
  %v4649 = vpop.permute.xlu0 %4648
  %4651 = vset.pattern.permute.xlu0 24
  %4652 = vperm.xlu0 %4651, %v2899
  %v4653 = vpop.permute.xlu0 %4652
  %4655 = vset.pattern.permute.xlu0 24
  %4656 = vperm.xlu0 %4655, %v2900
  %v4657 = vpop.permute.xlu0 %4656
  %4659 = vset.pattern.permute.xlu0 24
  %4660 = vperm.xlu0 %4659, %v2901
  %v4661 = vpop.permute.xlu0 %4660
  %4663 = vset.pattern.permute.xlu0 24
  %4664 = vperm.xlu0 %4663, %v2902
  %v4665 = vpop.permute.xlu0 %4664
  %4667 = vset.pattern.permute.xlu0 24
  %4668 = vperm.xlu0 %4667, %v2903
  %v4669 = vpop.permute.xlu0 %4668
  %4671 = vset.pattern.permute.xlu0 24
  %4672 = vperm.xlu0 %4671, %v2904
  %v4673 = vpop.permute.xlu0 %4672
  %4675 = vset.pattern.permute.xlu0 24
  %4676 = vperm.xlu0 %4675, %v2905
  %v4677 = vpop.permute.xlu0 %4676
  %v4679 = vmul.f32 %v2860, %v4645
  %v4680 = vmul.f32 %v2863, %v4649
  %v4681 = vmul.f32 %v2868, %v4653
  %v4682 = vmul.f32 %v2871, %v4657
  %v4683 = vmul.f32 %v2876, %v4661
  %v4684 = vmul.f32 %v2879, %v4665
  %v4685 = vmul.f32 %v2884, %v4669
  %v4686 = vmul.f32 %v2887, %v4673
  %v4687 = vmul.f32 %v2892, %v4677
  %v4688 = vadd.f32 %v4634, %v4679
  %v4689 = vadd.f32 %v4635, %v4680
  %v4690 = vadd.f32 %v4636, %v4681
  %v4691 = vadd.f32 %v4637, %v4682
  %v4692 = vadd.f32 %v4638, %v4683
  %v4693 = vadd.f32 %v4639, %v4684
  %v4694 = vadd.f32 %v4640, %v4685
  %v4695 = vadd.f32 %v4641, %v4686
  %v4696 = vadd.f32 %v4642, %v4687
  %vm4697 = vcmask 523264
  %v4698 = vsel %vm4697, %v4688, 0.0
  %4699 = vadd.xlane.f32.xlu0 %v4698
  %v4700 = vpop.xlane.xlu0 %4699
  %v4701 = vsel %vm4697, %v4689, 0.0
  %4702 = vadd.xlane.f32.xlu0 %v4701
  %v4703 = vpop.xlane.xlu0 %4702
  %v4704 = vsel %vm4697, %v4690, 0.0
  %4705 = vadd.xlane.f32.xlu0 %v4704
  %v4706 = vpop.xlane.xlu0 %4705
  %v4707 = vsel %vm4697, %v4691, 0.0
  %4708 = vadd.xlane.f32.xlu0 %v4707
  %v4709 = vpop.xlane.xlu0 %4708
  %v4710 = vsel %vm4697, %v4692, 0.0
  %4711 = vadd.xlane.f32.xlu0 %v4710
  %v4712 = vpop.xlane.xlu0 %4711
  %v4713 = vsel %vm4697, %v4693, 0.0
  %4714 = vadd.xlane.f32.xlu0 %v4713
  %v4715 = vpop.xlane.xlu0 %4714
  %v4716 = vsel %vm4697, %v4694, 0.0
  %4717 = vadd.xlane.f32.xlu0 %v4716
  %v4718 = vpop.xlane.xlu0 %4717
  %v4719 = vsel %vm4697, %v4695, 0.0
  %4720 = vadd.xlane.f32.xlu0 %v4719
  %v4721 = vpop.xlane.xlu0 %4720
  %v4722 = vsel %vm4697, %v4696, 0.0
  %4723 = vadd.xlane.f32.xlu0 %v4722
  %v4724 = vpop.xlane.xlu0 %4723
  %v4725 = vmul.f32 %v4700, 0.015625
  %v4726 = vmul.f32 %v4703, 0.015625
  %v4727 = vmul.f32 %v4706, 0.015625
  %v4728 = vmul.f32 %v4709, 0.015625
  %v4729 = vmul.f32 %v4712, 0.015625
  %v4730 = vmul.f32 %v4715, 0.015625
  %v4731 = vmul.f32 %v4718, 0.015625
  %v4732 = vmul.f32 %v4721, 0.015625
  %v4733 = vmul.f32 %v4724, 0.015625
  %v4734 = vsub.f32 %v4688, %v4725
  %v4735 = vsub.f32 %v4689, %v4726
  %v4736 = vsub.f32 %v4690, %v4727
  %v4737 = vsub.f32 %v4691, %v4728
  %v4738 = vsub.f32 %v4692, %v4729
  %v4739 = vsub.f32 %v4693, %v4730
  %v4740 = vsub.f32 %v4694, %v4731
  %v4741 = vsub.f32 %v4695, %v4732
  %v4742 = vsub.f32 %v4696, %v4733
  %v4743 = vmul.f32 %v4734, %v4734
  %v4744 = vmul.f32 %v4735, %v4735
  %v4745 = vmul.f32 %v4736, %v4736
  %v4746 = vmul.f32 %v4737, %v4737
  %v4747 = vmul.f32 %v4738, %v4738
  %v4748 = vmul.f32 %v4739, %v4739
  %v4749 = vmul.f32 %v4740, %v4740
  %v4750 = vmul.f32 %v4741, %v4741
  %v4751 = vmul.f32 %v4742, %v4742
  %v4752 = vsel %vm4697, %v4743, 0.0
  %4753 = vadd.xlane.f32.xlu0 %v4752
  %v4754 = vpop.xlane.xlu0 %4753
  %v4755 = vsel %vm4697, %v4744, 0.0
  %4756 = vadd.xlane.f32.xlu0 %v4755
  %v4757 = vpop.xlane.xlu0 %4756
  %v4758 = vsel %vm4697, %v4745, 0.0
  %4759 = vadd.xlane.f32.xlu0 %v4758
  %v4760 = vpop.xlane.xlu0 %4759
  %v4761 = vsel %vm4697, %v4746, 0.0
  %4762 = vadd.xlane.f32.xlu0 %v4761
  %v4763 = vpop.xlane.xlu0 %4762
  %v4764 = vsel %vm4697, %v4747, 0.0
  %4765 = vadd.xlane.f32.xlu0 %v4764
  %v4766 = vpop.xlane.xlu0 %4765
  %v4767 = vsel %vm4697, %v4748, 0.0
  %4768 = vadd.xlane.f32.xlu0 %v4767
  %v4769 = vpop.xlane.xlu0 %4768
  %v4770 = vsel %vm4697, %v4749, 0.0
  %4771 = vadd.xlane.f32.xlu0 %v4770
  %v4772 = vpop.xlane.xlu0 %4771
  %v4773 = vsel %vm4697, %v4750, 0.0
  %4774 = vadd.xlane.f32.xlu0 %v4773
  %v4775 = vpop.xlane.xlu0 %4774
  %v4776 = vsel %vm4697, %v4751, 0.0
  %4777 = vadd.xlane.f32.xlu0 %v4776
  %v4778 = vpop.xlane.xlu0 %4777
  %v4779 = vmul.f32 %v4754, 0.015625
  %v4780 = vmul.f32 %v4757, 0.015625
  %v4781 = vmul.f32 %v4760, 0.015625
  %v4782 = vmul.f32 %v4763, 0.015625
  %v4783 = vmul.f32 %v4766, 0.015625
  %v4784 = vmul.f32 %v4769, 0.015625
  %v4785 = vmul.f32 %v4772, 0.015625
  %v4786 = vmul.f32 %v4775, 0.015625
  %v4787 = vmul.f32 %v4778, 0.015625
  %v4788 = vadd.f32 %v4779, 0.001
  %v4789 = vadd.f32 %v4780, 0.001
  %v4790 = vadd.f32 %v4781, 0.001
  %v4791 = vadd.f32 %v4782, 0.001
  %v4792 = vadd.f32 %v4783, 0.001
  %v4793 = vadd.f32 %v4784, 0.001
  %v4794 = vadd.f32 %v4785, 0.001
  %v4795 = vadd.f32 %v4786, 0.001
  %v4796 = vadd.f32 %v4787, 0.001
  %v4797 = vrsqrt.pop %v4788
  %v4798 = vrsqrt.pop %v4789
  %v4799 = vrsqrt.pop %v4790
  %v4800 = vrsqrt.pop %v4791
  %v4801 = vrsqrt.pop %v4792
  %v4802 = vrsqrt.pop %v4793
  %v4803 = vrsqrt.pop %v4794
  %v4804 = vrsqrt.pop %v4795
  %v4805 = vrsqrt.pop %v4796
  %v4806 = vmul.f32 %v4797, %v157
  %v4807 = vmul.f32 %v4798, %v158
  %v4808 = vmul.f32 %v4799, %v159
  %v4809 = vmul.f32 %v4800, %v160
  %v4810 = vmul.f32 %v4801, %v161
  %v4811 = vmul.f32 %v4802, %v162
  %v4812 = vmul.f32 %v4803, %v163
  %v4813 = vmul.f32 %v4804, %v164
  %v4814 = vmul.f32 %v4805, %v165
  %4816 = vset.pattern.permute.xlu0 2
  %4817 = vperm.xlu0 %4816, %v4806
  %v4818 = vpop.permute.xlu0 %4817
  %4821 = vset.pattern.permute.xlu0 2
  %4822 = vperm.xlu0 %4821, %v4807
  %v4823 = vpop.permute.xlu0 %4822
  %4826 = vset.pattern.permute.xlu0 2
  %4827 = vperm.xlu0 %4826, %v4808
  %v4828 = vpop.permute.xlu0 %4827
  %4831 = vset.pattern.permute.xlu0 2
  %4832 = vperm.xlu0 %4831, %v4809
  %v4833 = vpop.permute.xlu0 %4832
  %4836 = vset.pattern.permute.xlu0 2
  %4837 = vperm.xlu0 %4836, %v4810
  %v4838 = vpop.permute.xlu0 %4837
  %4841 = vset.pattern.permute.xlu0 2
  %4842 = vperm.xlu0 %4841, %v4811
  %v4843 = vpop.permute.xlu0 %4842
  %4846 = vset.pattern.permute.xlu0 2
  %4847 = vperm.xlu0 %4846, %v4812
  %v4848 = vpop.permute.xlu0 %4847
  %4851 = vset.pattern.permute.xlu0 2
  %4852 = vperm.xlu0 %4851, %v4813
  %v4853 = vpop.permute.xlu0 %4852
  %4856 = vset.pattern.permute.xlu0 2
  %4857 = vperm.xlu0 %4856, %v4814
  %v4858 = vpop.permute.xlu0 %4857
  %v4860 = vmul.f32 %v4734, %v4818
  %v4861 = vmul.f32 %v4735, %v4823
  %v4862 = vmul.f32 %v4736, %v4828
  %v4863 = vmul.f32 %v4737, %v4833
  %v4864 = vmul.f32 %v4738, %v4838
  %v4865 = vmul.f32 %v4739, %v4843
  %v4866 = vmul.f32 %v4740, %v4848
  %v4867 = vmul.f32 %v4741, %v4853
  %v4868 = vmul.f32 %v4742, %v4858
  %4869 = vset.pattern.permute.xlu0 3
  %4870 = vperm.xlu0 %4869, %v157
  %v4871 = vpop.permute.xlu0 %4870
  %4873 = vset.pattern.permute.xlu0 3
  %4874 = vperm.xlu0 %4873, %v158
  %v4875 = vpop.permute.xlu0 %4874
  %4877 = vset.pattern.permute.xlu0 3
  %4878 = vperm.xlu0 %4877, %v159
  %v4879 = vpop.permute.xlu0 %4878
  %4881 = vset.pattern.permute.xlu0 3
  %4882 = vperm.xlu0 %4881, %v160
  %v4883 = vpop.permute.xlu0 %4882
  %4885 = vset.pattern.permute.xlu0 3
  %4886 = vperm.xlu0 %4885, %v161
  %v4887 = vpop.permute.xlu0 %4886
  %4889 = vset.pattern.permute.xlu0 3
  %4890 = vperm.xlu0 %4889, %v162
  %v4891 = vpop.permute.xlu0 %4890
  %4893 = vset.pattern.permute.xlu0 3
  %4894 = vperm.xlu0 %4893, %v163
  %v4895 = vpop.permute.xlu0 %4894
  %4897 = vset.pattern.permute.xlu0 3
  %4898 = vperm.xlu0 %4897, %v164
  %v4899 = vpop.permute.xlu0 %4898
  %4901 = vset.pattern.permute.xlu0 3
  %4902 = vperm.xlu0 %4901, %v165
  %v4903 = vpop.permute.xlu0 %4902
  %v4905 = vadd.f32 %v4860, %v4871
  %v4906 = vadd.f32 %v4861, %v4875
  %v4907 = vadd.f32 %v4862, %v4879
  %v4908 = vadd.f32 %v4863, %v4883
  %v4909 = vadd.f32 %v4864, %v4887
  %v4910 = vadd.f32 %v4865, %v4891
  %v4911 = vadd.f32 %v4866, %v4895
  %v4912 = vadd.f32 %v4867, %v4899
  %v4913 = vadd.f32 %v4868, %v4903
  %4914 = vst.msk [vmem:[%s5] sm:$0xff] %vm4697, %v4905
  %4915 = vst.msk [vmem:[%s5 + $0x8] sm:$0xff] %vm4697, %v4906
  %4916 = vst.msk [vmem:[%s5 + $0x10] sm:$0xff] %vm4697, %v4907
  %4917 = vst.msk [vmem:[%s5 + $0x18] sm:$0xff] %vm4697, %v4908
  %4918 = vst.msk [vmem:[%s5 + $0x20] sm:$0xff] %vm4697, %v4909
  %4919 = vst.msk [vmem:[%s5 + $0x28] sm:$0xff] %vm4697, %v4910
  %4920 = vst.msk [vmem:[%s5 + $0x30] sm:$0xff] %vm4697, %v4911
  %4921 = vst.msk [vmem:[%s5 + $0x38] sm:$0xff] %vm4697, %v4912
  %4922 = vst.msk [vmem:[%s5 + $0x40] sm:$0xff] %vm4697, %v4913
  // Predicated region
  $region22: #{tpu_custom_call.1} parent=0 // pred_check
    _
  $region23: #{tpu_custom_call.1} parent=0 // pred_check_branch
    %4924 = sbr.rel (0) target = $region25
  $region24: #{tpu_custom_call.1} parent=0 // pred_region
    _
  $region25: #{tpu_custom_call.1} parent=0 // pred_fallthru
    _
  // Predicated region
  $region26: #{tpu_custom_call.1} parent=0 // pred_check
    _
  $region27: #{tpu_custom_call.1} parent=0 // pred_check_branch
    %4926 = sbr.rel (0) target = $region29
  $region28: #{tpu_custom_call.1} parent=0 // pred_region
    _
  $region29: #{tpu_custom_call.1} parent=0 // pred_fallthru
    _

</llo_original>
